<compile_context>
chip_gen: v7x
topology: tpu7x:2x2x1
jax: 0.10.0
libtpu: 0.0.40
codegen_flags: <defaults>
</compile_context>

<pallas_src>
import functools

import jax
import jax.numpy as jnp
from jax.experimental import pallas as pl
from jax.experimental.pallas import tpu as pltpu

_VMEM = pl.BlockSpec(memory_space=pltpu.MemorySpace.VMEM)
_dot = functools.partial(jnp.dot, preferred_element_type=jnp.float32)

DP = 128      # padded hidden/out feature dim (logical 70)
IN_P = 256    # padded node input dim       (logical 146)
EIN_P = 128   # padded edge input dim       (logical 1)
CP = 128      # padded class dim            (logical 10)


# ----------------------------------------------------------------------------
# Fused Pallas kernel: embeddings -> L GatedGCN layers -> mean_nodes -> MLP
# ----------------------------------------------------------------------------
def _fused_gcn_kernel(nodes_ref, edges_ref, ssrc_ref, sdst_ref, sdstT_ref,
                      snn_ref, sne_ref, mean_ref,
                      ehw_ref, ehb_ref, eew_ref, eeb_ref,
                      wabde_ref, babde_ref, wc_ref, bc_ref,
                      bnh_ref, bne_ref,
                      w1_ref, b1_ref, w2_ref, b2_ref, w3_ref, b3_ref,
                      out_ref):
    bf16 = jnp.bfloat16

    # input embeddings
    h = _dot(nodes_ref[...], ehw_ref[...]) + ehb_ref[...]       # (N, DP)
    e = _dot(edges_ref[...], eew_ref[...]) + eeb_ref[...]       # (E, DP)

    # incidence matrices stay resident in VMEM across all layers (bf16, exact)
    ssrc = ssrc_ref[...]                                        # (E, N) bf16
    sdst = sdst_ref[...]                                        # (E, N) bf16
    sdstT = sdstT_ref[...]                                      # (N, E) bf16
    snn = snn_ref[...]                                          # (N, 1)
    sne = sne_ref[...]                                          # (E, 1)

    n_layers = wabde_ref.shape[0]
    for l in range(n_layers):                                   # static unroll
        # fused node linear: one wide matmul producing A|B|D|E
        y = _dot(h, wabde_ref[l]) + babde_ref[l]                # (N, 4*DP)
        ah = y[:, 0:DP]
        bd = y[:, DP:3 * DP]                                    # B | D slab
        ehd = y[:, 3 * DP:4 * DP]                               # E-linear
        ce = _dot(e, wc_ref[l]) + bc_ref[l]                     # (E, DP)

        # shared one-hot LHS gathers
        src_bd = _dot(ssrc, bd.astype(bf16))                    # (E, 2*DP): B[src]|D[src]
        eh_dst = _dot(sdst, ehd.astype(bf16))                   # (E, DP):   E[dst]

        # per-edge update: e_ij = Ce_ij + Dh[src] + Eh[dst]
        e_new = ce + src_bd[:, DP:2 * DP] + eh_dst
        sigma = jax.nn.sigmoid(e_new)

        # gated neighborhood mean: one scatter matmul for numerator|denominator
        msg = jnp.concatenate([sigma * src_bd[:, 0:DP], sigma], axis=-1)
        agg = _dot(sdstT, msg.astype(bf16))                     # (N, 2*DP)
        h_new = ah + agg[:, 0:DP] * pl.reciprocal(
            agg[:, DP:2 * DP] + 1e-6, approx=True)

        # graph-size norm
        h_new = h_new * snn
        e_new = e_new * sne

        # batch norm (inference), folded to affine: row0 = scale, row1 = shift
        bnh = bnh_ref[l]
        bne = bne_ref[l]
        h_new = h_new * bnh[0:1, :] + bnh[1:2, :]
        e_new = e_new * bne[0:1, :] + bne[1:2, :]

        # ReLU + residual (in_dim == out_dim for every layer)
        h = h + jnp.maximum(h_new, 0.0)
        e = e + jnp.maximum(e_new, 0.0)

    # dgl.mean_nodes + MLPReadout
    hg = _dot(mean_ref[...], h)                                 # (G, DP)
    y1 = jnp.maximum(_dot(hg, w1_ref[...]) + b1_ref[...], 0.0)
    y2 = jnp.maximum(_dot(y1, w2_ref[...]) + b2_ref[...], 0.0)
    out_ref[...] = _dot(y2, w3_ref[...]) + b3_ref[...]          # (G, CP)


# ----------------------------------------------------------------------------
# Padding / packing helpers
# ----------------------------------------------------------------------------
def _round_up(x, m):
    return ((x + m - 1) // m) * m


def _pad_to(x, rows, cols):
    out = jnp.zeros((rows, cols), x.dtype)
    return out.at[:x.shape[0], :x.shape[1]].set(x)


def _bn_affine(bn, eps=1e-5):
    # bn rows: [gamma, beta, running_mean, running_var]  -> [scale, shift]
    gamma, beta, mean, var = bn[0], bn[1], bn[2], bn[3]
    scale = gamma * jax.lax.rsqrt(var + eps)
    shift = beta - mean * scale
    return _pad_to(jnp.stack([scale, shift]).astype(jnp.float32), 2, DP)


def pack_params(p):
    """Pad to lane-dense dims, fuse A|B|D|E weights, fold BN, stack layers."""
    packed = {
        "ehw": _pad_to(p["emb_h_w"], IN_P, DP),
        "ehb": _pad_to(p["emb_h_b"], 1, DP),
        "eew": _pad_to(p["emb_e_w"], EIN_P, DP),
        "eeb": _pad_to(p["emb_e_b"], 1, DP),
    }
    wabde, babde, wc, bc, bnh, bne = [], [], [], [], [], []
    for lp in p["gcn"]:
        wabde.append(jnp.concatenate(
            [_pad_to(lp["w" + n], DP, DP) for n in "ABDE"], axis=1))
        babde.append(jnp.concatenate(
            [_pad_to(lp["b" + n], 1, DP) for n in "ABDE"], axis=1))
        wc.append(_pad_to(lp["wC"], DP, DP))
        bc.append(_pad_to(lp["bC"], 1, DP))
        bnh.append(_bn_affine(lp["bn_h"]))
        bne.append(_bn_affine(lp["bn_e"]))
    packed["wabde"] = jnp.stack(wabde)      # (L, DP, 4*DP)
    packed["babde"] = jnp.stack(babde)      # (L, 1, 4*DP)
    packed["wc"] = jnp.stack(wc)            # (L, DP, DP)
    packed["bc"] = jnp.stack(bc)            # (L, 1, DP)
    packed["bnh"] = jnp.stack(bnh)          # (L, 2, DP)
    packed["bne"] = jnp.stack(bne)          # (L, 2, DP)
    packed["w1"] = _pad_to(p["ro"]["w1"], DP, DP)
    packed["b1"] = _pad_to(p["ro"]["b1"], 1, DP)
    packed["w2"] = _pad_to(p["ro"]["w2"], DP, DP)
    packed["b2"] = _pad_to(p["ro"]["b2"], 1, DP)
    packed["w3"] = _pad_to(p["ro"]["w3"], DP, CP)
    packed["b3"] = _pad_to(p["ro"]["b3"], 1, CP)
    return packed


# ----------------------------------------------------------------------------
# Parameter initialization (deterministic, PyTorch-style uniform fan-in)
# ----------------------------------------------------------------------------
def _init_linear(key, din, dout):
    kw, kb = jax.random.split(key)
    bound = 1.0 / jnp.sqrt(jnp.float32(din))
    w = jax.random.uniform(kw, (din, dout), jnp.float32, -bound, bound)
    b = jax.random.uniform(kb, (1, dout), jnp.float32, -bound, bound)
    return w, b


def _init_gcn_layer(key, din, dout):
    keys = jax.random.split(key, 5)
    p = {}
    for k, name in zip(keys, "ABCDE"):
        w, b = _init_linear(k, din, dout)
        p["w" + name] = w
        p["b" + name] = b
    # BN rows: [gamma, beta, running_mean, running_var]
    bn = jnp.stack([jnp.ones((dout,)), jnp.zeros((dout,)),
                    jnp.zeros((dout,)), jnp.ones((dout,))]).astype(jnp.float32)
    p["bn_h"] = bn
    p["bn_e"] = bn
    return p


def init_params(key, in_dim=146, hidden_dims=(70, 70, 70, 70), out_dim=70,
                n_classes=10):
    keys = jax.random.split(key, 16)
    p = {}
    p["emb_h_w"], p["emb_h_b"] = _init_linear(keys[0], in_dim, hidden_dims[0])
    p["emb_e_w"], p["emb_e_b"] = _init_linear(keys[1], 1, hidden_dims[0])
    dims = list(hidden_dims) + [out_dim]
    p["gcn"] = [_init_gcn_layer(keys[2 + i], dims[i], dims[i + 1])
                for i in range(len(dims) - 1)]
    d1, d2 = out_dim // 2, out_dim // 4
    p["ro"] = {}
    p["ro"]["w1"], p["ro"]["b1"] = _init_linear(keys[10], out_dim, d1)
    p["ro"]["w2"], p["ro"]["b2"] = _init_linear(keys[11], d1, d2)
    p["ro"]["w3"], p["ro"]["b3"] = _init_linear(keys[12], d2, n_classes)
    return p


# ----------------------------------------------------------------------------
# Forward pass wrapper: one fused pallas_call
# ----------------------------------------------------------------------------
def gated_gcn_net2_forward(packed, nodes_feat, edges_feat, ssrc, sdst, sdstT,
                           snorm_n, snorm_e, mean_mat, n_classes=10):
    n, e_cnt, g = nodes_feat.shape[0], edges_feat.shape[0], mean_mat.shape[0]
    n_p, e_p = _round_up(n, 8), _round_up(e_cnt, 8)
    n_layers = packed["wabde"].shape[0]

    nf = _pad_to(nodes_feat, n_p, IN_P)
    ef = _pad_to(edges_feat, e_p, EIN_P)
    ssrc_p = _pad_to(ssrc, e_p, n_p).astype(jnp.bfloat16)
    sdst_p = _pad_to(sdst, e_p, n_p).astype(jnp.bfloat16)
    sdstT_p = _pad_to(sdstT, n_p, e_p).astype(jnp.bfloat16)
    snn = _pad_to(snorm_n, n_p, 1)
    sne = _pad_to(snorm_e, e_p, 1)
    mm = _pad_to(mean_mat, g, n_p)

    args = (nf, ef, ssrc_p, sdst_p, sdstT_p, snn, sne, mm,
            packed["ehw"], packed["ehb"], packed["eew"], packed["eeb"],
            packed["wabde"], packed["babde"], packed["wc"], packed["bc"],
            packed["bnh"], packed["bne"],
            packed["w1"], packed["b1"], packed["w2"], packed["b2"],
            packed["w3"], packed["b3"])

    # advisory cost estimate (dominated by the incidence matmuls)
    flops = 2 * n_p * IN_P * DP + 2 * e_p * EIN_P * DP
    flops += n_layers * (2 * n_p * DP * 4 * DP + 2 * e_p * DP * DP
                         + 2 * e_p * n_p * 3 * DP + 2 * n_p * e_p * 2 * DP)
    flops += 2 * g * n_p * DP + 4 * g * DP * DP + 2 * g * DP * CP
    transcendentals = n_layers * (e_p * DP + n_p * DP)
    bytes_accessed = sum(a.size * a.dtype.itemsize for a in args) + g * CP * 4

    out = pl.pallas_call(
        _fused_gcn_kernel,
        out_shape=jax.ShapeDtypeStruct((g, CP), jnp.float32),
        in_specs=[_VMEM] * len(args),
        out_specs=_VMEM,
        compiler_params=pltpu.CompilerParams(
            vmem_limit_bytes=32 * 1024 * 1024),
        cost_estimate=pl.CostEstimate(flops=int(flops),
                                      transcendentals=int(transcendentals),
                                      bytes_accessed=int(bytes_accessed)),
    )(*args)
    return out[:, :n_classes]


# ----------------------------------------------------------------------------
# Pure-JAX reference (f32, exact reciprocal) for sanity checking
# ----------------------------------------------------------------------------
def _reference_forward(p, nodes_feat, edges_feat, ssrc, sdst, sdstT,
                       snn, sne, mean_mat):
    def lin(x, w, b):
        return x @ w + b

    def bn(x, bnp):
        return (x - bnp[2]) / jnp.sqrt(bnp[3] + 1e-5) * bnp[0] + bnp[1]

    h = lin(nodes_feat, p["emb_h_w"], p["emb_h_b"])
    e = lin(edges_feat, p["emb_e_w"], p["emb_e_b"])
    for lp in p["gcn"]:
        Ah = lin(h, lp["wA"], lp["bA"])
        Bh = lin(h, lp["wB"], lp["bB"])
        Ce = lin(e, lp["wC"], lp["bC"])
        Dh = lin(h, lp["wD"], lp["bD"])
        Eh = lin(h, lp["wE"], lp["bE"])
        e_new = Ce + ssrc @ Dh + sdst @ Eh
        sigma = jax.nn.sigmoid(e_new)
        Bh_src = ssrc @ Bh
        h_new = Ah + (sdstT @ (sigma * Bh_src)) / (sdstT @ sigma + 1e-6)
        h_new = bn(h_new * snn, lp["bn_h"])
        e_new = bn(e_new * sne, lp["bn_e"])
        h = h + jnp.maximum(h_new, 0.0)
        e = e + jnp.maximum(e_new, 0.0)
    hg = mean_mat @ h
    y = jnp.maximum(lin(hg, p["ro"]["w1"], p["ro"]["b1"]), 0.0)
    y = jnp.maximum(lin(y, p["ro"]["w2"], p["ro"]["b2"]), 0.0)
    return lin(y, p["ro"]["w3"], p["ro"]["b3"])


# ----------------------------------------------------------------------------
# Demo
# ----------------------------------------------------------------------------
if __name__ == "__main__":
    key = jax.random.PRNGKey(0)
    k_feat, k_efeat, k_param = jax.random.split(key, 3)

    # 2 graphs x 12 nodes, bidirectional ring per graph -> every node has
    # in-degree 2 (matches DGL update_all semantics under the dense encoding).
    n_graphs, nodes_per_g = 2, 12
    N = n_graphs * nodes_per_g
    src_list, dst_list, graph_id = [], [], []
    for g in range(n_graphs):
        base = g * nodes_per_g
        for i in range(nodes_per_g):
            src_list += [base + i, base + i]
            dst_list += [base + (i + 1) % nodes_per_g,
                         base + (i - 1) % nodes_per_g]
        graph_id += [g] * nodes_per_g
    E = len(src_list)

    src = jnp.array(src_list, jnp.int32)
    dst = jnp.array(dst_list, jnp.int32)
    graph_id = jnp.array(graph_id, jnp.int32)

    in_dim, hidden_dims, out_dim, n_classes = 146, (70, 70, 70, 70), 70, 10

    nodes_feat = jax.random.normal(k_feat, (N, in_dim), jnp.float32)
    edges_feat = jax.random.normal(k_efeat, (E, 1), jnp.float32)

    # dense graph encoding
    ssrc = jax.nn.one_hot(src, N, dtype=jnp.float32)             # (E, N)
    sdst = jax.nn.one_hot(dst, N, dtype=jnp.float32)             # (E, N)
    sdstT = sdst.T                                                # (N, E)
    # dgl.mean_nodes readout matrix (G, N)
    mean_mat = (jax.nn.one_hot(graph_id, n_graphs, dtype=jnp.float32).T
                / float(nodes_per_g))
    # graph-size norms 1/sqrt(|V_g|), 1/sqrt(|E_g|)
    snorm_n = jnp.full((N, 1), 1.0 / jnp.sqrt(float(nodes_per_g)), jnp.float32)
    snorm_e = jnp.full((E, 1), 1.0 / jnp.sqrt(float(E // n_graphs)), jnp.float32)

    params = init_params(k_param, in_dim, hidden_dims, out_dim, n_classes)
    packed = pack_params(params)

    logits = gated_gcn_net2_forward(packed, nodes_feat, edges_feat,
                                    ssrc, sdst, sdstT, snorm_n, snorm_e,
                                    mean_mat, n_classes=n_classes)
    logits = jax.block_until_ready(logits)

    ref = _reference_forward(params, nodes_feat, edges_feat, ssrc, sdst, sdstT,
                             snorm_n, snorm_e, mean_mat)

    assert logits.shape == (n_graphs, n_classes)
    assert bool(jnp.all(jnp.isfinite(logits)))
    # loose tolerance: incidence/activation operands of the gather/scatter
    # matmuls run in bf16 and the gated mean uses an approx reciprocal.
    assert bool(jnp.allclose(logits, ref, rtol=0.15, atol=0.15))
    print("KERNEL_OK")
</pallas_src>

<mosaic_0001>
module attributes {stable_mosaic.version = 11 : i64} {
  func.func @_fused_gcn_kernel(%arg0: memref<24x256xf32, #tpu.memory_space<vmem>>, %arg1: memref<48x128xf32, #tpu.memory_space<vmem>>, %arg2: memref<48x24xbf16, #tpu.memory_space<vmem>>, %arg3: memref<48x24xbf16, #tpu.memory_space<vmem>>, %arg4: memref<24x48xbf16, #tpu.memory_space<vmem>>, %arg5: memref<24x1xf32, #tpu.memory_space<vmem>>, %arg6: memref<48x1xf32, #tpu.memory_space<vmem>>, %arg7: memref<2x24xf32, #tpu.memory_space<vmem>>, %arg8: memref<256x128xf32, #tpu.memory_space<vmem>>, %arg9: memref<1x128xf32, #tpu.memory_space<vmem>>, %arg10: memref<128x128xf32, #tpu.memory_space<vmem>>, %arg11: memref<1x128xf32, #tpu.memory_space<vmem>>, %arg12: memref<4x128x512xf32, #tpu.memory_space<vmem>>, %arg13: memref<4x1x512xf32, #tpu.memory_space<vmem>>, %arg14: memref<4x128x128xf32, #tpu.memory_space<vmem>>, %arg15: memref<4x1x128xf32, #tpu.memory_space<vmem>>, %arg16: memref<4x2x128xf32, #tpu.memory_space<vmem>>, %arg17: memref<4x2x128xf32, #tpu.memory_space<vmem>>, %arg18: memref<128x128xf32, #tpu.memory_space<vmem>>, %arg19: memref<1x128xf32, #tpu.memory_space<vmem>>, %arg20: memref<128x128xf32, #tpu.memory_space<vmem>>, %arg21: memref<1x128xf32, #tpu.memory_space<vmem>>, %arg22: memref<128x128xf32, #tpu.memory_space<vmem>>, %arg23: memref<1x128xf32, #tpu.memory_space<vmem>>, %arg24: memref<2x128xf32, #tpu.memory_space<vmem>>) attributes {dimension_semantics = [], scalar_prefetch = 0 : i64, scratch_operands = 0 : i64, tpu.core_type = #tpu.core_type<tc>} {
    %c0 = arith.constant 0 : index
    %c0_0 = arith.constant 0 : index
    %0 = vector.load %arg0[%c0, %c0_0] : memref<24x256xf32, #tpu.memory_space<vmem>>, vector<24x256xf32>
    %c0_1 = arith.constant 0 : index
    %c0_2 = arith.constant 0 : index
    %1 = vector.load %arg8[%c0_1, %c0_2] : memref<256x128xf32, #tpu.memory_space<vmem>>, vector<256x128xf32>
    %cst = arith.constant dense<0.000000e+00> : vector<24x128xf32>
    %2 = tpu.matmul %0, %1, %cst {dimension_numbers = #tpu.dot_dimension_numbers<[1], [0], [0], [1], [0, 0, 1, 1], [], []>} : vector<24x256xf32>, vector<256x128xf32>, vector<24x128xf32> -> vector<24x128xf32>
    %c0_3 = arith.constant 0 : index
    %c0_4 = arith.constant 0 : index
    %3 = vector.load %arg9[%c0_3, %c0_4] : memref<1x128xf32, #tpu.memory_space<vmem>>, vector<1x128xf32>
    %4 = vector.broadcast %3 : vector<1x128xf32> to vector<24x128xf32>
    %5 = arith.addf %2, %4 : vector<24x128xf32>
    %c0_5 = arith.constant 0 : index
    %c0_6 = arith.constant 0 : index
    %6 = vector.load %arg1[%c0_5, %c0_6] : memref<48x128xf32, #tpu.memory_space<vmem>>, vector<48x128xf32>
    %c0_7 = arith.constant 0 : index
    %c0_8 = arith.constant 0 : index
    %7 = vector.load %arg10[%c0_7, %c0_8] : memref<128x128xf32, #tpu.memory_space<vmem>>, vector<128x128xf32>
    %cst_9 = arith.constant dense<0.000000e+00> : vector<48x128xf32>
    %8 = tpu.matmul %6, %7, %cst_9 {dimension_numbers = #tpu.dot_dimension_numbers<[1], [0], [0], [1], [0, 0, 1, 1], [], []>} : vector<48x128xf32>, vector<128x128xf32>, vector<48x128xf32> -> vector<48x128xf32>
    %c0_10 = arith.constant 0 : index
    %c0_11 = arith.constant 0 : index
    %9 = vector.load %arg11[%c0_10, %c0_11] : memref<1x128xf32, #tpu.memory_space<vmem>>, vector<1x128xf32>
    %10 = vector.broadcast %9 : vector<1x128xf32> to vector<48x128xf32>
    %11 = arith.addf %8, %10 : vector<48x128xf32>
    %c0_12 = arith.constant 0 : index
    %c0_13 = arith.constant 0 : index
    %12 = vector.load %arg2[%c0_12, %c0_13] : memref<48x24xbf16, #tpu.memory_space<vmem>>, vector<48x24xbf16>
    %c0_14 = arith.constant 0 : index
    %c0_15 = arith.constant 0 : index
    %13 = vector.load %arg3[%c0_14, %c0_15] : memref<48x24xbf16, #tpu.memory_space<vmem>>, vector<48x24xbf16>
    %c0_16 = arith.constant 0 : index
    %c0_17 = arith.constant 0 : index
    %14 = vector.load %arg4[%c0_16, %c0_17] : memref<24x48xbf16, #tpu.memory_space<vmem>>, vector<24x48xbf16>
    %c0_18 = arith.constant 0 : index
    %c0_19 = arith.constant 0 : index
    %15 = vector.load %arg5[%c0_18, %c0_19] : memref<24x1xf32, #tpu.memory_space<vmem>>, vector<24x1xf32>
    %c0_20 = arith.constant 0 : index
    %c0_21 = arith.constant 0 : index
    %16 = vector.load %arg6[%c0_20, %c0_21] : memref<48x1xf32, #tpu.memory_space<vmem>>, vector<48x1xf32>
    %c0_22 = arith.constant 0 : index
    %c0_23 = arith.constant 0 : index
    %c0_24 = arith.constant 0 : index
    %17 = vector.load %arg12[%c0_22, %c0_23, %c0_24] : memref<4x128x512xf32, #tpu.memory_space<vmem>>, vector<1x128x512xf32>
    %18 = vector.shape_cast %17 : vector<1x128x512xf32> to vector<128x512xf32>
    %cst_25 = arith.constant dense<0.000000e+00> : vector<24x512xf32>
    %19 = tpu.matmul %5, %18, %cst_25 {dimension_numbers = #tpu.dot_dimension_numbers<[1], [0], [0], [1], [0, 0, 1, 1], [], []>} : vector<24x128xf32>, vector<128x512xf32>, vector<24x512xf32> -> vector<24x512xf32>
    %c0_26 = arith.constant 0 : index
    %c0_27 = arith.constant 0 : index
    %c0_28 = arith.constant 0 : index
    %20 = vector.load %arg13[%c0_26, %c0_27, %c0_28] : memref<4x1x512xf32, #tpu.memory_space<vmem>>, vector<1x1x512xf32>
    %21 = vector.shape_cast %20 : vector<1x1x512xf32> to vector<1x512xf32>
    %22 = vector.broadcast %21 : vector<1x512xf32> to vector<24x512xf32>
    %23 = arith.addf %19, %22 : vector<24x512xf32>
    %24 = vector.extract_strided_slice %23 {offsets = [0, 0], sizes = [24, 128], strides = [1, 1]} : vector<24x512xf32> to vector<24x128xf32>
    %25 = vector.extract_strided_slice %23 {offsets = [0, 128], sizes = [24, 256], strides = [1, 1]} : vector<24x512xf32> to vector<24x256xf32>
    %26 = vector.extract_strided_slice %23 {offsets = [0, 384], sizes = [24, 128], strides = [1, 1]} : vector<24x512xf32> to vector<24x128xf32>
    %c0_29 = arith.constant 0 : index
    %c0_30 = arith.constant 0 : index
    %c0_31 = arith.constant 0 : index
    %27 = vector.load %arg14[%c0_29, %c0_30, %c0_31] : memref<4x128x128xf32, #tpu.memory_space<vmem>>, vector<1x128x128xf32>
    %28 = vector.shape_cast %27 : vector<1x128x128xf32> to vector<128x128xf32>
    %cst_32 = arith.constant dense<0.000000e+00> : vector<48x128xf32>
    %29 = tpu.matmul %11, %28, %cst_32 {dimension_numbers = #tpu.dot_dimension_numbers<[1], [0], [0], [1], [0, 0, 1, 1], [], []>} : vector<48x128xf32>, vector<128x128xf32>, vector<48x128xf32> -> vector<48x128xf32>
    %c0_33 = arith.constant 0 : index
    %c0_34 = arith.constant 0 : index
    %c0_35 = arith.constant 0 : index
    %30 = vector.load %arg15[%c0_33, %c0_34, %c0_35] : memref<4x1x128xf32, #tpu.memory_space<vmem>>, vector<1x1x128xf32>
    %31 = vector.shape_cast %30 : vector<1x1x128xf32> to vector<1x128xf32>
    %32 = vector.broadcast %31 : vector<1x128xf32> to vector<48x128xf32>
    %33 = arith.addf %29, %32 : vector<48x128xf32>
    %34 = arith.truncf %25 : vector<24x256xf32> to vector<24x256xbf16>
    %cst_36 = arith.constant dense<0.000000e+00> : vector<48x256xf32>
    %35 = tpu.matmul %12, %34, %cst_36 {dimension_numbers = #tpu.dot_dimension_numbers<[1], [0], [0], [1], [0, 0, 1, 1], [], []>} : vector<48x24xbf16>, vector<24x256xbf16>, vector<48x256xf32> -> vector<48x256xf32>
    %36 = arith.truncf %26 : vector<24x128xf32> to vector<24x128xbf16>
    %cst_37 = arith.constant dense<0.000000e+00> : vector<48x128xf32>
    %37 = tpu.matmul %13, %36, %cst_37 {dimension_numbers = #tpu.dot_dimension_numbers<[1], [0], [0], [1], [0, 0, 1, 1], [], []>} : vector<48x24xbf16>, vector<24x128xbf16>, vector<48x128xf32> -> vector<48x128xf32>
    %38 = vector.extract_strided_slice %35 {offsets = [0, 128], sizes = [48, 128], strides = [1, 1]} : vector<48x256xf32> to vector<48x128xf32>
    %39 = arith.addf %33, %38 : vector<48x128xf32>
    %40 = arith.addf %39, %37 : vector<48x128xf32>
    %41 = arith.negf %40 : vector<48x128xf32>
    %42 = math.exp %41 : vector<48x128xf32>
    %cst_38 = arith.constant 1.000000e+00 : f32
    %43 = vector.broadcast %cst_38 : f32 to vector<48x128xf32>
    %44 = arith.addf %43, %42 : vector<48x128xf32>
    %45 = arith.divf %43, %44 : vector<48x128xf32>
    %46 = vector.extract_strided_slice %35 {offsets = [0, 0], sizes = [48, 128], strides = [1, 1]} : vector<48x256xf32> to vector<48x128xf32>
    %47 = arith.mulf %45, %46 : vector<48x128xf32>
    %48 = tpu.concatenate %47, %45 in 1 : vector<48x128xf32>, vector<48x128xf32> -> vector<48x256xf32>
    %49 = arith.truncf %48 : vector<48x256xf32> to vector<48x256xbf16>
    %cst_39 = arith.constant dense<0.000000e+00> : vector<24x256xf32>
    %50 = tpu.matmul %14, %49, %cst_39 {dimension_numbers = #tpu.dot_dimension_numbers<[1], [0], [0], [1], [0, 0, 1, 1], [], []>} : vector<24x48xbf16>, vector<48x256xbf16>, vector<24x256xf32> -> vector<24x256xf32>
    %51 = vector.extract_strided_slice %50 {offsets = [0, 0], sizes = [24, 128], strides = [1, 1]} : vector<24x256xf32> to vector<24x128xf32>
    %52 = vector.extract_strided_slice %50 {offsets = [0, 128], sizes = [24, 128], strides = [1, 1]} : vector<24x256xf32> to vector<24x128xf32>
    %cst_40 = arith.constant 9.99999997E-7 : f32
    %53 = vector.broadcast %cst_40 : f32 to vector<24x128xf32>
    %54 = arith.addf %52, %53 : vector<24x128xf32>
    %55 = tpu.reciprocal %54 {approx = true} : vector<24x128xf32> -> vector<24x128xf32>
    %56 = arith.mulf %51, %55 : vector<24x128xf32>
    %57 = arith.addf %24, %56 : vector<24x128xf32>
    %58 = vector.broadcast %15 : vector<24x1xf32> to vector<24x128xf32>
    %59 = arith.mulf %57, %58 : vector<24x128xf32>
    %60 = vector.broadcast %16 : vector<48x1xf32> to vector<48x128xf32>
    %61 = arith.mulf %40, %60 : vector<48x128xf32>
    %c0_41 = arith.constant 0 : index
    %c0_42 = arith.constant 0 : index
    %c0_43 = arith.constant 0 : index
    %62 = vector.load %arg16[%c0_41, %c0_42, %c0_43] : memref<4x2x128xf32, #tpu.memory_space<vmem>>, vector<1x2x128xf32>
    %63 = vector.shape_cast %62 : vector<1x2x128xf32> to vector<2x128xf32>
    %c0_44 = arith.constant 0 : index
    %c0_45 = arith.constant 0 : index
    %c0_46 = arith.constant 0 : index
    %64 = vector.load %arg17[%c0_44, %c0_45, %c0_46] : memref<4x2x128xf32, #tpu.memory_space<vmem>>, vector<1x2x128xf32>
    %65 = vector.shape_cast %64 : vector<1x2x128xf32> to vector<2x128xf32>
    %66 = vector.extract_strided_slice %63 {offsets = [0, 0], sizes = [1, 128], strides = [1, 1]} : vector<2x128xf32> to vector<1x128xf32>
    %67 = vector.broadcast %66 : vector<1x128xf32> to vector<24x128xf32>
    %68 = arith.mulf %59, %67 : vector<24x128xf32>
    %69 = vector.extract_strided_slice %63 {offsets = [1, 0], sizes = [1, 128], strides = [1, 1]} : vector<2x128xf32> to vector<1x128xf32>
    %70 = vector.broadcast %69 : vector<1x128xf32> to vector<24x128xf32>
    %71 = arith.addf %68, %70 : vector<24x128xf32>
    %72 = vector.extract_strided_slice %65 {offsets = [0, 0], sizes = [1, 128], strides = [1, 1]} : vector<2x128xf32> to vector<1x128xf32>
    %73 = vector.broadcast %72 : vector<1x128xf32> to vector<48x128xf32>
    %74 = arith.mulf %61, %73 : vector<48x128xf32>
    %75 = vector.extract_strided_slice %65 {offsets = [1, 0], sizes = [1, 128], strides = [1, 1]} : vector<2x128xf32> to vector<1x128xf32>
    %76 = vector.broadcast %75 : vector<1x128xf32> to vector<48x128xf32>
    %77 = arith.addf %74, %76 : vector<48x128xf32>
    %cst_47 = arith.constant 0.000000e+00 : f32
    %78 = vector.broadcast %cst_47 : f32 to vector<24x128xf32>
    %79 = arith.maximumf %71, %78 : vector<24x128xf32>
    %80 = arith.addf %5, %79 : vector<24x128xf32>
    %cst_48 = arith.constant 0.000000e+00 : f32
    %81 = vector.broadcast %cst_48 : f32 to vector<48x128xf32>
    %82 = arith.maximumf %77, %81 : vector<48x128xf32>
    %83 = arith.addf %11, %82 : vector<48x128xf32>
    %c1 = arith.constant 1 : index
    %c0_49 = arith.constant 0 : index
    %c0_50 = arith.constant 0 : index
    %84 = vector.load %arg12[%c1, %c0_49, %c0_50] : memref<4x128x512xf32, #tpu.memory_space<vmem>>, vector<1x128x512xf32>
    %85 = vector.shape_cast %84 : vector<1x128x512xf32> to vector<128x512xf32>
    %cst_51 = arith.constant dense<0.000000e+00> : vector<24x512xf32>
    %86 = tpu.matmul %80, %85, %cst_51 {dimension_numbers = #tpu.dot_dimension_numbers<[1], [0], [0], [1], [0, 0, 1, 1], [], []>} : vector<24x128xf32>, vector<128x512xf32>, vector<24x512xf32> -> vector<24x512xf32>
    %c1_52 = arith.constant 1 : index
    %c0_53 = arith.constant 0 : index
    %c0_54 = arith.constant 0 : index
    %87 = vector.load %arg13[%c1_52, %c0_53, %c0_54] : memref<4x1x512xf32, #tpu.memory_space<vmem>>, vector<1x1x512xf32>
    %88 = vector.shape_cast %87 : vector<1x1x512xf32> to vector<1x512xf32>
    %89 = vector.broadcast %88 : vector<1x512xf32> to vector<24x512xf32>
    %90 = arith.addf %86, %89 : vector<24x512xf32>
    %91 = vector.extract_strided_slice %90 {offsets = [0, 0], sizes = [24, 128], strides = [1, 1]} : vector<24x512xf32> to vector<24x128xf32>
    %92 = vector.extract_strided_slice %90 {offsets = [0, 128], sizes = [24, 256], strides = [1, 1]} : vector<24x512xf32> to vector<24x256xf32>
    %93 = vector.extract_strided_slice %90 {offsets = [0, 384], sizes = [24, 128], strides = [1, 1]} : vector<24x512xf32> to vector<24x128xf32>
    %c1_55 = arith.constant 1 : index
    %c0_56 = arith.constant 0 : index
    %c0_57 = arith.constant 0 : index
    %94 = vector.load %arg14[%c1_55, %c0_56, %c0_57] : memref<4x128x128xf32, #tpu.memory_space<vmem>>, vector<1x128x128xf32>
    %95 = vector.shape_cast %94 : vector<1x128x128xf32> to vector<128x128xf32>
    %cst_58 = arith.constant dense<0.000000e+00> : vector<48x128xf32>
    %96 = tpu.matmul %83, %95, %cst_58 {dimension_numbers = #tpu.dot_dimension_numbers<[1], [0], [0], [1], [0, 0, 1, 1], [], []>} : vector<48x128xf32>, vector<128x128xf32>, vector<48x128xf32> -> vector<48x128xf32>
    %c1_59 = arith.constant 1 : index
    %c0_60 = arith.constant 0 : index
    %c0_61 = arith.constant 0 : index
    %97 = vector.load %arg15[%c1_59, %c0_60, %c0_61] : memref<4x1x128xf32, #tpu.memory_space<vmem>>, vector<1x1x128xf32>
    %98 = vector.shape_cast %97 : vector<1x1x128xf32> to vector<1x128xf32>
    %99 = vector.broadcast %98 : vector<1x128xf32> to vector<48x128xf32>
    %100 = arith.addf %96, %99 : vector<48x128xf32>
    %101 = arith.truncf %92 : vector<24x256xf32> to vector<24x256xbf16>
    %cst_62 = arith.constant dense<0.000000e+00> : vector<48x256xf32>
    %102 = tpu.matmul %12, %101, %cst_62 {dimension_numbers = #tpu.dot_dimension_numbers<[1], [0], [0], [1], [0, 0, 1, 1], [], []>} : vector<48x24xbf16>, vector<24x256xbf16>, vector<48x256xf32> -> vector<48x256xf32>
    %103 = arith.truncf %93 : vector<24x128xf32> to vector<24x128xbf16>
    %cst_63 = arith.constant dense<0.000000e+00> : vector<48x128xf32>
    %104 = tpu.matmul %13, %103, %cst_63 {dimension_numbers = #tpu.dot_dimension_numbers<[1], [0], [0], [1], [0, 0, 1, 1], [], []>} : vector<48x24xbf16>, vector<24x128xbf16>, vector<48x128xf32> -> vector<48x128xf32>
    %105 = vector.extract_strided_slice %102 {offsets = [0, 128], sizes = [48, 128], strides = [1, 1]} : vector<48x256xf32> to vector<48x128xf32>
    %106 = arith.addf %100, %105 : vector<48x128xf32>
    %107 = arith.addf %106, %104 : vector<48x128xf32>
    %108 = arith.negf %107 : vector<48x128xf32>
    %109 = math.exp %108 : vector<48x128xf32>
    %cst_64 = arith.constant 1.000000e+00 : f32
    %110 = vector.broadcast %cst_64 : f32 to vector<48x128xf32>
    %111 = arith.addf %110, %109 : vector<48x128xf32>
    %112 = arith.divf %110, %111 : vector<48x128xf32>
    %113 = vector.extract_strided_slice %102 {offsets = [0, 0], sizes = [48, 128], strides = [1, 1]} : vector<48x256xf32> to vector<48x128xf32>
    %114 = arith.mulf %112, %113 : vector<48x128xf32>
    %115 = tpu.concatenate %114, %112 in 1 : vector<48x128xf32>, vector<48x128xf32> -> vector<48x256xf32>
    %116 = arith.truncf %115 : vector<48x256xf32> to vector<48x256xbf16>
    %cst_65 = arith.constant dense<0.000000e+00> : vector<24x256xf32>
    %117 = tpu.matmul %14, %116, %cst_65 {dimension_numbers = #tpu.dot_dimension_numbers<[1], [0], [0], [1], [0, 0, 1, 1], [], []>} : vector<24x48xbf16>, vector<48x256xbf16>, vector<24x256xf32> -> vector<24x256xf32>
    %118 = vector.extract_strided_slice %117 {offsets = [0, 0], sizes = [24, 128], strides = [1, 1]} : vector<24x256xf32> to vector<24x128xf32>
    %119 = vector.extract_strided_slice %117 {offsets = [0, 128], sizes = [24, 128], strides = [1, 1]} : vector<24x256xf32> to vector<24x128xf32>
    %cst_66 = arith.constant 9.99999997E-7 : f32
    %120 = vector.broadcast %cst_66 : f32 to vector<24x128xf32>
    %121 = arith.addf %119, %120 : vector<24x128xf32>
    %122 = tpu.reciprocal %121 {approx = true} : vector<24x128xf32> -> vector<24x128xf32>
    %123 = arith.mulf %118, %122 : vector<24x128xf32>
    %124 = arith.addf %91, %123 : vector<24x128xf32>
    %125 = vector.broadcast %15 : vector<24x1xf32> to vector<24x128xf32>
    %126 = arith.mulf %124, %125 : vector<24x128xf32>
    %127 = vector.broadcast %16 : vector<48x1xf32> to vector<48x128xf32>
    %128 = arith.mulf %107, %127 : vector<48x128xf32>
    %c1_67 = arith.constant 1 : index
    %c0_68 = arith.constant 0 : index
    %c0_69 = arith.constant 0 : index
    %129 = vector.load %arg16[%c1_67, %c0_68, %c0_69] : memref<4x2x128xf32, #tpu.memory_space<vmem>>, vector<1x2x128xf32>
    %130 = vector.shape_cast %129 : vector<1x2x128xf32> to vector<2x128xf32>
    %c1_70 = arith.constant 1 : index
    %c0_71 = arith.constant 0 : index
    %c0_72 = arith.constant 0 : index
    %131 = vector.load %arg17[%c1_70, %c0_71, %c0_72] : memref<4x2x128xf32, #tpu.memory_space<vmem>>, vector<1x2x128xf32>
    %132 = vector.shape_cast %131 : vector<1x2x128xf32> to vector<2x128xf32>
    %133 = vector.extract_strided_slice %130 {offsets = [0, 0], sizes = [1, 128], strides = [1, 1]} : vector<2x128xf32> to vector<1x128xf32>
    %134 = vector.broadcast %133 : vector<1x128xf32> to vector<24x128xf32>
    %135 = arith.mulf %126, %134 : vector<24x128xf32>
    %136 = vector.extract_strided_slice %130 {offsets = [1, 0], sizes = [1, 128], strides = [1, 1]} : vector<2x128xf32> to vector<1x128xf32>
    %137 = vector.broadcast %136 : vector<1x128xf32> to vector<24x128xf32>
    %138 = arith.addf %135, %137 : vector<24x128xf32>
    %139 = vector.extract_strided_slice %132 {offsets = [0, 0], sizes = [1, 128], strides = [1, 1]} : vector<2x128xf32> to vector<1x128xf32>
    %140 = vector.broadcast %139 : vector<1x128xf32> to vector<48x128xf32>
    %141 = arith.mulf %128, %140 : vector<48x128xf32>
    %142 = vector.extract_strided_slice %132 {offsets = [1, 0], sizes = [1, 128], strides = [1, 1]} : vector<2x128xf32> to vector<1x128xf32>
    %143 = vector.broadcast %142 : vector<1x128xf32> to vector<48x128xf32>
    %144 = arith.addf %141, %143 : vector<48x128xf32>
    %cst_73 = arith.constant 0.000000e+00 : f32
    %145 = vector.broadcast %cst_73 : f32 to vector<24x128xf32>
    %146 = arith.maximumf %138, %145 : vector<24x128xf32>
    %147 = arith.addf %80, %146 : vector<24x128xf32>
    %cst_74 = arith.constant 0.000000e+00 : f32
    %148 = vector.broadcast %cst_74 : f32 to vector<48x128xf32>
    %149 = arith.maximumf %144, %148 : vector<48x128xf32>
    %150 = arith.addf %83, %149 : vector<48x128xf32>
    %c2 = arith.constant 2 : index
    %c0_75 = arith.constant 0 : index
    %c0_76 = arith.constant 0 : index
    %151 = vector.load %arg12[%c2, %c0_75, %c0_76] : memref<4x128x512xf32, #tpu.memory_space<vmem>>, vector<1x128x512xf32>
    %152 = vector.shape_cast %151 : vector<1x128x512xf32> to vector<128x512xf32>
    %cst_77 = arith.constant dense<0.000000e+00> : vector<24x512xf32>
    %153 = tpu.matmul %147, %152, %cst_77 {dimension_numbers = #tpu.dot_dimension_numbers<[1], [0], [0], [1], [0, 0, 1, 1], [], []>} : vector<24x128xf32>, vector<128x512xf32>, vector<24x512xf32> -> vector<24x512xf32>
    %c2_78 = arith.constant 2 : index
    %c0_79 = arith.constant 0 : index
    %c0_80 = arith.constant 0 : index
    %154 = vector.load %arg13[%c2_78, %c0_79, %c0_80] : memref<4x1x512xf32, #tpu.memory_space<vmem>>, vector<1x1x512xf32>
    %155 = vector.shape_cast %154 : vector<1x1x512xf32> to vector<1x512xf32>
    %156 = vector.broadcast %155 : vector<1x512xf32> to vector<24x512xf32>
    %157 = arith.addf %153, %156 : vector<24x512xf32>
    %158 = vector.extract_strided_slice %157 {offsets = [0, 0], sizes = [24, 128], strides = [1, 1]} : vector<24x512xf32> to vector<24x128xf32>
    %159 = vector.extract_strided_slice %157 {offsets = [0, 128], sizes = [24, 256], strides = [1, 1]} : vector<24x512xf32> to vector<24x256xf32>
    %160 = vector.extract_strided_slice %157 {offsets = [0, 384], sizes = [24, 128], strides = [1, 1]} : vector<24x512xf32> to vector<24x128xf32>
    %c2_81 = arith.constant 2 : index
    %c0_82 = arith.constant 0 : index
    %c0_83 = arith.constant 0 : index
    %161 = vector.load %arg14[%c2_81, %c0_82, %c0_83] : memref<4x128x128xf32, #tpu.memory_space<vmem>>, vector<1x128x128xf32>
    %162 = vector.shape_cast %161 : vector<1x128x128xf32> to vector<128x128xf32>
    %cst_84 = arith.constant dense<0.000000e+00> : vector<48x128xf32>
    %163 = tpu.matmul %150, %162, %cst_84 {dimension_numbers = #tpu.dot_dimension_numbers<[1], [0], [0], [1], [0, 0, 1, 1], [], []>} : vector<48x128xf32>, vector<128x128xf32>, vector<48x128xf32> -> vector<48x128xf32>
    %c2_85 = arith.constant 2 : index
    %c0_86 = arith.constant 0 : index
    %c0_87 = arith.constant 0 : index
    %164 = vector.load %arg15[%c2_85, %c0_86, %c0_87] : memref<4x1x128xf32, #tpu.memory_space<vmem>>, vector<1x1x128xf32>
    %165 = vector.shape_cast %164 : vector<1x1x128xf32> to vector<1x128xf32>
    %166 = vector.broadcast %165 : vector<1x128xf32> to vector<48x128xf32>
    %167 = arith.addf %163, %166 : vector<48x128xf32>
    %168 = arith.truncf %159 : vector<24x256xf32> to vector<24x256xbf16>
    %cst_88 = arith.constant dense<0.000000e+00> : vector<48x256xf32>
    %169 = tpu.matmul %12, %168, %cst_88 {dimension_numbers = #tpu.dot_dimension_numbers<[1], [0], [0], [1], [0, 0, 1, 1], [], []>} : vector<48x24xbf16>, vector<24x256xbf16>, vector<48x256xf32> -> vector<48x256xf32>
    %170 = arith.truncf %160 : vector<24x128xf32> to vector<24x128xbf16>
    %cst_89 = arith.constant dense<0.000000e+00> : vector<48x128xf32>
    %171 = tpu.matmul %13, %170, %cst_89 {dimension_numbers = #tpu.dot_dimension_numbers<[1], [0], [0], [1], [0, 0, 1, 1], [], []>} : vector<48x24xbf16>, vector<24x128xbf16>, vector<48x128xf32> -> vector<48x128xf32>
    %172 = vector.extract_strided_slice %169 {offsets = [0, 128], sizes = [48, 128], strides = [1, 1]} : vector<48x256xf32> to vector<48x128xf32>
    %173 = arith.addf %167, %172 : vector<48x128xf32>
    %174 = arith.addf %173, %171 : vector<48x128xf32>
    %175 = arith.negf %174 : vector<48x128xf32>
    %176 = math.exp %175 : vector<48x128xf32>
    %cst_90 = arith.constant 1.000000e+00 : f32
    %177 = vector.broadcast %cst_90 : f32 to vector<48x128xf32>
    %178 = arith.addf %177, %176 : vector<48x128xf32>
    %179 = arith.divf %177, %178 : vector<48x128xf32>
    %180 = vector.extract_strided_slice %169 {offsets = [0, 0], sizes = [48, 128], strides = [1, 1]} : vector<48x256xf32> to vector<48x128xf32>
    %181 = arith.mulf %179, %180 : vector<48x128xf32>
    %182 = tpu.concatenate %181, %179 in 1 : vector<48x128xf32>, vector<48x128xf32> -> vector<48x256xf32>
    %183 = arith.truncf %182 : vector<48x256xf32> to vector<48x256xbf16>
    %cst_91 = arith.constant dense<0.000000e+00> : vector<24x256xf32>
    %184 = tpu.matmul %14, %183, %cst_91 {dimension_numbers = #tpu.dot_dimension_numbers<[1], [0], [0], [1], [0, 0, 1, 1], [], []>} : vector<24x48xbf16>, vector<48x256xbf16>, vector<24x256xf32> -> vector<24x256xf32>
    %185 = vector.extract_strided_slice %184 {offsets = [0, 0], sizes = [24, 128], strides = [1, 1]} : vector<24x256xf32> to vector<24x128xf32>
    %186 = vector.extract_strided_slice %184 {offsets = [0, 128], sizes = [24, 128], strides = [1, 1]} : vector<24x256xf32> to vector<24x128xf32>
    %cst_92 = arith.constant 9.99999997E-7 : f32
    %187 = vector.broadcast %cst_92 : f32 to vector<24x128xf32>
    %188 = arith.addf %186, %187 : vector<24x128xf32>
    %189 = tpu.reciprocal %188 {approx = true} : vector<24x128xf32> -> vector<24x128xf32>
    %190 = arith.mulf %185, %189 : vector<24x128xf32>
    %191 = arith.addf %158, %190 : vector<24x128xf32>
    %192 = vector.broadcast %15 : vector<24x1xf32> to vector<24x128xf32>
    %193 = arith.mulf %191, %192 : vector<24x128xf32>
    %194 = vector.broadcast %16 : vector<48x1xf32> to vector<48x128xf32>
    %195 = arith.mulf %174, %194 : vector<48x128xf32>
    %c2_93 = arith.constant 2 : index
    %c0_94 = arith.constant 0 : index
    %c0_95 = arith.constant 0 : index
    %196 = vector.load %arg16[%c2_93, %c0_94, %c0_95] : memref<4x2x128xf32, #tpu.memory_space<vmem>>, vector<1x2x128xf32>
    %197 = vector.shape_cast %196 : vector<1x2x128xf32> to vector<2x128xf32>
    %c2_96 = arith.constant 2 : index
    %c0_97 = arith.constant 0 : index
    %c0_98 = arith.constant 0 : index
    %198 = vector.load %arg17[%c2_96, %c0_97, %c0_98] : memref<4x2x128xf32, #tpu.memory_space<vmem>>, vector<1x2x128xf32>
    %199 = vector.shape_cast %198 : vector<1x2x128xf32> to vector<2x128xf32>
    %200 = vector.extract_strided_slice %197 {offsets = [0, 0], sizes = [1, 128], strides = [1, 1]} : vector<2x128xf32> to vector<1x128xf32>
    %201 = vector.broadcast %200 : vector<1x128xf32> to vector<24x128xf32>
    %202 = arith.mulf %193, %201 : vector<24x128xf32>
    %203 = vector.extract_strided_slice %197 {offsets = [1, 0], sizes = [1, 128], strides = [1, 1]} : vector<2x128xf32> to vector<1x128xf32>
    %204 = vector.broadcast %203 : vector<1x128xf32> to vector<24x128xf32>
    %205 = arith.addf %202, %204 : vector<24x128xf32>
    %206 = vector.extract_strided_slice %199 {offsets = [0, 0], sizes = [1, 128], strides = [1, 1]} : vector<2x128xf32> to vector<1x128xf32>
    %207 = vector.broadcast %206 : vector<1x128xf32> to vector<48x128xf32>
    %208 = arith.mulf %195, %207 : vector<48x128xf32>
    %209 = vector.extract_strided_slice %199 {offsets = [1, 0], sizes = [1, 128], strides = [1, 1]} : vector<2x128xf32> to vector<1x128xf32>
    %210 = vector.broadcast %209 : vector<1x128xf32> to vector<48x128xf32>
    %211 = arith.addf %208, %210 : vector<48x128xf32>
    %cst_99 = arith.constant 0.000000e+00 : f32
    %212 = vector.broadcast %cst_99 : f32 to vector<24x128xf32>
    %213 = arith.maximumf %205, %212 : vector<24x128xf32>
    %214 = arith.addf %147, %213 : vector<24x128xf32>
    %cst_100 = arith.constant 0.000000e+00 : f32
    %215 = vector.broadcast %cst_100 : f32 to vector<48x128xf32>
    %216 = arith.maximumf %211, %215 : vector<48x128xf32>
    %217 = arith.addf %150, %216 : vector<48x128xf32>
    %c3 = arith.constant 3 : index
    %c0_101 = arith.constant 0 : index
    %c0_102 = arith.constant 0 : index
    %218 = vector.load %arg12[%c3, %c0_101, %c0_102] : memref<4x128x512xf32, #tpu.memory_space<vmem>>, vector<1x128x512xf32>
    %219 = vector.shape_cast %218 : vector<1x128x512xf32> to vector<128x512xf32>
    %cst_103 = arith.constant dense<0.000000e+00> : vector<24x512xf32>
    %220 = tpu.matmul %214, %219, %cst_103 {dimension_numbers = #tpu.dot_dimension_numbers<[1], [0], [0], [1], [0, 0, 1, 1], [], []>} : vector<24x128xf32>, vector<128x512xf32>, vector<24x512xf32> -> vector<24x512xf32>
    %c3_104 = arith.constant 3 : index
    %c0_105 = arith.constant 0 : index
    %c0_106 = arith.constant 0 : index
    %221 = vector.load %arg13[%c3_104, %c0_105, %c0_106] : memref<4x1x512xf32, #tpu.memory_space<vmem>>, vector<1x1x512xf32>
    %222 = vector.shape_cast %221 : vector<1x1x512xf32> to vector<1x512xf32>
    %223 = vector.broadcast %222 : vector<1x512xf32> to vector<24x512xf32>
    %224 = arith.addf %220, %223 : vector<24x512xf32>
    %225 = vector.extract_strided_slice %224 {offsets = [0, 0], sizes = [24, 128], strides = [1, 1]} : vector<24x512xf32> to vector<24x128xf32>
    %226 = vector.extract_strided_slice %224 {offsets = [0, 128], sizes = [24, 256], strides = [1, 1]} : vector<24x512xf32> to vector<24x256xf32>
    %227 = vector.extract_strided_slice %224 {offsets = [0, 384], sizes = [24, 128], strides = [1, 1]} : vector<24x512xf32> to vector<24x128xf32>
    %c3_107 = arith.constant 3 : index
    %c0_108 = arith.constant 0 : index
    %c0_109 = arith.constant 0 : index
    %228 = vector.load %arg14[%c3_107, %c0_108, %c0_109] : memref<4x128x128xf32, #tpu.memory_space<vmem>>, vector<1x128x128xf32>
    %229 = vector.shape_cast %228 : vector<1x128x128xf32> to vector<128x128xf32>
    %cst_110 = arith.constant dense<0.000000e+00> : vector<48x128xf32>
    %230 = tpu.matmul %217, %229, %cst_110 {dimension_numbers = #tpu.dot_dimension_numbers<[1], [0], [0], [1], [0, 0, 1, 1], [], []>} : vector<48x128xf32>, vector<128x128xf32>, vector<48x128xf32> -> vector<48x128xf32>
    %c3_111 = arith.constant 3 : index
    %c0_112 = arith.constant 0 : index
    %c0_113 = arith.constant 0 : index
    %231 = vector.load %arg15[%c3_111, %c0_112, %c0_113] : memref<4x1x128xf32, #tpu.memory_space<vmem>>, vector<1x1x128xf32>
    %232 = vector.shape_cast %231 : vector<1x1x128xf32> to vector<1x128xf32>
    %233 = vector.broadcast %232 : vector<1x128xf32> to vector<48x128xf32>
    %234 = arith.addf %230, %233 : vector<48x128xf32>
    %235 = arith.truncf %226 : vector<24x256xf32> to vector<24x256xbf16>
    %cst_114 = arith.constant dense<0.000000e+00> : vector<48x256xf32>
    %236 = tpu.matmul %12, %235, %cst_114 {dimension_numbers = #tpu.dot_dimension_numbers<[1], [0], [0], [1], [0, 0, 1, 1], [], []>} : vector<48x24xbf16>, vector<24x256xbf16>, vector<48x256xf32> -> vector<48x256xf32>
    %237 = arith.truncf %227 : vector<24x128xf32> to vector<24x128xbf16>
    %cst_115 = arith.constant dense<0.000000e+00> : vector<48x128xf32>
    %238 = tpu.matmul %13, %237, %cst_115 {dimension_numbers = #tpu.dot_dimension_numbers<[1], [0], [0], [1], [0, 0, 1, 1], [], []>} : vector<48x24xbf16>, vector<24x128xbf16>, vector<48x128xf32> -> vector<48x128xf32>
    %239 = vector.extract_strided_slice %236 {offsets = [0, 128], sizes = [48, 128], strides = [1, 1]} : vector<48x256xf32> to vector<48x128xf32>
    %240 = arith.addf %234, %239 : vector<48x128xf32>
    %241 = arith.addf %240, %238 : vector<48x128xf32>
    %242 = arith.negf %241 : vector<48x128xf32>
    %243 = math.exp %242 : vector<48x128xf32>
    %cst_116 = arith.constant 1.000000e+00 : f32
    %244 = vector.broadcast %cst_116 : f32 to vector<48x128xf32>
    %245 = arith.addf %244, %243 : vector<48x128xf32>
    %246 = arith.divf %244, %245 : vector<48x128xf32>
    %247 = vector.extract_strided_slice %236 {offsets = [0, 0], sizes = [48, 128], strides = [1, 1]} : vector<48x256xf32> to vector<48x128xf32>
    %248 = arith.mulf %246, %247 : vector<48x128xf32>
    %249 = tpu.concatenate %248, %246 in 1 : vector<48x128xf32>, vector<48x128xf32> -> vector<48x256xf32>
    %250 = arith.truncf %249 : vector<48x256xf32> to vector<48x256xbf16>
    %cst_117 = arith.constant dense<0.000000e+00> : vector<24x256xf32>
    %251 = tpu.matmul %14, %250, %cst_117 {dimension_numbers = #tpu.dot_dimension_numbers<[1], [0], [0], [1], [0, 0, 1, 1], [], []>} : vector<24x48xbf16>, vector<48x256xbf16>, vector<24x256xf32> -> vector<24x256xf32>
    %252 = vector.extract_strided_slice %251 {offsets = [0, 0], sizes = [24, 128], strides = [1, 1]} : vector<24x256xf32> to vector<24x128xf32>
    %253 = vector.extract_strided_slice %251 {offsets = [0, 128], sizes = [24, 128], strides = [1, 1]} : vector<24x256xf32> to vector<24x128xf32>
    %cst_118 = arith.constant 9.99999997E-7 : f32
    %254 = vector.broadcast %cst_118 : f32 to vector<24x128xf32>
    %255 = arith.addf %253, %254 : vector<24x128xf32>
    %256 = tpu.reciprocal %255 {approx = true} : vector<24x128xf32> -> vector<24x128xf32>
    %257 = arith.mulf %252, %256 : vector<24x128xf32>
    %258 = arith.addf %225, %257 : vector<24x128xf32>
    %259 = vector.broadcast %15 : vector<24x1xf32> to vector<24x128xf32>
    %260 = arith.mulf %258, %259 : vector<24x128xf32>
    %c3_119 = arith.constant 3 : index
    %c0_120 = arith.constant 0 : index
    %c0_121 = arith.constant 0 : index
    %261 = vector.load %arg16[%c3_119, %c0_120, %c0_121] : memref<4x2x128xf32, #tpu.memory_space<vmem>>, vector<1x2x128xf32>
    %262 = vector.shape_cast %261 : vector<1x2x128xf32> to vector<2x128xf32>
    %263 = vector.extract_strided_slice %262 {offsets = [0, 0], sizes = [1, 128], strides = [1, 1]} : vector<2x128xf32> to vector<1x128xf32>
    %264 = vector.broadcast %263 : vector<1x128xf32> to vector<24x128xf32>
    %265 = arith.mulf %260, %264 : vector<24x128xf32>
    %266 = vector.extract_strided_slice %262 {offsets = [1, 0], sizes = [1, 128], strides = [1, 1]} : vector<2x128xf32> to vector<1x128xf32>
    %267 = vector.broadcast %266 : vector<1x128xf32> to vector<24x128xf32>
    %268 = arith.addf %265, %267 : vector<24x128xf32>
    %cst_122 = arith.constant 0.000000e+00 : f32
    %269 = vector.broadcast %cst_122 : f32 to vector<24x128xf32>
    %270 = arith.maximumf %268, %269 : vector<24x128xf32>
    %271 = arith.addf %214, %270 : vector<24x128xf32>
    %c0_123 = arith.constant 0 : index
    %c0_124 = arith.constant 0 : index
    %272 = vector.load %arg7[%c0_123, %c0_124] : memref<2x24xf32, #tpu.memory_space<vmem>>, vector<2x24xf32>
    %cst_125 = arith.constant dense<0.000000e+00> : vector<2x128xf32>
    %273 = tpu.matmul %272, %271, %cst_125 {dimension_numbers = #tpu.dot_dimension_numbers<[1], [0], [0], [1], [0, 0, 1, 1], [], []>} : vector<2x24xf32>, vector<24x128xf32>, vector<2x128xf32> -> vector<2x128xf32>
    %c0_126 = arith.constant 0 : index
    %c0_127 = arith.constant 0 : index
    %274 = vector.load %arg18[%c0_126, %c0_127] : memref<128x128xf32, #tpu.memory_space<vmem>>, vector<128x128xf32>
    %cst_128 = arith.constant dense<0.000000e+00> : vector<2x128xf32>
    %275 = tpu.matmul %273, %274, %cst_128 {dimension_numbers = #tpu.dot_dimension_numbers<[1], [0], [0], [1], [0, 0, 1, 1], [], []>} : vector<2x128xf32>, vector<128x128xf32>, vector<2x128xf32> -> vector<2x128xf32>
    %c0_129 = arith.constant 0 : index
    %c0_130 = arith.constant 0 : index
    %276 = vector.load %arg19[%c0_129, %c0_130] : memref<1x128xf32, #tpu.memory_space<vmem>>, vector<1x128xf32>
    %277 = vector.broadcast %276 : vector<1x128xf32> to vector<2x128xf32>
    %278 = arith.addf %275, %277 : vector<2x128xf32>
    %cst_131 = arith.constant 0.000000e+00 : f32
    %279 = vector.broadcast %cst_131 : f32 to vector<2x128xf32>
    %280 = arith.maximumf %278, %279 : vector<2x128xf32>
    %c0_132 = arith.constant 0 : index
    %c0_133 = arith.constant 0 : index
    %281 = vector.load %arg20[%c0_132, %c0_133] : memref<128x128xf32, #tpu.memory_space<vmem>>, vector<128x128xf32>
    %cst_134 = arith.constant dense<0.000000e+00> : vector<2x128xf32>
    %282 = tpu.matmul %280, %281, %cst_134 {dimension_numbers = #tpu.dot_dimension_numbers<[1], [0], [0], [1], [0, 0, 1, 1], [], []>} : vector<2x128xf32>, vector<128x128xf32>, vector<2x128xf32> -> vector<2x128xf32>
    %c0_135 = arith.constant 0 : index
    %c0_136 = arith.constant 0 : index
    %283 = vector.load %arg21[%c0_135, %c0_136] : memref<1x128xf32, #tpu.memory_space<vmem>>, vector<1x128xf32>
    %284 = vector.broadcast %283 : vector<1x128xf32> to vector<2x128xf32>
    %285 = arith.addf %282, %284 : vector<2x128xf32>
    %cst_137 = arith.constant 0.000000e+00 : f32
    %286 = vector.broadcast %cst_137 : f32 to vector<2x128xf32>
    %287 = arith.maximumf %285, %286 : vector<2x128xf32>
    %c0_138 = arith.constant 0 : index
    %c0_139 = arith.constant 0 : index
    %288 = vector.load %arg22[%c0_138, %c0_139] : memref<128x128xf32, #tpu.memory_space<vmem>>, vector<128x128xf32>
    %cst_140 = arith.constant dense<0.000000e+00> : vector<2x128xf32>
    %289 = tpu.matmul %287, %288, %cst_140 {dimension_numbers = #tpu.dot_dimension_numbers<[1], [0], [0], [1], [0, 0, 1, 1], [], []>} : vector<2x128xf32>, vector<128x128xf32>, vector<2x128xf32> -> vector<2x128xf32>
    %c0_141 = arith.constant 0 : index
    %c0_142 = arith.constant 0 : index
    %290 = vector.load %arg23[%c0_141, %c0_142] : memref<1x128xf32, #tpu.memory_space<vmem>>, vector<1x128xf32>
    %291 = vector.broadcast %290 : vector<1x128xf32> to vector<2x128xf32>
    %292 = arith.addf %289, %291 : vector<2x128xf32>
    %c0_143 = arith.constant 0 : index
    %c0_144 = arith.constant 0 : index
    %293 = vector.load %arg24[%c0_143, %c0_144] : memref<2x128xf32, #tpu.memory_space<vmem>>, vector<2x128xf32>
    tpu.vector_store %arg24[%c0_143, %c0_144], %292 {strides = array<i32>} : memref<2x128xf32, #tpu.memory_space<vmem>>, vector<2x128xf32>,
    return
  }
}

</mosaic_0001>

<llo_original>
// kernel: tpu_custom_call.1
$region0: #{tpu_custom_call.1}
  #allocation0 [shape = 'u32[]', space=smem, size = 0x4, offset = 0x4, fixed_abs, tag = 'smem constant byte address 0x4 - core index']
  #allocation1 [shape = 'u32[144,128]{1,0:T(1,128)}', space=vmem, size = 0x12000, scoped, tag = 'internal scratch']
  %s0 = inlined_call_operand.vmem [shape: f32[24,256], index: 0, kind: input, shape index: {}]
  %s1 = inlined_call_operand.hbm [shape: f32[48,128], index: 1, kind: input, shape index: {}]
  %s2 = inlined_call_operand.vmem [shape: bf16[48,24], index: 2, kind: input, shape index: {}]
  %s3 = inlined_call_operand.vmem [shape: bf16[48,24], index: 3, kind: input, shape index: {}]
  %s4 = inlined_call_operand.hbm [shape: bf16[24,48], index: 4, kind: input, shape index: {}]
  %s5 = inlined_call_operand.vmem [shape: f32[24,1], index: 5, kind: input, shape index: {}]
  %s6 = inlined_call_operand.vmem [shape: f32[48,1], index: 6, kind: input, shape index: {}]
  %s7 = inlined_call_operand.vmem [shape: f32[2,24], index: 7, kind: input, shape index: {}]
  %s8 = inlined_call_operand.hbm [shape: f32[256,128], index: 8, kind: input, shape index: {}]
  %s9 = inlined_call_operand.hbm [shape: f32[1,128], index: 9, kind: input, shape index: {}]
  %s10 = inlined_call_operand.vmem [shape: f32[128,128], index: 10, kind: input, shape index: {}]
  %s11 = inlined_call_operand.hbm [shape: f32[1,128], index: 11, kind: input, shape index: {}]
  %s12 = inlined_call_operand.hbm [shape: f32[4,128,512], index: 12, kind: input, shape index: {}]
  %s13 = inlined_call_operand.vmem [shape: f32[4,1,512], index: 13, kind: input, shape index: {}]
  %s14 = inlined_call_operand.hbm [shape: f32[4,128,128], index: 14, kind: input, shape index: {}]
  %s15 = inlined_call_operand.hbm [shape: f32[4,1,128], index: 15, kind: input, shape index: {}]
  %s16 = inlined_call_operand.vmem [shape: f32[4,2,128], index: 16, kind: input, shape index: {}]
  %s17 = inlined_call_operand.vmem [shape: f32[4,2,128], index: 17, kind: input, shape index: {}]
  %s18 = inlined_call_operand.hbm [shape: f32[128,128], index: 18, kind: input, shape index: {}]
  %s19 = inlined_call_operand.vmem [shape: f32[1,128], index: 19, kind: input, shape index: {}]
  %s20 = inlined_call_operand.hbm [shape: f32[128,128], index: 20, kind: input, shape index: {}]
  %s21 = inlined_call_operand.vmem [shape: f32[1,128], index: 21, kind: input, shape index: {}]
  %s22 = inlined_call_operand.hbm [shape: f32[128,128], index: 22, kind: input, shape index: {}]
  %s23 = inlined_call_operand.vmem [shape: f32[1,128], index: 23, kind: input, shape index: {}]
  %s24 = inlined_call_operand.hbm [shape: f32[2,128], index: 24, kind: output, shape index: {}]
  %s25 = sld [smem:[#allocation0]]
  $region150: #{tpu_custom_call.1} parent=0
    _
  %s27 = ssub.s32 1, %s25
  %s28 = scalar_select 0, %s27, %s25
  $region1: #{tpu_custom_call.1} parent=0
    #allocation2 [shape = 'u8[24576]{0}', space=vmem, size = 0x6000, scoped, tag = 'input window, operand 1, single buffered']
    #allocation3 [shape = 's32[1]{0}', space=sflag, size = 0x4, scoped, tag = 'scoped memory for tpu_custom_call.1']
    #allocation4 [shape = 's32[1]{0}', space=sflag, size = 0x4, scoped, tag = 'scoped memory for tpu_custom_call.1']
    #allocation5 [shape = 'u8[6144]{0}', space=vmem, size = 0x1800, scoped, tag = 'input window, operand 4, single buffered']
    #allocation6 [shape = 's32[1]{0}', space=sflag, size = 0x4, scoped, tag = 'scoped memory for tpu_custom_call.1']
    #allocation7 [shape = 'u8[131072]{0}', space=vmem, size = 0x20000, scoped, tag = 'input window, operand 8, single buffered']
    #allocation8 [shape = 'u8[512]{0}', space=vmem, size = 0x400, scoped, tag = 'input window, operand 9, single buffered']
    #allocation9 [shape = 's32[1]{0}', space=sflag, size = 0x4, scoped, tag = 'scoped memory for tpu_custom_call.1']
    #allocation10 [shape = 'u8[512]{0}', space=vmem, size = 0x400, scoped, tag = 'input window, operand 11, single buffered']
    #allocation11 [shape = 'u8[1048576]{0}', space=vmem, size = 0x100000, scoped, tag = 'input window, operand 12, single buffered']
    #allocation12 [shape = 's32[1]{0}', space=sflag, size = 0x4, scoped, tag = 'scoped memory for tpu_custom_call.1']
    #allocation13 [shape = 'u8[262144]{0}', space=vmem, size = 0x40000, scoped, tag = 'input window, operand 14, single buffered']
    #allocation14 [shape = 'u8[2048]{0}', space=vmem, size = 0x800, scoped, tag = 'input window, operand 15, single buffered']
    #allocation15 [shape = 's32[1]{0}', space=sflag, size = 0x4, scoped, tag = 'scoped memory for tpu_custom_call.1']
    #allocation16 [shape = 'u8[65536]{0}', space=vmem, size = 0x10000, scoped, tag = 'input window, operand 18, single buffered']
    #allocation17 [shape = 'u8[65536]{0}', space=vmem, size = 0x10000, scoped, tag = 'input window, operand 20, single buffered']
    #allocation18 [shape = 's32[1]{0}', space=sflag, size = 0x4, scoped, tag = 'scoped memory for tpu_custom_call.1']
    #allocation19 [shape = 'u8[65536]{0}', space=vmem, size = 0x10000, scoped, tag = 'input window, operand 22, single buffered']
    #allocation20 [shape = 'u8[1024]{0}', space=vmem, size = 0x400, scoped, tag = 'output window, operand 0, single buffered']
    %29 = vsyncpa [#allocation3], 0
    %30 = vsyncpa [#allocation6], 0
    %31 = vsyncpa [#allocation9], 0
    %32 = vsyncpa [#allocation12], 0
    %33 = vsyncpa [#allocation15], 0
    %34 = vsyncpa [#allocation18], 0
    %35 = vsyncpa [#allocation4], 0
    // Predicated region
    $region2: #{tpu_custom_call.1} parent=1 // pred_check
      _
    $region3: #{tpu_custom_call.1} parent=1 // pred_check_branch
      %37 = sbr.rel (0) target = $region5
    $region4: #{tpu_custom_call.1} parent=1 // pred_region
      _
    $region5: #{tpu_custom_call.1} parent=1 // pred_fallthru
      _
    // Predicated region
    $region6: #{tpu_custom_call.1} parent=1 // pred_check
      _
    $region7: #{tpu_custom_call.1} parent=1 // pred_check_branch
      %39 = sbr.rel (0) target = $region9
    $region8: #{tpu_custom_call.1} parent=1 // pred_region
      %s41 = ssub.s32 768, 768
      %42 = vsyncadd [#allocation3], %s41
      %s43 = sshll.u32 [#allocation2], 4
      %s44 = int_to_ptr.vmem [resolvable:$true] %s43
      %49 = dma.hbm_to_vmem [thread:$0]  %s1, 768, %s44, [#allocation3], 128, 128, 8
    $region9: #{tpu_custom_call.1} parent=1 // pred_fallthru
      _
    // Predicated region
    $region10: #{tpu_custom_call.1} parent=1 // pred_check
      _
    $region11: #{tpu_custom_call.1} parent=1 // pred_check_branch
      %51 = sbr.rel (0) target = $region13
    $region12: #{tpu_custom_call.1} parent=1 // pred_region
      _
    $region13: #{tpu_custom_call.1} parent=1 // pred_fallthru
      _
    // Predicated region
    $region14: #{tpu_custom_call.1} parent=1 // pred_check
      _
    $region15: #{tpu_custom_call.1} parent=1 // pred_check_branch
      %53 = sbr.rel (0) target = $region17
    $region16: #{tpu_custom_call.1} parent=1 // pred_region
      _
    $region17: #{tpu_custom_call.1} parent=1 // pred_fallthru
      _
    // Predicated region
    $region18: #{tpu_custom_call.1} parent=1 // pred_check
      _
    $region19: #{tpu_custom_call.1} parent=1 // pred_check_branch
      %55 = sbr.rel (0) target = $region21
    $region20: #{tpu_custom_call.1} parent=1 // pred_region
      %s57 = ssub.s32 192, 192
      %58 = vsyncadd [#allocation6], %s57
      %s59 = sshll.u32 [#allocation5], 4
      %s60 = int_to_ptr.vmem [resolvable:$true] %s59
      %65 = dma.hbm_to_vmem [thread:$0]  %s4, 192, %s60, [#allocation6], 64, 64, 4
    $region21: #{tpu_custom_call.1} parent=1 // pred_fallthru
      _
    // Predicated region
    $region22: #{tpu_custom_call.1} parent=1 // pred_check
      _
    $region23: #{tpu_custom_call.1} parent=1 // pred_check_branch
      %67 = sbr.rel (0) target = $region25
    $region24: #{tpu_custom_call.1} parent=1 // pred_region
      _
    $region25: #{tpu_custom_call.1} parent=1 // pred_fallthru
      _
    // Predicated region
    $region26: #{tpu_custom_call.1} parent=1 // pred_check
      _
    $region27: #{tpu_custom_call.1} parent=1 // pred_check_branch
      %69 = sbr.rel (0) target = $region29
    $region28: #{tpu_custom_call.1} parent=1 // pred_region
      _
    $region29: #{tpu_custom_call.1} parent=1 // pred_fallthru
      _
    // Predicated region
    $region30: #{tpu_custom_call.1} parent=1 // pred_check
      _
    $region31: #{tpu_custom_call.1} parent=1 // pred_check_branch
      %71 = sbr.rel (0) target = $region33
    $region32: #{tpu_custom_call.1} parent=1 // pred_region
      _
    $region33: #{tpu_custom_call.1} parent=1 // pred_fallthru
      _
    // Predicated region
    $region34: #{tpu_custom_call.1} parent=1 // pred_check
      _
    $region35: #{tpu_custom_call.1} parent=1 // pred_check_branch
      %73 = sbr.rel (0) target = $region37
    $region36: #{tpu_custom_call.1} parent=1 // pred_region
      %s75 = ssub.s32 4096, 4096
      %76 = vsyncadd [#allocation6], %s75
      %s77 = sshll.u32 [#allocation7], 4
      %s78 = int_to_ptr.vmem [resolvable:$true] %s77
      %83 = dma.hbm_to_vmem [thread:$0]  %s8, 4096, %s78, [#allocation6], 128, 128, 8
    $region37: #{tpu_custom_call.1} parent=1 // pred_fallthru
      _
    // Predicated region
    $region38: #{tpu_custom_call.1} parent=1 // pred_check
      _
    $region39: #{tpu_custom_call.1} parent=1 // pred_check_branch
      %85 = sbr.rel (0) target = $region41
    $region40: #{tpu_custom_call.1} parent=1 // pred_region
      %s87 = ssub.s32 16, 16
      %88 = vsyncadd [#allocation9], %s87
      %s90 = sshll.u32 [#allocation8], 4
      %s91 = int_to_ptr.vmem [resolvable:$true] %s90
      %93 = dma.hbm_to_vmem [thread:$0]  %s9, 16, %s91, [#allocation9]
    $region41: #{tpu_custom_call.1} parent=1 // pred_fallthru
      _
    // Predicated region
    $region42: #{tpu_custom_call.1} parent=1 // pred_check
      _
    $region43: #{tpu_custom_call.1} parent=1 // pred_check_branch
      %95 = sbr.rel (0) target = $region45
    $region44: #{tpu_custom_call.1} parent=1 // pred_region
      _
    $region45: #{tpu_custom_call.1} parent=1 // pred_fallthru
      _
    // Predicated region
    $region46: #{tpu_custom_call.1} parent=1 // pred_check
      _
    $region47: #{tpu_custom_call.1} parent=1 // pred_check_branch
      %97 = sbr.rel (0) target = $region49
    $region48: #{tpu_custom_call.1} parent=1 // pred_region
      %s99 = ssub.s32 16, 16
      %100 = vsyncadd [#allocation9], %s99
      %s102 = sshll.u32 [#allocation10], 4
      %s103 = int_to_ptr.vmem [resolvable:$true] %s102
      %105 = dma.hbm_to_vmem [thread:$0]  %s11, 16, %s103, [#allocation9]
    $region49: #{tpu_custom_call.1} parent=1 // pred_fallthru
      _
    // Predicated region
    $region50: #{tpu_custom_call.1} parent=1 // pred_check
      _
    $region51: #{tpu_custom_call.1} parent=1 // pred_check_branch
      %107 = sbr.rel (0) target = $region53
    $region52: #{tpu_custom_call.1} parent=1 // pred_region
      %s109 = ssub.s32 32768, 32768
      %110 = vsyncadd [#allocation12], %s109
      %s111 = sshll.u32 [#allocation11], 4
      %s112 = int_to_ptr.vmem [resolvable:$true] %s111
      %117 = dma.hbm_to_vmem [thread:$0]  %s12, 32768, %s112, [#allocation12], 512, 512, 32
    $region53: #{tpu_custom_call.1} parent=1 // pred_fallthru
      _
    // Predicated region
    $region54: #{tpu_custom_call.1} parent=1 // pred_check
      _
    $region55: #{tpu_custom_call.1} parent=1 // pred_check_branch
      %119 = sbr.rel (0) target = $region57
    $region56: #{tpu_custom_call.1} parent=1 // pred_region
      _
    $region57: #{tpu_custom_call.1} parent=1 // pred_fallthru
      _
    // Predicated region
    $region58: #{tpu_custom_call.1} parent=1 // pred_check
      _
    $region59: #{tpu_custom_call.1} parent=1 // pred_check_branch
      %121 = sbr.rel (0) target = $region61
    $region60: #{tpu_custom_call.1} parent=1 // pred_region
      %s123 = ssub.s32 8192, 8192
      %124 = vsyncadd [#allocation12], %s123
      %s125 = sshll.u32 [#allocation13], 4
      %s126 = int_to_ptr.vmem [resolvable:$true] %s125
      %131 = dma.hbm_to_vmem [thread:$0]  %s14, 8192, %s126, [#allocation12], 128, 128, 8
    $region61: #{tpu_custom_call.1} parent=1 // pred_fallthru
      _
    // Predicated region
    $region62: #{tpu_custom_call.1} parent=1 // pred_check
      _
    $region63: #{tpu_custom_call.1} parent=1 // pred_check_branch
      %133 = sbr.rel (0) target = $region65
    $region64: #{tpu_custom_call.1} parent=1 // pred_region
      %s135 = ssub.s32 64, 64
      %136 = vsyncadd [#allocation15], %s135
      %s137 = sshll.u32 [#allocation14], 4
      %s138 = int_to_ptr.vmem [resolvable:$true] %s137
      %143 = dma.hbm_to_vmem [thread:$0]  %s15, 64, %s138, [#allocation15], 16, 16, 1
    $region65: #{tpu_custom_call.1} parent=1 // pred_fallthru
      _
    // Predicated region
    $region66: #{tpu_custom_call.1} parent=1 // pred_check
      _
    $region67: #{tpu_custom_call.1} parent=1 // pred_check_branch
      %145 = sbr.rel (0) target = $region69
    $region68: #{tpu_custom_call.1} parent=1 // pred_region
      _
    $region69: #{tpu_custom_call.1} parent=1 // pred_fallthru
      _
    // Predicated region
    $region70: #{tpu_custom_call.1} parent=1 // pred_check
      _
    $region71: #{tpu_custom_call.1} parent=1 // pred_check_branch
      %147 = sbr.rel (0) target = $region73
    $region72: #{tpu_custom_call.1} parent=1 // pred_region
      _
    $region73: #{tpu_custom_call.1} parent=1 // pred_fallthru
      _
    // Predicated region
    $region74: #{tpu_custom_call.1} parent=1 // pred_check
      _
    $region75: #{tpu_custom_call.1} parent=1 // pred_check_branch
      %149 = sbr.rel (0) target = $region77
    $region76: #{tpu_custom_call.1} parent=1 // pred_region
      %s151 = ssub.s32 2048, 2048
      %152 = vsyncadd [#allocation15], %s151
      %s153 = sshll.u32 [#allocation16], 4
      %s154 = int_to_ptr.vmem [resolvable:$true] %s153
      %159 = dma.hbm_to_vmem [thread:$0]  %s18, 2048, %s154, [#allocation15], 128, 128, 8
    $region77: #{tpu_custom_call.1} parent=1 // pred_fallthru
      _
    // Predicated region
    $region78: #{tpu_custom_call.1} parent=1 // pred_check
      _
    $region79: #{tpu_custom_call.1} parent=1 // pred_check_branch
      %161 = sbr.rel (0) target = $region81
    $region80: #{tpu_custom_call.1} parent=1 // pred_region
      _
    $region81: #{tpu_custom_call.1} parent=1 // pred_fallthru
      _
    // Predicated region
    $region82: #{tpu_custom_call.1} parent=1 // pred_check
      _
    $region83: #{tpu_custom_call.1} parent=1 // pred_check_branch
      %163 = sbr.rel (0) target = $region85
    $region84: #{tpu_custom_call.1} parent=1 // pred_region
      %s165 = ssub.s32 2048, 2048
      %166 = vsyncadd [#allocation18], %s165
      %s167 = sshll.u32 [#allocation17], 4
      %s168 = int_to_ptr.vmem [resolvable:$true] %s167
      %173 = dma.hbm_to_vmem [thread:$0]  %s20, 2048, %s168, [#allocation18], 128, 128, 8
    $region85: #{tpu_custom_call.1} parent=1 // pred_fallthru
      _
    // Predicated region
    $region86: #{tpu_custom_call.1} parent=1 // pred_check
      _
    $region87: #{tpu_custom_call.1} parent=1 // pred_check_branch
      %175 = sbr.rel (0) target = $region89
    $region88: #{tpu_custom_call.1} parent=1 // pred_region
      _
    $region89: #{tpu_custom_call.1} parent=1 // pred_fallthru
      _
    // Predicated region
    $region90: #{tpu_custom_call.1} parent=1 // pred_check
      _
    $region91: #{tpu_custom_call.1} parent=1 // pred_check_branch
      %177 = sbr.rel (0) target = $region93
    $region92: #{tpu_custom_call.1} parent=1 // pred_region
      %s179 = ssub.s32 2048, 2048
      %180 = vsyncadd [#allocation18], %s179
      %s181 = sshll.u32 [#allocation19], 4
      %s182 = int_to_ptr.vmem [resolvable:$true] %s181
      %187 = dma.hbm_to_vmem [thread:$0]  %s22, 2048, %s182, [#allocation18], 128, 128, 8
    $region93: #{tpu_custom_call.1} parent=1 // pred_fallthru
      _
    // Predicated region
    $region94: #{tpu_custom_call.1} parent=1 // pred_check
      _
    $region95: #{tpu_custom_call.1} parent=1 // pred_check_branch
      %189 = sbr.rel (0) target = $region97
    $region96: #{tpu_custom_call.1} parent=1 // pred_region
      _
    $region97: #{tpu_custom_call.1} parent=1 // pred_fallthru
      _
    // Predicated region
    $region98: #{tpu_custom_call.1} parent=1 // pred_check
      _
    $region99: #{tpu_custom_call.1} parent=1 // pred_check_branch
      %191 = sbr.rel (0) target = $region101
    $region100: #{tpu_custom_call.1} parent=1 // pred_region
      %192 = dma.done [#allocation3], 768
    $region101: #{tpu_custom_call.1} parent=1 // pred_fallthru
      _
    // Predicated region
    $region102: #{tpu_custom_call.1} parent=1 // pred_check
      _
    $region103: #{tpu_custom_call.1} parent=1 // pred_check_branch
      %194 = sbr.rel (0) target = $region105
    $region104: #{tpu_custom_call.1} parent=1 // pred_region
      %195 = dma.done [#allocation6], 192
    $region105: #{tpu_custom_call.1} parent=1 // pred_fallthru
      _
    // Predicated region
    $region106: #{tpu_custom_call.1} parent=1 // pred_check
      _
    $region107: #{tpu_custom_call.1} parent=1 // pred_check_branch
      %197 = sbr.rel (0) target = $region109
    $region108: #{tpu_custom_call.1} parent=1 // pred_region
      %198 = dma.done [#allocation6], 4096
    $region109: #{tpu_custom_call.1} parent=1 // pred_fallthru
      _
    // Predicated region
    $region110: #{tpu_custom_call.1} parent=1 // pred_check
      _
    $region111: #{tpu_custom_call.1} parent=1 // pred_check_branch
      %200 = sbr.rel (0) target = $region113
    $region112: #{tpu_custom_call.1} parent=1 // pred_region
      %201 = dma.done [#allocation9], 16
    $region113: #{tpu_custom_call.1} parent=1 // pred_fallthru
      _
    // Predicated region
    $region114: #{tpu_custom_call.1} parent=1 // pred_check
      _
    $region115: #{tpu_custom_call.1} parent=1 // pred_check_branch
      %203 = sbr.rel (0) target = $region117
    $region116: #{tpu_custom_call.1} parent=1 // pred_region
      %204 = dma.done [#allocation9], 16
    $region117: #{tpu_custom_call.1} parent=1 // pred_fallthru
      _
    // Predicated region
    $region118: #{tpu_custom_call.1} parent=1 // pred_check
      _
    $region119: #{tpu_custom_call.1} parent=1 // pred_check_branch
      %206 = sbr.rel (0) target = $region121
    $region120: #{tpu_custom_call.1} parent=1 // pred_region
      %207 = dma.done [#allocation12], 32768
    $region121: #{tpu_custom_call.1} parent=1 // pred_fallthru
      _
    // Predicated region
    $region122: #{tpu_custom_call.1} parent=1 // pred_check
      _
    $region123: #{tpu_custom_call.1} parent=1 // pred_check_branch
      %209 = sbr.rel (0) target = $region125
    $region124: #{tpu_custom_call.1} parent=1 // pred_region
      %210 = dma.done [#allocation12], 8192
    $region125: #{tpu_custom_call.1} parent=1 // pred_fallthru
      _
    // Predicated region
    $region126: #{tpu_custom_call.1} parent=1 // pred_check
      _
    $region127: #{tpu_custom_call.1} parent=1 // pred_check_branch
      %212 = sbr.rel (0) target = $region129
    $region128: #{tpu_custom_call.1} parent=1 // pred_region
      %213 = dma.done [#allocation15], 64
    $region129: #{tpu_custom_call.1} parent=1 // pred_fallthru
      _
    // Predicated region
    $region130: #{tpu_custom_call.1} parent=1 // pred_check
      _
    $region131: #{tpu_custom_call.1} parent=1 // pred_check_branch
      %215 = sbr.rel (0) target = $region133
    $region132: #{tpu_custom_call.1} parent=1 // pred_region
      %216 = dma.done [#allocation15], 2048
    $region133: #{tpu_custom_call.1} parent=1 // pred_fallthru
      _
    // Predicated region
    $region134: #{tpu_custom_call.1} parent=1 // pred_check
      _
    $region135: #{tpu_custom_call.1} parent=1 // pred_check_branch
      %218 = sbr.rel (0) target = $region137
    $region136: #{tpu_custom_call.1} parent=1 // pred_region
      %219 = dma.done [#allocation18], 2048
    $region137: #{tpu_custom_call.1} parent=1 // pred_fallthru
      _
    // Predicated region
    $region138: #{tpu_custom_call.1} parent=1 // pred_check
      _
    $region139: #{tpu_custom_call.1} parent=1 // pred_check_branch
      %221 = sbr.rel (0) target = $region141
    $region140: #{tpu_custom_call.1} parent=1 // pred_region
      %222 = dma.done [#allocation18], 2048
    $region141: #{tpu_custom_call.1} parent=1 // pred_fallthru
      _
    %v224 = vld [vmem:[%s0] sm:$0xff]
    %v225 = vld [vmem:[%s0 + $0x8] sm:$0xff]
    %v226 = vld [vmem:[%s0 + $0x10] sm:$0xff]
    %v227 = vld [vmem:[%s0 + $0x18] sm:$0xff]
    %v228 = vld [vmem:[%s0 + $0x20] sm:$0xff]
    %v229 = vld [vmem:[%s0 + $0x28] sm:$0xff]
    %v230 = vld [vmem:[#allocation7] sm:$0xff]
    %v231 = vld [vmem:[#allocation7 + $0x8] sm:$0xff]
    %v232 = vld [vmem:[#allocation7 + $0x10] sm:$0xff]
    %v233 = vld [vmem:[#allocation7 + $0x18] sm:$0xff]
    %v234 = vld [vmem:[#allocation7 + $0x20] sm:$0xff]
    %v235 = vld [vmem:[#allocation7 + $0x28] sm:$0xff]
    %v236 = vld [vmem:[#allocation7 + $0x30] sm:$0xff]
    %v237 = vld [vmem:[#allocation7 + $0x38] sm:$0xff]
    %v238 = vld [vmem:[#allocation7 + $0x40] sm:$0xff]
    %v239 = vld [vmem:[#allocation7 + $0x48] sm:$0xff]
    %v240 = vld [vmem:[#allocation7 + $0x50] sm:$0xff]
    %v241 = vld [vmem:[#allocation7 + $0x58] sm:$0xff]
    %v242 = vld [vmem:[#allocation7 + $0x60] sm:$0xff]
    %v243 = vld [vmem:[#allocation7 + $0x68] sm:$0xff]
    %v244 = vld [vmem:[#allocation7 + $0x70] sm:$0xff]
    %v245 = vld [vmem:[#allocation7 + $0x78] sm:$0xff]
    %v246 = vld [vmem:[#allocation7 + $0x80] sm:$0xff]
    %v247 = vld [vmem:[#allocation7 + $0x88] sm:$0xff]
    %v248 = vld [vmem:[#allocation7 + $0x90] sm:$0xff]
    %v249 = vld [vmem:[#allocation7 + $0x98] sm:$0xff]
    %v250 = vld [vmem:[#allocation7 + $0xa0] sm:$0xff]
    %v251 = vld [vmem:[#allocation7 + $0xa8] sm:$0xff]
    %v252 = vld [vmem:[#allocation7 + $0xb0] sm:$0xff]
    %v253 = vld [vmem:[#allocation7 + $0xb8] sm:$0xff]
    %v254 = vld [vmem:[#allocation7 + $0xc0] sm:$0xff]
    %v255 = vld [vmem:[#allocation7 + $0xc8] sm:$0xff]
    %v256 = vld [vmem:[#allocation7 + $0xd0] sm:$0xff]
    %v257 = vld [vmem:[#allocation7 + $0xd8] sm:$0xff]
    %v258 = vld [vmem:[#allocation7 + $0xe0] sm:$0xff]
    %v259 = vld [vmem:[#allocation7 + $0xe8] sm:$0xff]
    %v260 = vld [vmem:[#allocation7 + $0xf0] sm:$0xff]
    %v261 = vld [vmem:[#allocation7 + $0xf8] sm:$0xff]
    %v262 = vld [vmem:[#allocation8] sm:$0x1]
    %v264 = vlaneseq
    %v265 = vshrl.u32 %v264, 7
    %v266 = vsub.s32 0, %v265
    %v267 = vrot.slane %v262, %v266
    %269 = vmatprep.subr.mxu0 0.0
    %270 = vmatpush1.msra.mxu0 %v230
    %271 = vmatprep.subr.mxu0 0.0
    %272 = vmatpush1.msra.mxu0 %v231
    %273 = vmatprep.subr.mxu0 0.0
    %274 = vmatpush1.msra.mxu0 %v232
    %275 = vmatprep.subr.mxu0 0.0
    %276 = vmatpush1.msra.mxu0 %v233
    %277 = vmatprep.subr.mxu0 0.0
    %278 = vmatpush1.msra.mxu0 %v234
    %279 = vmatprep.subr.mxu0 0.0
    %280 = vmatpush1.msra.mxu0 %v235
    %281 = vmatprep.subr.mxu0 0.0
    %282 = vmatpush1.msra.mxu0 %v236
    %283 = vmatprep.subr.mxu0 0.0
    %284 = vmatpush1.msra.mxu0 %v237
    %285 = vmatprep.subr.mxu0 0.0
    %286 = vmatpush1.msra.mxu0 %v238
    %287 = vmatprep.subr.mxu0 0.0
    %288 = vmatpush1.msra.mxu0 %v239
    %289 = vmatprep.subr.mxu0 0.0
    %290 = vmatpush1.msra.mxu0 %v240
    %291 = vmatprep.subr.mxu0 0.0
    %292 = vmatpush1.msra.mxu0 %v241
    %293 = vmatprep.subr.mxu0 0.0
    %294 = vmatpush1.msra.mxu0 %v242
    %295 = vmatprep.subr.mxu0 0.0
    %296 = vmatpush1.msra.mxu0 %v243
    %297 = vmatprep.subr.mxu0 0.0
    %298 = vmatpush1.msra.mxu0 %v244
    %299 = vmatprep.subr.mxu0 0.0
    %300 = vmatpush1.msra.mxu0 %v245
    %301 = vmatprep.subr.mxu0 0.0
    %302 = vmatpush1.msra.mxu0 %v246
    %303 = vmatprep.subr.mxu0 0.0
    %304 = vmatpush1.msra.mxu0 %v247
    %305 = vmatprep.subr.mxu0 0.0
    %306 = vmatpush1.msra.mxu0 %v248
    %307 = vmatprep.subr.mxu0 0.0
    %308 = vmatpush1.msra.mxu0 %v249
    %309 = vmatprep.subr.mxu0 0.0
    %310 = vmatpush1.msra.mxu0 %v250
    %311 = vmatprep.subr.mxu0 0.0
    %312 = vmatpush1.msra.mxu0 %v251
    %313 = vmatprep.subr.mxu0 0.0
    %314 = vmatpush1.msra.mxu0 %v252
    %315 = vmatprep.subr.mxu0 0.0
    %316 = vmatpush1.msra.mxu0 %v253
    %317 = vmatprep.subr.mxu0 0.0
    %318 = vmatpush1.msra.mxu0 %v254
    %319 = vmatprep.subr.mxu0 0.0
    %320 = vmatpush1.msra.mxu0 %v255
    %321 = vmatprep.subr.mxu0 0.0
    %322 = vmatpush1.msra.mxu0 %v256
    %323 = vmatprep.subr.mxu0 0.0
    %324 = vmatpush1.msra.mxu0 %v257
    %325 = vmatprep.subr.mxu0 0.0
    %326 = vmatpush1.msra.mxu0 %v258
    %327 = vmatprep.subr.mxu0 0.0
    %328 = vmatpush1.msra.mxu0 %v259
    %329 = vmatprep.subr.mxu0 0.0
    %330 = vmatpush1.msra.mxu0 %v260
    %331 = vmatprep.subr.mxu0 0.0
    %332 = vmatpush1.msra.mxu0 %v261
    %333 = vmatprep.mubr.f32.mxu0 %v225
    %334 = vmatmul.mubr.f32.gmra.mrb[0].mxu0 %v224
    %v335 = vpop.f32.mrb[0].mxu0
    %v336 = vadd.f32 %v267, %v335
    %v337 = vpop.f32.mrb[0].mxu0
    %338 = vmatprep.mubr.f32.mxu0 %v227
    %339 = vmatmul.mubr.f32.gmra.mrb[0].mxu0 %v226
    %v340 = vpop.f32.mrb[0].mxu0
    %v341 = vadd.f32 %v267, %v340
    %v342 = vpop.f32.mrb[0].mxu0
    %343 = vmatprep.mubr.f32.mxu0 %v229
    %344 = vmatmul.mubr.f32.gmra.mrb[0].mxu0 %v228
    %v345 = vpop.f32.mrb[0].mxu0
    %v346 = vadd.f32 %v267, %v345
    %v347 = vpop.f32.mrb[0].mxu0
    %348 = vdwg.mxu0
    %v349 = vld [vmem:[#allocation2] sm:$0xff]
    %v350 = vld [vmem:[#allocation2 + $0x8] sm:$0xff]
    %v351 = vld [vmem:[#allocation2 + $0x10] sm:$0xff]
    %v352 = vld [vmem:[#allocation2 + $0x18] sm:$0xff]
    %v353 = vld [vmem:[#allocation2 + $0x20] sm:$0xff]
    %v354 = vld [vmem:[#allocation2 + $0x28] sm:$0xff]
    %v355 = vld [vmem:[%s10] sm:$0xff]
    %v356 = vld [vmem:[%s10 + $0x8] sm:$0xff]
    %v357 = vld [vmem:[%s10 + $0x10] sm:$0xff]
    %v358 = vld [vmem:[%s10 + $0x18] sm:$0xff]
    %v359 = vld [vmem:[%s10 + $0x20] sm:$0xff]
    %v360 = vld [vmem:[%s10 + $0x28] sm:$0xff]
    %v361 = vld [vmem:[%s10 + $0x30] sm:$0xff]
    %v362 = vld [vmem:[%s10 + $0x38] sm:$0xff]
    %v363 = vld [vmem:[%s10 + $0x40] sm:$0xff]
    %v364 = vld [vmem:[%s10 + $0x48] sm:$0xff]
    %v365 = vld [vmem:[%s10 + $0x50] sm:$0xff]
    %v366 = vld [vmem:[%s10 + $0x58] sm:$0xff]
    %v367 = vld [vmem:[%s10 + $0x60] sm:$0xff]
    %v368 = vld [vmem:[%s10 + $0x68] sm:$0xff]
    %v369 = vld [vmem:[%s10 + $0x70] sm:$0xff]
    %v370 = vld [vmem:[%s10 + $0x78] sm:$0xff]
    %v371 = vld [vmem:[#allocation10] sm:$0x1]
    %v373 = vlaneseq
    %v374 = vshrl.u32 %v373, 7
    %v375 = vsub.s32 0, %v374
    %v376 = vrot.slane %v371, %v375
    %378 = vmatprep.subr.mxu0 0.0
    %379 = vmatpush1.msra.mxu0 %v355
    %380 = vmatprep.subr.mxu0 0.0
    %381 = vmatpush1.msra.mxu0 %v356
    %382 = vmatprep.subr.mxu0 0.0
    %383 = vmatpush1.msra.mxu0 %v357
    %384 = vmatprep.subr.mxu0 0.0
    %385 = vmatpush1.msra.mxu0 %v358
    %386 = vmatprep.subr.mxu0 0.0
    %387 = vmatpush1.msra.mxu0 %v359
    %388 = vmatprep.subr.mxu0 0.0
    %389 = vmatpush1.msra.mxu0 %v360
    %390 = vmatprep.subr.mxu0 0.0
    %391 = vmatpush1.msra.mxu0 %v361
    %392 = vmatprep.subr.mxu0 0.0
    %393 = vmatpush1.msra.mxu0 %v362
    %394 = vmatprep.subr.mxu0 0.0
    %395 = vmatpush1.msra.mxu0 %v363
    %396 = vmatprep.subr.mxu0 0.0
    %397 = vmatpush1.msra.mxu0 %v364
    %398 = vmatprep.subr.mxu0 0.0
    %399 = vmatpush1.msra.mxu0 %v365
    %400 = vmatprep.subr.mxu0 0.0
    %401 = vmatpush1.msra.mxu0 %v366
    %402 = vmatprep.subr.mxu0 0.0
    %403 = vmatpush1.msra.mxu0 %v367
    %404 = vmatprep.subr.mxu0 0.0
    %405 = vmatpush1.msra.mxu0 %v368
    %406 = vmatprep.subr.mxu0 0.0
    %407 = vmatpush1.msra.mxu0 %v369
    %408 = vmatprep.subr.mxu0 0.0
    %409 = vmatpush1.msra.mxu0 %v370
    %410 = vmatprep.subr.mxu0 0.0
    %411 = vmatpush1.msra.mxu0 0.0
    %412 = vmatprep.subr.mxu0 0.0
    %413 = vmatpush1.msra.mxu0 0.0
    %414 = vmatprep.subr.mxu0 0.0
    %415 = vmatpush1.msra.mxu0 0.0
    %416 = vmatprep.subr.mxu0 0.0
    %417 = vmatpush1.msra.mxu0 0.0
    %418 = vmatprep.subr.mxu0 0.0
    %419 = vmatpush1.msra.mxu0 0.0
    %420 = vmatprep.subr.mxu0 0.0
    %421 = vmatpush1.msra.mxu0 0.0
    %422 = vmatprep.subr.mxu0 0.0
    %423 = vmatpush1.msra.mxu0 0.0
    %424 = vmatprep.subr.mxu0 0.0
    %425 = vmatpush1.msra.mxu0 0.0
    %426 = vmatprep.subr.mxu0 0.0
    %427 = vmatpush1.msra.mxu0 0.0
    %428 = vmatprep.subr.mxu0 0.0
    %429 = vmatpush1.msra.mxu0 0.0
    %430 = vmatprep.subr.mxu0 0.0
    %431 = vmatpush1.msra.mxu0 0.0
    %432 = vmatprep.subr.mxu0 0.0
    %433 = vmatpush1.msra.mxu0 0.0
    %434 = vmatprep.subr.mxu0 0.0
    %435 = vmatpush1.msra.mxu0 0.0
    %436 = vmatprep.subr.mxu0 0.0
    %437 = vmatpush1.msra.mxu0 0.0
    %438 = vmatprep.subr.mxu0 0.0
    %439 = vmatpush1.msra.mxu0 0.0
    %440 = vmatprep.subr.mxu0 0.0
    %441 = vmatpush1.msra.mxu0 0.0
    %442 = vmatprep.mubr.f32.mxu0 0.0
    %443 = vmatmul.mubr.f32.gmra.mrb[0].mxu0 %v349
    %v444 = vpop.f32.mrb[0].mxu0
    %v445 = vadd.f32 %v376, %v444
    %v446 = vpop.f32.mrb[0].mxu0
    %447 = vmatprep.mubr.f32.mxu0 0.0
    %448 = vmatmul.mubr.f32.gmra.mrb[0].mxu0 %v350
    %v449 = vpop.f32.mrb[0].mxu0
    %v450 = vadd.f32 %v376, %v449
    %v451 = vpop.f32.mrb[0].mxu0
    %452 = vmatprep.mubr.f32.mxu0 0.0
    %453 = vmatmul.mubr.f32.gmra.mrb[0].mxu0 %v351
    %v454 = vpop.f32.mrb[0].mxu0
    %v455 = vadd.f32 %v376, %v454
    %v456 = vpop.f32.mrb[0].mxu0
    %457 = vmatprep.mubr.f32.mxu0 0.0
    %458 = vmatmul.mubr.f32.gmra.mrb[0].mxu0 %v352
    %v459 = vpop.f32.mrb[0].mxu0
    %v460 = vadd.f32 %v376, %v459
    %v461 = vpop.f32.mrb[0].mxu0
    %462 = vmatprep.mubr.f32.mxu0 0.0
    %463 = vmatmul.mubr.f32.gmra.mrb[0].mxu0 %v353
    %v464 = vpop.f32.mrb[0].mxu0
    %v465 = vadd.f32 %v376, %v464
    %v466 = vpop.f32.mrb[0].mxu0
    %467 = vmatprep.mubr.f32.mxu0 0.0
    %468 = vmatmul.mubr.f32.gmra.mrb[0].mxu0 %v354
    %v469 = vpop.f32.mrb[0].mxu0
    %v470 = vadd.f32 %v376, %v469
    %v471 = vpop.f32.mrb[0].mxu0
    %472 = vdwg.mxu0
    %v473 = vld [vmem:[%s2] sm:$0xf]
    %v474 = vld [vmem:[%s2 + $0x4] sm:$0xf]
    %v475 = vld [vmem:[%s2 + $0x8] sm:$0xf]
    %v476 = vld [vmem:[%s2 + $0xc] sm:$0xf]
    %v477 = vld [vmem:[%s2 + $0x10] sm:$0xf]
    %v478 = vld [vmem:[%s2 + $0x14] sm:$0xf]
    %v479 = vld [vmem:[%s3] sm:$0xf]
    %v480 = vld [vmem:[%s3 + $0x4] sm:$0xf]
    %v481 = vld [vmem:[%s3 + $0x8] sm:$0xf]
    %v482 = vld [vmem:[%s3 + $0xc] sm:$0xf]
    %v483 = vld [vmem:[%s3 + $0x10] sm:$0xf]
    %v484 = vld [vmem:[%s3 + $0x14] sm:$0xf]
    %v485 = vld [vmem:[#allocation5] sm:$0xf]
    %v486 = vld [vmem:[#allocation5 + $0x4] sm:$0xf]
    %v487 = vld [vmem:[#allocation5 + $0x8] sm:$0xf]
    %v488 = vld [vmem:[%s5] sm:$0xff]
    %v489 = vld [vmem:[%s5 + $0x8] sm:$0xff]
    %v490 = vld [vmem:[%s5 + $0x10] sm:$0xff]
    %v491 = vld [vmem:[%s6] sm:$0xff]
    %v492 = vld [vmem:[%s6 + $0x8] sm:$0xff]
    %v493 = vld [vmem:[%s6 + $0x10] sm:$0xff]
    %v494 = vld [vmem:[%s6 + $0x18] sm:$0xff]
    %v495 = vld [vmem:[%s6 + $0x20] sm:$0xff]
    %v496 = vld [vmem:[%s6 + $0x28] sm:$0xff]
    %v497 = vld [vmem:[#allocation11] sm:$0xff]
    %v498 = vld [vmem:[#allocation11 + $0x8] sm:$0xff]
    %v499 = vld [vmem:[#allocation11 + $0x10] sm:$0xff]
    %v500 = vld [vmem:[#allocation11 + $0x18] sm:$0xff]
    %v501 = vld [vmem:[#allocation11 + $0x20] sm:$0xff]
    %v502 = vld [vmem:[#allocation11 + $0x28] sm:$0xff]
    %v503 = vld [vmem:[#allocation11 + $0x30] sm:$0xff]
    %v504 = vld [vmem:[#allocation11 + $0x38] sm:$0xff]
    %v505 = vld [vmem:[#allocation11 + $0x40] sm:$0xff]
    %v506 = vld [vmem:[#allocation11 + $0x48] sm:$0xff]
    %v507 = vld [vmem:[#allocation11 + $0x50] sm:$0xff]
    %v508 = vld [vmem:[#allocation11 + $0x58] sm:$0xff]
    %v509 = vld [vmem:[#allocation11 + $0x60] sm:$0xff]
    %v510 = vld [vmem:[#allocation11 + $0x68] sm:$0xff]
    %v511 = vld [vmem:[#allocation11 + $0x70] sm:$0xff]
    %v512 = vld [vmem:[#allocation11 + $0x78] sm:$0xff]
    %v513 = vld [vmem:[#allocation11 + $0x80] sm:$0xff]
    %v514 = vld [vmem:[#allocation11 + $0x88] sm:$0xff]
    %v515 = vld [vmem:[#allocation11 + $0x90] sm:$0xff]
    %v516 = vld [vmem:[#allocation11 + $0x98] sm:$0xff]
    %v517 = vld [vmem:[#allocation11 + $0xa0] sm:$0xff]
    %v518 = vld [vmem:[#allocation11 + $0xa8] sm:$0xff]
    %v519 = vld [vmem:[#allocation11 + $0xb0] sm:$0xff]
    %v520 = vld [vmem:[#allocation11 + $0xb8] sm:$0xff]
    %v521 = vld [vmem:[#allocation11 + $0xc0] sm:$0xff]
    %v522 = vld [vmem:[#allocation11 + $0xc8] sm:$0xff]
    %v523 = vld [vmem:[#allocation11 + $0xd0] sm:$0xff]
    %v524 = vld [vmem:[#allocation11 + $0xd8] sm:$0xff]
    %v525 = vld [vmem:[#allocation11 + $0xe0] sm:$0xff]
    %v526 = vld [vmem:[#allocation11 + $0xe8] sm:$0xff]
    %v527 = vld [vmem:[#allocation11 + $0xf0] sm:$0xff]
    %v528 = vld [vmem:[#allocation11 + $0xf8] sm:$0xff]
    %v529 = vld [vmem:[#allocation11 + $0x100] sm:$0xff]
    %v530 = vld [vmem:[#allocation11 + $0x108] sm:$0xff]
    %v531 = vld [vmem:[#allocation11 + $0x110] sm:$0xff]
    %v532 = vld [vmem:[#allocation11 + $0x118] sm:$0xff]
    %v533 = vld [vmem:[#allocation11 + $0x120] sm:$0xff]
    %v534 = vld [vmem:[#allocation11 + $0x128] sm:$0xff]
    %v535 = vld [vmem:[#allocation11 + $0x130] sm:$0xff]
    %v536 = vld [vmem:[#allocation11 + $0x138] sm:$0xff]
    %v537 = vld [vmem:[#allocation11 + $0x140] sm:$0xff]
    %v538 = vld [vmem:[#allocation11 + $0x148] sm:$0xff]
    %v539 = vld [vmem:[#allocation11 + $0x150] sm:$0xff]
    %v540 = vld [vmem:[#allocation11 + $0x158] sm:$0xff]
    %v541 = vld [vmem:[#allocation11 + $0x160] sm:$0xff]
    %v542 = vld [vmem:[#allocation11 + $0x168] sm:$0xff]
    %v543 = vld [vmem:[#allocation11 + $0x170] sm:$0xff]
    %v544 = vld [vmem:[#allocation11 + $0x178] sm:$0xff]
    %v545 = vld [vmem:[#allocation11 + $0x180] sm:$0xff]
    %v546 = vld [vmem:[#allocation11 + $0x188] sm:$0xff]
    %v547 = vld [vmem:[#allocation11 + $0x190] sm:$0xff]
    %v548 = vld [vmem:[#allocation11 + $0x198] sm:$0xff]
    %v549 = vld [vmem:[#allocation11 + $0x1a0] sm:$0xff]
    %v550 = vld [vmem:[#allocation11 + $0x1a8] sm:$0xff]
    %v551 = vld [vmem:[#allocation11 + $0x1b0] sm:$0xff]
    %v552 = vld [vmem:[#allocation11 + $0x1b8] sm:$0xff]
    %v553 = vld [vmem:[#allocation11 + $0x1c0] sm:$0xff]
    %v554 = vld [vmem:[#allocation11 + $0x1c8] sm:$0xff]
    %v555 = vld [vmem:[#allocation11 + $0x1d0] sm:$0xff]
    %v556 = vld [vmem:[#allocation11 + $0x1d8] sm:$0xff]
    %v557 = vld [vmem:[#allocation11 + $0x1e0] sm:$0xff]
    %v558 = vld [vmem:[#allocation11 + $0x1e8] sm:$0xff]
    %v559 = vld [vmem:[#allocation11 + $0x1f0] sm:$0xff]
    %v560 = vld [vmem:[#allocation11 + $0x1f8] sm:$0xff]
    %v561 = vld [vmem:[%s13] sm:$0xf]
    %v563 = vlaneseq
    %v564 = vshrl.u32 %v563, 7
    %v565 = vsub.s32 0, %v564
    %v566 = vrot.slane %v561, %v565
    %v567 = vlaneseq
    %v568 = vshrl.u32 %v567, 7
    %v569 = vsub.s32 1, %v568
    %v570 = vrot.slane %v561, %v569
    %v571 = vlaneseq
    %v572 = vshrl.u32 %v571, 7
    %v573 = vsub.s32 2, %v572
    %v574 = vrot.slane %v561, %v573
    %v575 = vlaneseq
    %v576 = vshrl.u32 %v575, 7
    %v577 = vsub.s32 3, %v576
    %v578 = vrot.slane %v561, %v577
    %583 = vmatprep.subr.mxu0 %v498
    %584 = vmatpush1.msra.mxu0 %v497
    %585 = vmatprep.subr.mxu0 %v502
    %586 = vmatpush1.msra.mxu0 %v501
    %587 = vmatprep.subr.mxu0 %v506
    %588 = vmatpush1.msra.mxu0 %v505
    %589 = vmatprep.subr.mxu0 %v510
    %590 = vmatpush1.msra.mxu0 %v509
    %591 = vmatprep.subr.mxu0 %v514
    %592 = vmatpush1.msra.mxu0 %v513
    %593 = vmatprep.subr.mxu0 %v518
    %594 = vmatpush1.msra.mxu0 %v517
    %595 = vmatprep.subr.mxu0 %v522
    %596 = vmatpush1.msra.mxu0 %v521
    %597 = vmatprep.subr.mxu0 %v526
    %598 = vmatpush1.msra.mxu0 %v525
    %599 = vmatprep.subr.mxu0 %v530
    %600 = vmatpush1.msra.mxu0 %v529
    %601 = vmatprep.subr.mxu0 %v534
    %602 = vmatpush1.msra.mxu0 %v533
    %603 = vmatprep.subr.mxu0 %v538
    %604 = vmatpush1.msra.mxu0 %v537
    %605 = vmatprep.subr.mxu0 %v542
    %606 = vmatpush1.msra.mxu0 %v541
    %607 = vmatprep.subr.mxu0 %v546
    %608 = vmatpush1.msra.mxu0 %v545
    %609 = vmatprep.subr.mxu0 %v550
    %610 = vmatpush1.msra.mxu0 %v549
    %611 = vmatprep.subr.mxu0 %v554
    %612 = vmatpush1.msra.mxu0 %v553
    %613 = vmatprep.subr.mxu0 %v558
    %614 = vmatpush1.msra.mxu0 %v557
    %615 = vmatprep.subr.mxu0 0.0
    %616 = vmatpush1.msra.mxu0 0.0
    %617 = vmatprep.subr.mxu0 0.0
    %618 = vmatpush1.msra.mxu0 0.0
    %619 = vmatprep.subr.mxu0 0.0
    %620 = vmatpush1.msra.mxu0 0.0
    %621 = vmatprep.subr.mxu0 0.0
    %622 = vmatpush1.msra.mxu0 0.0
    %623 = vmatprep.subr.mxu0 0.0
    %624 = vmatpush1.msra.mxu0 0.0
    %625 = vmatprep.subr.mxu0 0.0
    %626 = vmatpush1.msra.mxu0 0.0
    %627 = vmatprep.subr.mxu0 0.0
    %628 = vmatpush1.msra.mxu0 0.0
    %629 = vmatprep.subr.mxu0 0.0
    %630 = vmatpush1.msra.mxu0 0.0
    %631 = vmatprep.subr.mxu0 0.0
    %632 = vmatpush1.msra.mxu0 0.0
    %633 = vmatprep.subr.mxu0 0.0
    %634 = vmatpush1.msra.mxu0 0.0
    %635 = vmatprep.subr.mxu0 0.0
    %636 = vmatpush1.msra.mxu0 0.0
    %637 = vmatprep.subr.mxu0 0.0
    %638 = vmatpush1.msra.mxu0 0.0
    %639 = vmatprep.subr.mxu0 0.0
    %640 = vmatpush1.msra.mxu0 0.0
    %641 = vmatprep.subr.mxu0 0.0
    %642 = vmatpush1.msra.mxu0 0.0
    %643 = vmatprep.subr.mxu0 0.0
    %644 = vmatpush1.msra.mxu0 0.0
    %645 = vmatprep.subr.mxu0 0.0
    %646 = vmatpush1.msra.mxu0 0.0
    %647 = vmatprep.mubr.f32.mxu0 0.0
    %648 = vmatmul.mubr.f32.gmra.mrb[0].mxu0 %v336
    %v649 = vpop.f32.mrb[0].mxu0
    %v650 = vadd.f32 %v566, %v649
    %v651 = vpop.f32.mrb[0].mxu0
    %v652 = vadd.f32 %v570, %v651
    %653 = vmatprep.mubr.f32.mxu0 0.0
    %654 = vmatmul.mubr.f32.gmra.mrb[0].mxu0 %v341
    %v655 = vpop.f32.mrb[0].mxu0
    %v656 = vadd.f32 %v566, %v655
    %v657 = vpop.f32.mrb[0].mxu0
    %v658 = vadd.f32 %v570, %v657
    %659 = vmatprep.mubr.f32.mxu0 0.0
    %660 = vmatmul.mubr.f32.gmra.mrb[0].mxu0 %v346
    %v661 = vpop.f32.mrb[0].mxu0
    %v662 = vadd.f32 %v566, %v661
    %v663 = vpop.f32.mrb[0].mxu0
    %v664 = vadd.f32 %v570, %v663
    %665 = vdwg.mxu0
    %666 = vmatprep.subr.mxu0 %v500
    %667 = vmatpush1.msra.mxu0 %v499
    %668 = vmatprep.subr.mxu0 %v504
    %669 = vmatpush1.msra.mxu0 %v503
    %670 = vmatprep.subr.mxu0 %v508
    %671 = vmatpush1.msra.mxu0 %v507
    %672 = vmatprep.subr.mxu0 %v512
    %673 = vmatpush1.msra.mxu0 %v511
    %674 = vmatprep.subr.mxu0 %v516
    %675 = vmatpush1.msra.mxu0 %v515
    %676 = vmatprep.subr.mxu0 %v520
    %677 = vmatpush1.msra.mxu0 %v519
    %678 = vmatprep.subr.mxu0 %v524
    %679 = vmatpush1.msra.mxu0 %v523
    %680 = vmatprep.subr.mxu0 %v528
    %681 = vmatpush1.msra.mxu0 %v527
    %682 = vmatprep.subr.mxu0 %v532
    %683 = vmatpush1.msra.mxu0 %v531
    %684 = vmatprep.subr.mxu0 %v536
    %685 = vmatpush1.msra.mxu0 %v535
    %686 = vmatprep.subr.mxu0 %v540
    %687 = vmatpush1.msra.mxu0 %v539
    %688 = vmatprep.subr.mxu0 %v544
    %689 = vmatpush1.msra.mxu0 %v543
    %690 = vmatprep.subr.mxu0 %v548
    %691 = vmatpush1.msra.mxu0 %v547
    %692 = vmatprep.subr.mxu0 %v552
    %693 = vmatpush1.msra.mxu0 %v551
    %694 = vmatprep.subr.mxu0 %v556
    %695 = vmatpush1.msra.mxu0 %v555
    %696 = vmatprep.subr.mxu0 %v560
    %697 = vmatpush1.msra.mxu0 %v559
    %698 = vmatprep.subr.mxu0 0.0
    %699 = vmatpush1.msra.mxu0 0.0
    %700 = vmatprep.subr.mxu0 0.0
    %701 = vmatpush1.msra.mxu0 0.0
    %702 = vmatprep.subr.mxu0 0.0
    %703 = vmatpush1.msra.mxu0 0.0
    %704 = vmatprep.subr.mxu0 0.0
    %705 = vmatpush1.msra.mxu0 0.0
    %706 = vmatprep.subr.mxu0 0.0
    %707 = vmatpush1.msra.mxu0 0.0
    %708 = vmatprep.subr.mxu0 0.0
    %709 = vmatpush1.msra.mxu0 0.0
    %710 = vmatprep.subr.mxu0 0.0
    %711 = vmatpush1.msra.mxu0 0.0
    %712 = vmatprep.subr.mxu0 0.0
    %713 = vmatpush1.msra.mxu0 0.0
    %714 = vmatprep.subr.mxu0 0.0
    %715 = vmatpush1.msra.mxu0 0.0
    %716 = vmatprep.subr.mxu0 0.0
    %717 = vmatpush1.msra.mxu0 0.0
    %718 = vmatprep.subr.mxu0 0.0
    %719 = vmatpush1.msra.mxu0 0.0
    %720 = vmatprep.subr.mxu0 0.0
    %721 = vmatpush1.msra.mxu0 0.0
    %722 = vmatprep.subr.mxu0 0.0
    %723 = vmatpush1.msra.mxu0 0.0
    %724 = vmatprep.subr.mxu0 0.0
    %725 = vmatpush1.msra.mxu0 0.0
    %726 = vmatprep.subr.mxu0 0.0
    %727 = vmatpush1.msra.mxu0 0.0
    %728 = vmatprep.subr.mxu0 0.0
    %729 = vmatpush1.msra.mxu0 0.0
    %730 = vmatprep.mubr.f32.mxu0 0.0
    %731 = vmatmul.mubr.f32.gmra.mrb[0].mxu0 %v336
    %v732 = vpop.f32.mrb[0].mxu0
    %v733 = vadd.f32 %v574, %v732
    %v734 = vpop.f32.mrb[0].mxu0
    %v735 = vadd.f32 %v578, %v734
    %736 = vmatprep.mubr.f32.mxu0 0.0
    %737 = vmatmul.mubr.f32.gmra.mrb[0].mxu0 %v341
    %v738 = vpop.f32.mrb[0].mxu0
    %v739 = vadd.f32 %v574, %v738
    %v740 = vpop.f32.mrb[0].mxu0
    %v741 = vadd.f32 %v578, %v740
    %742 = vmatprep.mubr.f32.mxu0 0.0
    %743 = vmatmul.mubr.f32.gmra.mrb[0].mxu0 %v346
    %v744 = vpop.f32.mrb[0].mxu0
    %v745 = vadd.f32 %v574, %v744
    %v746 = vpop.f32.mrb[0].mxu0
    %v747 = vadd.f32 %v578, %v746
    %748 = vdwg.mxu0
    %v749 = vld [vmem:[#allocation13] sm:$0xff]
    %v750 = vld [vmem:[#allocation13 + $0x8] sm:$0xff]
    %v751 = vld [vmem:[#allocation13 + $0x10] sm:$0xff]
    %v752 = vld [vmem:[#allocation13 + $0x18] sm:$0xff]
    %v753 = vld [vmem:[#allocation13 + $0x20] sm:$0xff]
    %v754 = vld [vmem:[#allocation13 + $0x28] sm:$0xff]
    %v755 = vld [vmem:[#allocation13 + $0x30] sm:$0xff]
    %v756 = vld [vmem:[#allocation13 + $0x38] sm:$0xff]
    %v757 = vld [vmem:[#allocation13 + $0x40] sm:$0xff]
    %v758 = vld [vmem:[#allocation13 + $0x48] sm:$0xff]
    %v759 = vld [vmem:[#allocation13 + $0x50] sm:$0xff]
    %v760 = vld [vmem:[#allocation13 + $0x58] sm:$0xff]
    %v761 = vld [vmem:[#allocation13 + $0x60] sm:$0xff]
    %v762 = vld [vmem:[#allocation13 + $0x68] sm:$0xff]
    %v763 = vld [vmem:[#allocation13 + $0x70] sm:$0xff]
    %v764 = vld [vmem:[#allocation13 + $0x78] sm:$0xff]
    %v765 = vld [vmem:[#allocation14] sm:$0x1]
    %v767 = vlaneseq
    %v768 = vshrl.u32 %v767, 7
    %v769 = vsub.s32 0, %v768
    %v770 = vrot.slane %v765, %v769
    %772 = vmatprep.subr.mxu0 0.0
    %773 = vmatpush1.msra.mxu0 %v749
    %774 = vmatprep.subr.mxu0 0.0
    %775 = vmatpush1.msra.mxu0 %v750
    %776 = vmatprep.subr.mxu0 0.0
    %777 = vmatpush1.msra.mxu0 %v751
    %778 = vmatprep.subr.mxu0 0.0
    %779 = vmatpush1.msra.mxu0 %v752
    %780 = vmatprep.subr.mxu0 0.0
    %781 = vmatpush1.msra.mxu0 %v753
    %782 = vmatprep.subr.mxu0 0.0
    %783 = vmatpush1.msra.mxu0 %v754
    %784 = vmatprep.subr.mxu0 0.0
    %785 = vmatpush1.msra.mxu0 %v755
    %786 = vmatprep.subr.mxu0 0.0
    %787 = vmatpush1.msra.mxu0 %v756
    %788 = vmatprep.subr.mxu0 0.0
    %789 = vmatpush1.msra.mxu0 %v757
    %790 = vmatprep.subr.mxu0 0.0
    %791 = vmatpush1.msra.mxu0 %v758
    %792 = vmatprep.subr.mxu0 0.0
    %793 = vmatpush1.msra.mxu0 %v759
    %794 = vmatprep.subr.mxu0 0.0
    %795 = vmatpush1.msra.mxu0 %v760
    %796 = vmatprep.subr.mxu0 0.0
    %797 = vmatpush1.msra.mxu0 %v761
    %798 = vmatprep.subr.mxu0 0.0
    %799 = vmatpush1.msra.mxu0 %v762
    %800 = vmatprep.subr.mxu0 0.0
    %801 = vmatpush1.msra.mxu0 %v763
    %802 = vmatprep.subr.mxu0 0.0
    %803 = vmatpush1.msra.mxu0 %v764
    %804 = vmatprep.subr.mxu0 0.0
    %805 = vmatpush1.msra.mxu0 0.0
    %806 = vmatprep.subr.mxu0 0.0
    %807 = vmatpush1.msra.mxu0 0.0
    %808 = vmatprep.subr.mxu0 0.0
    %809 = vmatpush1.msra.mxu0 0.0
    %810 = vmatprep.subr.mxu0 0.0
    %811 = vmatpush1.msra.mxu0 0.0
    %812 = vmatprep.subr.mxu0 0.0
    %813 = vmatpush1.msra.mxu0 0.0
    %814 = vmatprep.subr.mxu0 0.0
    %815 = vmatpush1.msra.mxu0 0.0
    %816 = vmatprep.subr.mxu0 0.0
    %817 = vmatpush1.msra.mxu0 0.0
    %818 = vmatprep.subr.mxu0 0.0
    %819 = vmatpush1.msra.mxu0 0.0
    %820 = vmatprep.subr.mxu0 0.0
    %821 = vmatpush1.msra.mxu0 0.0
    %822 = vmatprep.subr.mxu0 0.0
    %823 = vmatpush1.msra.mxu0 0.0
    %824 = vmatprep.subr.mxu0 0.0
    %825 = vmatpush1.msra.mxu0 0.0
    %826 = vmatprep.subr.mxu0 0.0
    %827 = vmatpush1.msra.mxu0 0.0
    %828 = vmatprep.subr.mxu0 0.0
    %829 = vmatpush1.msra.mxu0 0.0
    %830 = vmatprep.subr.mxu0 0.0
    %831 = vmatpush1.msra.mxu0 0.0
    %832 = vmatprep.subr.mxu0 0.0
    %833 = vmatpush1.msra.mxu0 0.0
    %834 = vmatprep.subr.mxu0 0.0
    %835 = vmatpush1.msra.mxu0 0.0
    %836 = vmatprep.mubr.f32.mxu0 0.0
    %837 = vmatmul.mubr.f32.gmra.mrb[0].mxu0 %v445
    %v838 = vpop.f32.mrb[0].mxu0
    %v839 = vadd.f32 %v770, %v838
    %v840 = vpop.f32.mrb[0].mxu0
    %841 = vmatprep.mubr.f32.mxu0 0.0
    %842 = vmatmul.mubr.f32.gmra.mrb[0].mxu0 %v450
    %v843 = vpop.f32.mrb[0].mxu0
    %v844 = vadd.f32 %v770, %v843
    %v845 = vpop.f32.mrb[0].mxu0
    %846 = vmatprep.mubr.f32.mxu0 0.0
    %847 = vmatmul.mubr.f32.gmra.mrb[0].mxu0 %v455
    %v848 = vpop.f32.mrb[0].mxu0
    %v849 = vadd.f32 %v770, %v848
    %v850 = vpop.f32.mrb[0].mxu0
    %851 = vmatprep.mubr.f32.mxu0 0.0
    %852 = vmatmul.mubr.f32.gmra.mrb[0].mxu0 %v460
    %v853 = vpop.f32.mrb[0].mxu0
    %v854 = vadd.f32 %v770, %v853
    %v855 = vpop.f32.mrb[0].mxu0
    %856 = vmatprep.mubr.f32.mxu0 0.0
    %857 = vmatmul.mubr.f32.gmra.mrb[0].mxu0 %v465
    %v858 = vpop.f32.mrb[0].mxu0
    %v859 = vadd.f32 %v770, %v858
    %v860 = vpop.f32.mrb[0].mxu0
    %861 = vmatprep.mubr.f32.mxu0 0.0
    %862 = vmatmul.mubr.f32.gmra.mrb[0].mxu0 %v470
    %v863 = vpop.f32.mrb[0].mxu0
    %v864 = vadd.f32 %v770, %v863
    %v865 = vpop.f32.mrb[0].mxu0
    %866 = vdwg.mxu0
    %v867 = vpack.c.bf16 %v658, %v652
    %v868 = vpack.c.bf16 %v739, %v733
    %v869 = vpack.c.bf16 %v664, %v664
    %v870 = vpack.c.bf16 %v745, %v745
    %v877 = vunpack.c.l.b16 %v473
    %v878 = vunpack.c.l.b16 %v474
    %v879 = vunpack.c.l.b16 %v475
    %v880 = vunpack.c.l.b16 %v476
    %v881 = vunpack.c.l.b16 %v477
    %v882 = vunpack.c.l.b16 %v478
    %v883 = vpack.c.b16 %v878, %v877
    %v884 = vpack.c.b16 %v880, %v879
    %v885 = vpack.c.b16 %v882, %v881
    %vm886 = vcmask 195584
    %v888 = vsel %vm886, %v883, 0
    %v891 = vsel %vm886, %v884, 0
    %v894 = vsel %vm886, %v885, 0
    %vm896 = vcmask 1043456
    %v898 = vsel %vm896, %v869, 0
    %v901 = vsel %vm896, %v870, 0
    %903 = vmatprep.subr.bf16.mxu0 %v868
    %904 = vmatpush1.bf16.msra.mxu0 %v867
    %905 = vmatprep.subr.bf16.mxu0 %v901
    %906 = vmatpush1.bf16.msra.mxu0 %v898
    %907 = vmatprep.subr.bf16.mxu0 0
    %908 = vmatpush1.bf16.msra.mxu0 0
    %909 = vmatprep.subr.bf16.mxu0 0
    %910 = vmatpush1.bf16.msra.mxu0 0
    %911 = vmatprep.subr.bf16.mxu0 0
    %912 = vmatpush1.bf16.msra.mxu0 0
    %913 = vmatprep.subr.bf16.mxu0 0
    %914 = vmatpush1.bf16.msra.mxu0 0
    %915 = vmatprep.subr.bf16.mxu0 0
    %916 = vmatpush1.bf16.msra.mxu0 0
    %917 = vmatprep.subr.bf16.mxu0 0
    %918 = vmatpush1.bf16.msra.mxu0 0
    %919 = vmatprep.subr.bf16.mxu0 0
    %920 = vmatpush1.bf16.msra.mxu0 0
    %921 = vmatprep.subr.bf16.mxu0 0
    %922 = vmatpush1.bf16.msra.mxu0 0
    %923 = vmatprep.subr.bf16.mxu0 0
    %924 = vmatpush1.bf16.msra.mxu0 0
    %925 = vmatprep.subr.bf16.mxu0 0
    %926 = vmatpush1.bf16.msra.mxu0 0
    %927 = vmatprep.subr.bf16.mxu0 0
    %928 = vmatpush1.bf16.msra.mxu0 0
    %929 = vmatprep.subr.bf16.mxu0 0
    %930 = vmatpush1.bf16.msra.mxu0 0
    %931 = vmatprep.subr.bf16.mxu0 0
    %932 = vmatpush1.bf16.msra.mxu0 0
    %933 = vmatprep.subr.bf16.mxu0 0
    %934 = vmatpush1.bf16.msra.mxu0 0
    %935 = vmatprep.mubr.bf16.mxu0 0
    %936 = vmatmul.mubr.bf16.gmra.mrb[0].mxu0 %v888
    %v937 = vpop.f32.mrb[0].mxu0
    %v938 = vadd.f32 0.0, %v937
    %v939 = vpop.f32.mrb[0].mxu0
    %v940 = vadd.f32 0.0, %v939
    %v941 = vpop.f32.mrb[0].mxu0
    %v942 = vadd.f32 0.0, %v941
    %v943 = vpop.f32.mrb[0].mxu0
    %v944 = vadd.f32 0.0, %v943
    %945 = vmatprep.mubr.bf16.mxu0 0
    %946 = vmatmul.mubr.bf16.gmra.mrb[0].mxu0 %v891
    %v947 = vpop.f32.mrb[0].mxu0
    %v948 = vadd.f32 0.0, %v947
    %v949 = vpop.f32.mrb[0].mxu0
    %v950 = vadd.f32 0.0, %v949
    %v951 = vpop.f32.mrb[0].mxu0
    %v952 = vadd.f32 0.0, %v951
    %v953 = vpop.f32.mrb[0].mxu0
    %v954 = vadd.f32 0.0, %v953
    %955 = vmatprep.mubr.bf16.mxu0 0
    %956 = vmatmul.mubr.bf16.gmra.mrb[0].mxu0 %v894
    %v957 = vpop.f32.mrb[0].mxu0
    %v958 = vadd.f32 0.0, %v957
    %v959 = vpop.f32.mrb[0].mxu0
    %v960 = vadd.f32 0.0, %v959
    %v961 = vpop.f32.mrb[0].mxu0
    %v962 = vadd.f32 0.0, %v961
    %v963 = vpop.f32.mrb[0].mxu0
    %v964 = vadd.f32 0.0, %v963
    %965 = vdwg.mxu0
    %v966 = vpack.c.bf16 %v741, %v735
    %v967 = vpack.c.bf16 %v747, %v747
    %v974 = vunpack.c.l.b16 %v479
    %v975 = vunpack.c.l.b16 %v480
    %v976 = vunpack.c.l.b16 %v481
    %v977 = vunpack.c.l.b16 %v482
    %v978 = vunpack.c.l.b16 %v483
    %v979 = vunpack.c.l.b16 %v484
    %v980 = vpack.c.b16 %v975, %v974
    %v981 = vpack.c.b16 %v977, %v976
    %v982 = vpack.c.b16 %v979, %v978
    %v984 = vsel %vm886, %v980, 0
    %v987 = vsel %vm886, %v981, 0
    %v990 = vsel %vm886, %v982, 0
    %v993 = vsel %vm896, %v967, 0
    %995 = vmatprep.subr.bf16.mxu0 0
    %996 = vmatpush1.bf16.msra.mxu0 %v966
    %997 = vmatprep.subr.bf16.mxu0 0
    %998 = vmatpush1.bf16.msra.mxu0 %v993
    %999 = vmatprep.subr.bf16.mxu0 0
    %1000 = vmatpush1.bf16.msra.mxu0 0
    %1001 = vmatprep.subr.bf16.mxu0 0
    %1002 = vmatpush1.bf16.msra.mxu0 0
    %1003 = vmatprep.subr.bf16.mxu0 0
    %1004 = vmatpush1.bf16.msra.mxu0 0
    %1005 = vmatprep.subr.bf16.mxu0 0
    %1006 = vmatpush1.bf16.msra.mxu0 0
    %1007 = vmatprep.subr.bf16.mxu0 0
    %1008 = vmatpush1.bf16.msra.mxu0 0
    %1009 = vmatprep.subr.bf16.mxu0 0
    %1010 = vmatpush1.bf16.msra.mxu0 0
    %1011 = vmatprep.subr.bf16.mxu0 0
    %1012 = vmatpush1.bf16.msra.mxu0 0
    %1013 = vmatprep.subr.bf16.mxu0 0
    %1014 = vmatpush1.bf16.msra.mxu0 0
    %1015 = vmatprep.subr.bf16.mxu0 0
    %1016 = vmatpush1.bf16.msra.mxu0 0
    %1017 = vmatprep.subr.bf16.mxu0 0
    %1018 = vmatpush1.bf16.msra.mxu0 0
    %1019 = vmatprep.subr.bf16.mxu0 0
    %1020 = vmatpush1.bf16.msra.mxu0 0
    %1021 = vmatprep.subr.bf16.mxu0 0
    %1022 = vmatpush1.bf16.msra.mxu0 0
    %1023 = vmatprep.subr.bf16.mxu0 0
    %1024 = vmatpush1.bf16.msra.mxu0 0
    %1025 = vmatprep.subr.bf16.mxu0 0
    %1026 = vmatpush1.bf16.msra.mxu0 0
    %1027 = vmatprep.mubr.bf16.mxu0 0
    %1028 = vmatmul.mubr.bf16.gmra.mrb[0].mxu0 %v984
    %v1029 = vpop.f32.mrb[0].mxu0
    %v1030 = vadd.f32 0.0, %v1029
    %v1031 = vpop.f32.mrb[0].mxu0
    %v1032 = vpop.f32.mrb[0].mxu0
    %v1033 = vadd.f32 0.0, %v1032
    %v1034 = vpop.f32.mrb[0].mxu0
    %1035 = vmatprep.mubr.bf16.mxu0 0
    %1036 = vmatmul.mubr.bf16.gmra.mrb[0].mxu0 %v987
    %v1037 = vpop.f32.mrb[0].mxu0
    %v1038 = vadd.f32 0.0, %v1037
    %v1039 = vpop.f32.mrb[0].mxu0
    %v1040 = vpop.f32.mrb[0].mxu0
    %v1041 = vadd.f32 0.0, %v1040
    %v1042 = vpop.f32.mrb[0].mxu0
    %1043 = vmatprep.mubr.bf16.mxu0 0
    %1044 = vmatmul.mubr.bf16.gmra.mrb[0].mxu0 %v990
    %v1045 = vpop.f32.mrb[0].mxu0
    %v1046 = vadd.f32 0.0, %v1045
    %v1047 = vpop.f32.mrb[0].mxu0
    %v1048 = vpop.f32.mrb[0].mxu0
    %v1049 = vadd.f32 0.0, %v1048
    %v1050 = vpop.f32.mrb[0].mxu0
    %1051 = vdwg.mxu0
    %v1052 = vadd.f32 %v839, %v940
    %v1053 = vadd.f32 %v844, %v944
    %v1054 = vadd.f32 %v849, %v950
    %v1055 = vadd.f32 %v854, %v954
    %v1056 = vadd.f32 %v859, %v960
    %v1057 = vadd.f32 %v864, %v964
    %v1058 = vadd.f32 %v1052, %v1030
    %v1059 = vadd.f32 %v1053, %v1033
    %v1060 = vadd.f32 %v1054, %v1038
    %v1061 = vadd.f32 %v1055, %v1041
    %v1062 = vadd.f32 %v1056, %v1046
    %v1063 = vadd.f32 %v1057, %v1049
    %v1064 = vxor.u32 %v1058, 2147483648
    %v1065 = vxor.u32 %v1059, 2147483648
    %v1066 = vxor.u32 %v1060, 2147483648
    %v1067 = vxor.u32 %v1061, 2147483648
    %v1068 = vxor.u32 %v1062, 2147483648
    %v1069 = vxor.u32 %v1063, 2147483648
    %v1070 = vmul.f32 %v1064, 1.442695
    %v1071 = vpow.pop %v1070
    %v1072 = vmul.f32 %v1065, 1.442695
    %v1073 = vpow.pop %v1072
    %v1074 = vmul.f32 %v1066, 1.442695
    %v1075 = vpow.pop %v1074
    %v1076 = vmul.f32 %v1067, 1.442695
    %v1077 = vpow.pop %v1076
    %v1078 = vmul.f32 %v1068, 1.442695
    %v1079 = vpow.pop %v1078
    %v1080 = vmul.f32 %v1069, 1.442695
    %v1081 = vpow.pop %v1080
    %v1082 = vadd.f32 %v1071, 1.0
    %v1083 = vadd.f32 %v1073, 1.0
    %v1084 = vadd.f32 %v1075, 1.0
    %v1085 = vadd.f32 %v1077, 1.0
    %v1086 = vadd.f32 %v1079, 1.0
    %v1087 = vadd.f32 %v1081, 1.0
    %v1088 = vrcp.pop %v1082
    %v1089 = vmul.f32 1.0, %v1088
    %v1090 = vrcp.pop %v1083
    %v1091 = vmul.f32 1.0, %v1090
    %v1092 = vrcp.pop %v1084
    %v1093 = vmul.f32 1.0, %v1092
    %v1094 = vrcp.pop %v1085
    %v1095 = vmul.f32 1.0, %v1094
    %v1096 = vrcp.pop %v1086
    %v1097 = vmul.f32 1.0, %v1096
    %v1098 = vrcp.pop %v1087
    %v1099 = vmul.f32 1.0, %v1098
    %v1100 = vmul.f32 %v1089, %v938
    %v1101 = vmul.f32 %v1091, %v942
    %v1102 = vmul.f32 %v1093, %v948
    %v1103 = vmul.f32 %v1095, %v952
    %v1104 = vmul.f32 %v1097, %v958
    %v1105 = vmul.f32 %v1099, %v962
    %v1106 = vpack.c.bf16 %v1101, %v1100
    %v1107 = vpack.c.bf16 %v1091, %v1089
    %v1108 = vpack.c.bf16 %v1103, %v1102
    %v1109 = vpack.c.bf16 %v1095, %v1093
    %v1110 = vpack.c.bf16 %v1105, %v1104
    %v1111 = vpack.c.bf16 %v1099, %v1097
    %v1115 = vunpack.c.l.b16 %v485
    %v1116 = vunpack.c.l.b16 %v486
    %v1117 = vunpack.c.l.b16 %v487
    %v1118 = vpack.c.b16 %v1116, %v1115
    %v1119 = vpack.c.b16 %v1117, %v1117
    %vm1120 = vcmask 392192
    %v1122 = vsel %vm1120, %v1118, 0
    %v1125 = vsel %vm1120, %v1119, 0
    %1127 = vmatprep.subr.bf16.mxu0 %v1107
    %1128 = vmatpush1.bf16.msra.mxu0 %v1106
    %1129 = vmatprep.subr.bf16.mxu0 %v1109
    %1130 = vmatpush1.bf16.msra.mxu0 %v1108
    %1131 = vmatprep.subr.bf16.mxu0 %v1111
    %1132 = vmatpush1.bf16.msra.mxu0 %v1110
    %1133 = vmatprep.subr.bf16.mxu0 0
    %1134 = vmatpush1.bf16.msra.mxu0 0
    %1135 = vmatprep.subr.bf16.mxu0 0
    %1136 = vmatpush1.bf16.msra.mxu0 0
    %1137 = vmatprep.subr.bf16.mxu0 0
    %1138 = vmatpush1.bf16.msra.mxu0 0
    %1139 = vmatprep.subr.bf16.mxu0 0
    %1140 = vmatpush1.bf16.msra.mxu0 0
    %1141 = vmatprep.subr.bf16.mxu0 0
    %1142 = vmatpush1.bf16.msra.mxu0 0
    %1143 = vmatprep.subr.bf16.mxu0 0
    %1144 = vmatpush1.bf16.msra.mxu0 0
    %1145 = vmatprep.subr.bf16.mxu0 0
    %1146 = vmatpush1.bf16.msra.mxu0 0
    %1147 = vmatprep.subr.bf16.mxu0 0
    %1148 = vmatpush1.bf16.msra.mxu0 0
    %1149 = vmatprep.subr.bf16.mxu0 0
    %1150 = vmatpush1.bf16.msra.mxu0 0
    %1151 = vmatprep.subr.bf16.mxu0 0
    %1152 = vmatpush1.bf16.msra.mxu0 0
    %1153 = vmatprep.subr.bf16.mxu0 0
    %1154 = vmatpush1.bf16.msra.mxu0 0
    %1155 = vmatprep.subr.bf16.mxu0 0
    %1156 = vmatpush1.bf16.msra.mxu0 0
    %1157 = vmatprep.subr.bf16.mxu0 0
    %1158 = vmatpush1.bf16.msra.mxu0 0
    %1159 = vmatprep.mubr.bf16.mxu0 0
    %1160 = vmatmul.mubr.bf16.gmra.mrb[0].mxu0 %v1122
    %v1161 = vpop.f32.mrb[0].mxu0
    %v1162 = vadd.f32 0.0, %v1161
    %v1163 = vpop.f32.mrb[0].mxu0
    %v1164 = vadd.f32 0.0, %v1163
    %v1165 = vpop.f32.mrb[0].mxu0
    %v1166 = vadd.f32 0.0, %v1165
    %v1167 = vpop.f32.mrb[0].mxu0
    %v1168 = vadd.f32 0.0, %v1167
    %1169 = vmatprep.mubr.bf16.mxu0 0
    %1170 = vmatmul.mubr.bf16.gmra.mrb[0].mxu0 %v1125
    %v1171 = vpop.f32.mrb[0].mxu0
    %v1172 = vadd.f32 0.0, %v1171
    %v1173 = vpop.f32.mrb[0].mxu0
    %v1174 = vadd.f32 0.0, %v1173
    %v1175 = vpop.f32.mrb[0].mxu0
    %v1176 = vpop.f32.mrb[0].mxu0
    %1177 = vdwg.mxu0
    %v1178 = vadd.f32 %v1164, 1e-06
    %v1179 = vadd.f32 %v1168, 1e-06
    %v1180 = vadd.f32 %v1174, 1e-06
    %v1181 = vrcp.pop %v1178
    %v1182 = vrcp.pop %v1179
    %v1183 = vrcp.pop %v1180
    %v1184 = vmul.f32 %v1162, %v1181
    %v1185 = vmul.f32 %v1166, %v1182
    %v1186 = vmul.f32 %v1172, %v1183
    %v1187 = vadd.f32 %v650, %v1184
    %v1188 = vadd.f32 %v656, %v1185
    %v1189 = vadd.f32 %v662, %v1186
    %1191 = vset.pattern.permute.xlu0 0
    %1192 = vperm.xlu0 %1191, %v488
    %v1193 = vpop.permute.xlu0 %1192
    %1196 = vset.pattern.permute.xlu0 0
    %1197 = vperm.xlu0 %1196, %v489
    %v1198 = vpop.permute.xlu0 %1197
    %1201 = vset.pattern.permute.xlu0 0
    %1202 = vperm.xlu0 %1201, %v490
    %v1203 = vpop.permute.xlu0 %1202
    %v1205 = vmul.f32 %v1187, %v1193
    %v1206 = vmul.f32 %v1188, %v1198
    %v1207 = vmul.f32 %v1189, %v1203
    %1209 = vset.pattern.permute.xlu0 0
    %1210 = vperm.xlu0 %1209, %v491
    %v1211 = vpop.permute.xlu0 %1210
    %1214 = vset.pattern.permute.xlu0 0
    %1215 = vperm.xlu0 %1214, %v492
    %v1216 = vpop.permute.xlu0 %1215
    %1219 = vset.pattern.permute.xlu0 0
    %1220 = vperm.xlu0 %1219, %v493
    %v1221 = vpop.permute.xlu0 %1220
    %1224 = vset.pattern.permute.xlu0 0
    %1225 = vperm.xlu0 %1224, %v494
    %v1226 = vpop.permute.xlu0 %1225
    %1229 = vset.pattern.permute.xlu0 0
    %1230 = vperm.xlu0 %1229, %v495
    %v1231 = vpop.permute.xlu0 %1230
    %1234 = vset.pattern.permute.xlu0 0
    %1235 = vperm.xlu0 %1234, %v496
    %v1236 = vpop.permute.xlu0 %1235
    %v1238 = vmul.f32 %v1058, %v1211
    %v1239 = vmul.f32 %v1059, %v1216
    %v1240 = vmul.f32 %v1060, %v1221
    %v1241 = vmul.f32 %v1061, %v1226
    %v1242 = vmul.f32 %v1062, %v1231
    %v1243 = vmul.f32 %v1063, %v1236
    %v1244 = vld [vmem:[%s16] sm:$0x3]
    %v1245 = vld [vmem:[%s17] sm:$0x3]
    %v1246 = vlaneseq
    %v1247 = vshrl.u32 %v1246, 7
    %v1248 = vsub.s32 0, %v1247
    %v1249 = vrot.slane %v1244, %v1248
    %v1250 = vmul.f32 %v1205, %v1249
    %v1251 = vmul.f32 %v1206, %v1249
    %v1252 = vmul.f32 %v1207, %v1249
    %v1253 = vlaneseq
    %v1254 = vshrl.u32 %v1253, 7
    %v1255 = vsub.s32 1, %v1254
    %v1256 = vrot.slane %v1244, %v1255
    %v1257 = vadd.f32 %v1250, %v1256
    %v1258 = vadd.f32 %v1251, %v1256
    %v1259 = vadd.f32 %v1252, %v1256
    %v1260 = vlaneseq
    %v1261 = vshrl.u32 %v1260, 7
    %v1262 = vsub.s32 0, %v1261
    %v1263 = vrot.slane %v1245, %v1262
    %v1264 = vmul.f32 %v1238, %v1263
    %v1265 = vmul.f32 %v1239, %v1263
    %v1266 = vmul.f32 %v1240, %v1263
    %v1267 = vmul.f32 %v1241, %v1263
    %v1268 = vmul.f32 %v1242, %v1263
    %v1269 = vmul.f32 %v1243, %v1263
    %v1270 = vlaneseq
    %v1271 = vshrl.u32 %v1270, 7
    %v1272 = vsub.s32 1, %v1271
    %v1273 = vrot.slane %v1245, %v1272
    %v1274 = vadd.f32 %v1264, %v1273
    %v1275 = vadd.f32 %v1265, %v1273
    %v1276 = vadd.f32 %v1266, %v1273
    %v1277 = vadd.f32 %v1267, %v1273
    %v1278 = vadd.f32 %v1268, %v1273
    %v1279 = vadd.f32 %v1269, %v1273
    %v1280 = vmax.f32 %v1257, 0.0
    %v1281 = vmax.f32 %v1258, 0.0
    %v1282 = vmax.f32 %v1259, 0.0
    %v1283 = vadd.f32 %v336, %v1280
    %v1284 = vadd.f32 %v341, %v1281
    %v1285 = vadd.f32 %v346, %v1282
    %v1286 = vmax.f32 %v1274, 0.0
    %v1287 = vmax.f32 %v1275, 0.0
    %v1288 = vmax.f32 %v1276, 0.0
    %v1289 = vmax.f32 %v1277, 0.0
    %v1290 = vmax.f32 %v1278, 0.0
    %v1291 = vmax.f32 %v1279, 0.0
    %v1292 = vadd.f32 %v445, %v1286
    %v1293 = vadd.f32 %v450, %v1287
    %v1294 = vadd.f32 %v455, %v1288
    %v1295 = vadd.f32 %v460, %v1289
    %v1296 = vadd.f32 %v465, %v1290
    %v1297 = vadd.f32 %v470, %v1291
    %s1298 = scalar_lea.vmem [#allocation11], 512
    %v1299 = vld [vmem:[%s1298] sm:$0xff]
    %v1300 = vld [vmem:[%s1298 + $0x8] sm:$0xff]
    %v1301 = vld [vmem:[%s1298 + $0x10] sm:$0xff]
    %v1302 = vld [vmem:[%s1298 + $0x18] sm:$0xff]
    %v1303 = vld [vmem:[%s1298 + $0x20] sm:$0xff]
    %v1304 = vld [vmem:[%s1298 + $0x28] sm:$0xff]
    %v1305 = vld [vmem:[%s1298 + $0x30] sm:$0xff]
    %v1306 = vld [vmem:[%s1298 + $0x38] sm:$0xff]
    %v1307 = vld [vmem:[%s1298 + $0x40] sm:$0xff]
    %v1308 = vld [vmem:[%s1298 + $0x48] sm:$0xff]
    %v1309 = vld [vmem:[%s1298 + $0x50] sm:$0xff]
    %v1310 = vld [vmem:[%s1298 + $0x58] sm:$0xff]
    %v1311 = vld [vmem:[%s1298 + $0x60] sm:$0xff]
    %v1312 = vld [vmem:[%s1298 + $0x68] sm:$0xff]
    %v1313 = vld [vmem:[%s1298 + $0x70] sm:$0xff]
    %v1314 = vld [vmem:[%s1298 + $0x78] sm:$0xff]
    %v1315 = vld [vmem:[%s1298 + $0x80] sm:$0xff]
    %v1316 = vld [vmem:[%s1298 + $0x88] sm:$0xff]
    %v1317 = vld [vmem:[%s1298 + $0x90] sm:$0xff]
    %v1318 = vld [vmem:[%s1298 + $0x98] sm:$0xff]
    %v1319 = vld [vmem:[%s1298 + $0xa0] sm:$0xff]
    %v1320 = vld [vmem:[%s1298 + $0xa8] sm:$0xff]
    %v1321 = vld [vmem:[%s1298 + $0xb0] sm:$0xff]
    %v1322 = vld [vmem:[%s1298 + $0xb8] sm:$0xff]
    %v1323 = vld [vmem:[%s1298 + $0xc0] sm:$0xff]
    %v1324 = vld [vmem:[%s1298 + $0xc8] sm:$0xff]
    %v1325 = vld [vmem:[%s1298 + $0xd0] sm:$0xff]
    %v1326 = vld [vmem:[%s1298 + $0xd8] sm:$0xff]
    %v1327 = vld [vmem:[%s1298 + $0xe0] sm:$0xff]
    %v1328 = vld [vmem:[%s1298 + $0xe8] sm:$0xff]
    %v1329 = vld [vmem:[%s1298 + $0xf0] sm:$0xff]
    %v1330 = vld [vmem:[%s1298 + $0xf8] sm:$0xff]
    %v1331 = vld [vmem:[%s1298 + $0x100] sm:$0xff]
    %v1332 = vld [vmem:[%s1298 + $0x108] sm:$0xff]
    %v1333 = vld [vmem:[%s1298 + $0x110] sm:$0xff]
    %v1334 = vld [vmem:[%s1298 + $0x118] sm:$0xff]
    %v1335 = vld [vmem:[%s1298 + $0x120] sm:$0xff]
    %v1336 = vld [vmem:[%s1298 + $0x128] sm:$0xff]
    %v1337 = vld [vmem:[%s1298 + $0x130] sm:$0xff]
    %v1338 = vld [vmem:[%s1298 + $0x138] sm:$0xff]
    %v1339 = vld [vmem:[%s1298 + $0x140] sm:$0xff]
    %v1340 = vld [vmem:[%s1298 + $0x148] sm:$0xff]
    %v1341 = vld [vmem:[%s1298 + $0x150] sm:$0xff]
    %v1342 = vld [vmem:[%s1298 + $0x158] sm:$0xff]
    %v1343 = vld [vmem:[%s1298 + $0x160] sm:$0xff]
    %v1344 = vld [vmem:[%s1298 + $0x168] sm:$0xff]
    %v1345 = vld [vmem:[%s1298 + $0x170] sm:$0xff]
    %v1346 = vld [vmem:[%s1298 + $0x178] sm:$0xff]
    %v1347 = vld [vmem:[%s1298 + $0x180] sm:$0xff]
    %v1348 = vld [vmem:[%s1298 + $0x188] sm:$0xff]
    %v1349 = vld [vmem:[%s1298 + $0x190] sm:$0xff]
    %v1350 = vld [vmem:[%s1298 + $0x198] sm:$0xff]
    %v1351 = vld [vmem:[%s1298 + $0x1a0] sm:$0xff]
    %v1352 = vld [vmem:[%s1298 + $0x1a8] sm:$0xff]
    %v1353 = vld [vmem:[%s1298 + $0x1b0] sm:$0xff]
    %v1354 = vld [vmem:[%s1298 + $0x1b8] sm:$0xff]
    %v1355 = vld [vmem:[%s1298 + $0x1c0] sm:$0xff]
    %v1356 = vld [vmem:[%s1298 + $0x1c8] sm:$0xff]
    %v1357 = vld [vmem:[%s1298 + $0x1d0] sm:$0xff]
    %v1358 = vld [vmem:[%s1298 + $0x1d8] sm:$0xff]
    %v1359 = vld [vmem:[%s1298 + $0x1e0] sm:$0xff]
    %v1360 = vld [vmem:[%s1298 + $0x1e8] sm:$0xff]
    %v1361 = vld [vmem:[%s1298 + $0x1f0] sm:$0xff]
    %v1362 = vld [vmem:[%s1298 + $0x1f8] sm:$0xff]
    %s1363 = scalar_lea.vmem %s13, 4
    %v1364 = vld [vmem:[%s1363] sm:$0xf]
    %v1366 = vlaneseq
    %v1367 = vshrl.u32 %v1366, 7
    %v1368 = vsub.s32 0, %v1367
    %v1369 = vrot.slane %v1364, %v1368
    %v1370 = vlaneseq
    %v1371 = vshrl.u32 %v1370, 7
    %v1372 = vsub.s32 1, %v1371
    %v1373 = vrot.slane %v1364, %v1372
    %v1374 = vlaneseq
    %v1375 = vshrl.u32 %v1374, 7
    %v1376 = vsub.s32 2, %v1375
    %v1377 = vrot.slane %v1364, %v1376
    %v1378 = vlaneseq
    %v1379 = vshrl.u32 %v1378, 7
    %v1380 = vsub.s32 3, %v1379
    %v1381 = vrot.slane %v1364, %v1380
    %1386 = vmatprep.subr.mxu0 %v1300
    %1387 = vmatpush1.msra.mxu0 %v1299
    %1388 = vmatprep.subr.mxu0 %v1304
    %1389 = vmatpush1.msra.mxu0 %v1303
    %1390 = vmatprep.subr.mxu0 %v1308
    %1391 = vmatpush1.msra.mxu0 %v1307
    %1392 = vmatprep.subr.mxu0 %v1312
    %1393 = vmatpush1.msra.mxu0 %v1311
    %1394 = vmatprep.subr.mxu0 %v1316
    %1395 = vmatpush1.msra.mxu0 %v1315
    %1396 = vmatprep.subr.mxu0 %v1320
    %1397 = vmatpush1.msra.mxu0 %v1319
    %1398 = vmatprep.subr.mxu0 %v1324
    %1399 = vmatpush1.msra.mxu0 %v1323
    %1400 = vmatprep.subr.mxu0 %v1328
    %1401 = vmatpush1.msra.mxu0 %v1327
    %1402 = vmatprep.subr.mxu0 %v1332
    %1403 = vmatpush1.msra.mxu0 %v1331
    %1404 = vmatprep.subr.mxu0 %v1336
    %1405 = vmatpush1.msra.mxu0 %v1335
    %1406 = vmatprep.subr.mxu0 %v1340
    %1407 = vmatpush1.msra.mxu0 %v1339
    %1408 = vmatprep.subr.mxu0 %v1344
    %1409 = vmatpush1.msra.mxu0 %v1343
    %1410 = vmatprep.subr.mxu0 %v1348
    %1411 = vmatpush1.msra.mxu0 %v1347
    %1412 = vmatprep.subr.mxu0 %v1352
    %1413 = vmatpush1.msra.mxu0 %v1351
    %1414 = vmatprep.subr.mxu0 %v1356
    %1415 = vmatpush1.msra.mxu0 %v1355
    %1416 = vmatprep.subr.mxu0 %v1360
    %1417 = vmatpush1.msra.mxu0 %v1359
    %1418 = vmatprep.subr.mxu0 0.0
    %1419 = vmatpush1.msra.mxu0 0.0
    %1420 = vmatprep.subr.mxu0 0.0
    %1421 = vmatpush1.msra.mxu0 0.0
    %1422 = vmatprep.subr.mxu0 0.0
    %1423 = vmatpush1.msra.mxu0 0.0
    %1424 = vmatprep.subr.mxu0 0.0
    %1425 = vmatpush1.msra.mxu0 0.0
    %1426 = vmatprep.subr.mxu0 0.0
    %1427 = vmatpush1.msra.mxu0 0.0
    %1428 = vmatprep.subr.mxu0 0.0
    %1429 = vmatpush1.msra.mxu0 0.0
    %1430 = vmatprep.subr.mxu0 0.0
    %1431 = vmatpush1.msra.mxu0 0.0
    %1432 = vmatprep.subr.mxu0 0.0
    %1433 = vmatpush1.msra.mxu0 0.0
    %1434 = vmatprep.subr.mxu0 0.0
    %1435 = vmatpush1.msra.mxu0 0.0
    %1436 = vmatprep.subr.mxu0 0.0
    %1437 = vmatpush1.msra.mxu0 0.0
    %1438 = vmatprep.subr.mxu0 0.0
    %1439 = vmatpush1.msra.mxu0 0.0
    %1440 = vmatprep.subr.mxu0 0.0
    %1441 = vmatpush1.msra.mxu0 0.0
    %1442 = vmatprep.subr.mxu0 0.0
    %1443 = vmatpush1.msra.mxu0 0.0
    %1444 = vmatprep.subr.mxu0 0.0
    %1445 = vmatpush1.msra.mxu0 0.0
    %1446 = vmatprep.subr.mxu0 0.0
    %1447 = vmatpush1.msra.mxu0 0.0
    %1448 = vmatprep.subr.mxu0 0.0
    %1449 = vmatpush1.msra.mxu0 0.0
    %1450 = vmatprep.mubr.f32.mxu0 0.0
    %1451 = vmatmul.mubr.f32.gmra.mrb[0].mxu0 %v1283
    %v1452 = vpop.f32.mrb[0].mxu0
    %v1453 = vadd.f32 %v1369, %v1452
    %v1454 = vpop.f32.mrb[0].mxu0
    %v1455 = vadd.f32 %v1373, %v1454
    %1456 = vmatprep.mubr.f32.mxu0 0.0
    %1457 = vmatmul.mubr.f32.gmra.mrb[0].mxu0 %v1284
    %v1458 = vpop.f32.mrb[0].mxu0
    %v1459 = vadd.f32 %v1369, %v1458
    %v1460 = vpop.f32.mrb[0].mxu0
    %v1461 = vadd.f32 %v1373, %v1460
    %1462 = vmatprep.mubr.f32.mxu0 0.0
    %1463 = vmatmul.mubr.f32.gmra.mrb[0].mxu0 %v1285
    %v1464 = vpop.f32.mrb[0].mxu0
    %v1465 = vadd.f32 %v1369, %v1464
    %v1466 = vpop.f32.mrb[0].mxu0
    %v1467 = vadd.f32 %v1373, %v1466
    %1468 = vdwg.mxu0
    %1469 = vmatprep.subr.mxu0 %v1302
    %1470 = vmatpush1.msra.mxu0 %v1301
    %1471 = vmatprep.subr.mxu0 %v1306
    %1472 = vmatpush1.msra.mxu0 %v1305
    %1473 = vmatprep.subr.mxu0 %v1310
    %1474 = vmatpush1.msra.mxu0 %v1309
    %1475 = vmatprep.subr.mxu0 %v1314
    %1476 = vmatpush1.msra.mxu0 %v1313
    %1477 = vmatprep.subr.mxu0 %v1318
    %1478 = vmatpush1.msra.mxu0 %v1317
    %1479 = vmatprep.subr.mxu0 %v1322
    %1480 = vmatpush1.msra.mxu0 %v1321
    %1481 = vmatprep.subr.mxu0 %v1326
    %1482 = vmatpush1.msra.mxu0 %v1325
    %1483 = vmatprep.subr.mxu0 %v1330
    %1484 = vmatpush1.msra.mxu0 %v1329
    %1485 = vmatprep.subr.mxu0 %v1334
    %1486 = vmatpush1.msra.mxu0 %v1333
    %1487 = vmatprep.subr.mxu0 %v1338
    %1488 = vmatpush1.msra.mxu0 %v1337
    %1489 = vmatprep.subr.mxu0 %v1342
    %1490 = vmatpush1.msra.mxu0 %v1341
    %1491 = vmatprep.subr.mxu0 %v1346
    %1492 = vmatpush1.msra.mxu0 %v1345
    %1493 = vmatprep.subr.mxu0 %v1350
    %1494 = vmatpush1.msra.mxu0 %v1349
    %1495 = vmatprep.subr.mxu0 %v1354
    %1496 = vmatpush1.msra.mxu0 %v1353
    %1497 = vmatprep.subr.mxu0 %v1358
    %1498 = vmatpush1.msra.mxu0 %v1357
    %1499 = vmatprep.subr.mxu0 %v1362
    %1500 = vmatpush1.msra.mxu0 %v1361
    %1501 = vmatprep.subr.mxu0 0.0
    %1502 = vmatpush1.msra.mxu0 0.0
    %1503 = vmatprep.subr.mxu0 0.0
    %1504 = vmatpush1.msra.mxu0 0.0
    %1505 = vmatprep.subr.mxu0 0.0
    %1506 = vmatpush1.msra.mxu0 0.0
    %1507 = vmatprep.subr.mxu0 0.0
    %1508 = vmatpush1.msra.mxu0 0.0
    %1509 = vmatprep.subr.mxu0 0.0
    %1510 = vmatpush1.msra.mxu0 0.0
    %1511 = vmatprep.subr.mxu0 0.0
    %1512 = vmatpush1.msra.mxu0 0.0
    %1513 = vmatprep.subr.mxu0 0.0
    %1514 = vmatpush1.msra.mxu0 0.0
    %1515 = vmatprep.subr.mxu0 0.0
    %1516 = vmatpush1.msra.mxu0 0.0
    %1517 = vmatprep.subr.mxu0 0.0
    %1518 = vmatpush1.msra.mxu0 0.0
    %1519 = vmatprep.subr.mxu0 0.0
    %1520 = vmatpush1.msra.mxu0 0.0
    %1521 = vmatprep.subr.mxu0 0.0
    %1522 = vmatpush1.msra.mxu0 0.0
    %1523 = vmatprep.subr.mxu0 0.0
    %1524 = vmatpush1.msra.mxu0 0.0
    %1525 = vmatprep.subr.mxu0 0.0
    %1526 = vmatpush1.msra.mxu0 0.0
    %1527 = vmatprep.subr.mxu0 0.0
    %1528 = vmatpush1.msra.mxu0 0.0
    %1529 = vmatprep.subr.mxu0 0.0
    %1530 = vmatpush1.msra.mxu0 0.0
    %1531 = vmatprep.subr.mxu0 0.0
    %1532 = vmatpush1.msra.mxu0 0.0
    %1533 = vmatprep.mubr.f32.mxu0 0.0
    %1534 = vmatmul.mubr.f32.gmra.mrb[0].mxu0 %v1283
    %v1535 = vpop.f32.mrb[0].mxu0
    %v1536 = vadd.f32 %v1377, %v1535
    %v1537 = vpop.f32.mrb[0].mxu0
    %v1538 = vadd.f32 %v1381, %v1537
    %1539 = vmatprep.mubr.f32.mxu0 0.0
    %1540 = vmatmul.mubr.f32.gmra.mrb[0].mxu0 %v1284
    %v1541 = vpop.f32.mrb[0].mxu0
    %v1542 = vadd.f32 %v1377, %v1541
    %v1543 = vpop.f32.mrb[0].mxu0
    %v1544 = vadd.f32 %v1381, %v1543
    %1545 = vmatprep.mubr.f32.mxu0 0.0
    %1546 = vmatmul.mubr.f32.gmra.mrb[0].mxu0 %v1285
    %v1547 = vpop.f32.mrb[0].mxu0
    %v1548 = vadd.f32 %v1377, %v1547
    %v1549 = vpop.f32.mrb[0].mxu0
    %v1550 = vadd.f32 %v1381, %v1549
    %1551 = vdwg.mxu0
    %s1552 = scalar_lea.vmem [#allocation13], 128
    %v1553 = vld [vmem:[%s1552] sm:$0xff]
    %v1554 = vld [vmem:[%s1552 + $0x8] sm:$0xff]
    %v1555 = vld [vmem:[%s1552 + $0x10] sm:$0xff]
    %v1556 = vld [vmem:[%s1552 + $0x18] sm:$0xff]
    %v1557 = vld [vmem:[%s1552 + $0x20] sm:$0xff]
    %v1558 = vld [vmem:[%s1552 + $0x28] sm:$0xff]
    %v1559 = vld [vmem:[%s1552 + $0x30] sm:$0xff]
    %v1560 = vld [vmem:[%s1552 + $0x38] sm:$0xff]
    %v1561 = vld [vmem:[%s1552 + $0x40] sm:$0xff]
    %v1562 = vld [vmem:[%s1552 + $0x48] sm:$0xff]
    %v1563 = vld [vmem:[%s1552 + $0x50] sm:$0xff]
    %v1564 = vld [vmem:[%s1552 + $0x58] sm:$0xff]
    %v1565 = vld [vmem:[%s1552 + $0x60] sm:$0xff]
    %v1566 = vld [vmem:[%s1552 + $0x68] sm:$0xff]
    %v1567 = vld [vmem:[%s1552 + $0x70] sm:$0xff]
    %v1568 = vld [vmem:[%s1552 + $0x78] sm:$0xff]
    %s1569 = scalar_lea.vmem [#allocation14], 1
    %v1570 = vld [vmem:[%s1569] sm:$0x1]
    %v1572 = vlaneseq
    %v1573 = vshrl.u32 %v1572, 7
    %v1574 = vsub.s32 0, %v1573
    %v1575 = vrot.slane %v1570, %v1574
    %1577 = vmatprep.subr.mxu0 0.0
    %1578 = vmatpush1.msra.mxu0 %v1553
    %1579 = vmatprep.subr.mxu0 0.0
    %1580 = vmatpush1.msra.mxu0 %v1554
    %1581 = vmatprep.subr.mxu0 0.0
    %1582 = vmatpush1.msra.mxu0 %v1555
    %1583 = vmatprep.subr.mxu0 0.0
    %1584 = vmatpush1.msra.mxu0 %v1556
    %1585 = vmatprep.subr.mxu0 0.0
    %1586 = vmatpush1.msra.mxu0 %v1557
    %1587 = vmatprep.subr.mxu0 0.0
    %1588 = vmatpush1.msra.mxu0 %v1558
    %1589 = vmatprep.subr.mxu0 0.0
    %1590 = vmatpush1.msra.mxu0 %v1559
    %1591 = vmatprep.subr.mxu0 0.0
    %1592 = vmatpush1.msra.mxu0 %v1560
    %1593 = vmatprep.subr.mxu0 0.0
    %1594 = vmatpush1.msra.mxu0 %v1561
    %1595 = vmatprep.subr.mxu0 0.0
    %1596 = vmatpush1.msra.mxu0 %v1562
    %1597 = vmatprep.subr.mxu0 0.0
    %1598 = vmatpush1.msra.mxu0 %v1563
    %1599 = vmatprep.subr.mxu0 0.0
    %1600 = vmatpush1.msra.mxu0 %v1564
    %1601 = vmatprep.subr.mxu0 0.0
    %1602 = vmatpush1.msra.mxu0 %v1565
    %1603 = vmatprep.subr.mxu0 0.0
    %1604 = vmatpush1.msra.mxu0 %v1566
    %1605 = vmatprep.subr.mxu0 0.0
    %1606 = vmatpush1.msra.mxu0 %v1567
    %1607 = vmatprep.subr.mxu0 0.0
    %1608 = vmatpush1.msra.mxu0 %v1568
    %1609 = vmatprep.subr.mxu0 0.0
    %1610 = vmatpush1.msra.mxu0 0.0
    %1611 = vmatprep.subr.mxu0 0.0
    %1612 = vmatpush1.msra.mxu0 0.0
    %1613 = vmatprep.subr.mxu0 0.0
    %1614 = vmatpush1.msra.mxu0 0.0
    %1615 = vmatprep.subr.mxu0 0.0
    %1616 = vmatpush1.msra.mxu0 0.0
    %1617 = vmatprep.subr.mxu0 0.0
    %1618 = vmatpush1.msra.mxu0 0.0
    %1619 = vmatprep.subr.mxu0 0.0
    %1620 = vmatpush1.msra.mxu0 0.0
    %1621 = vmatprep.subr.mxu0 0.0
    %1622 = vmatpush1.msra.mxu0 0.0
    %1623 = vmatprep.subr.mxu0 0.0
    %1624 = vmatpush1.msra.mxu0 0.0
    %1625 = vmatprep.subr.mxu0 0.0
    %1626 = vmatpush1.msra.mxu0 0.0
    %1627 = vmatprep.subr.mxu0 0.0
    %1628 = vmatpush1.msra.mxu0 0.0
    %1629 = vmatprep.subr.mxu0 0.0
    %1630 = vmatpush1.msra.mxu0 0.0
    %1631 = vmatprep.subr.mxu0 0.0
    %1632 = vmatpush1.msra.mxu0 0.0
    %1633 = vmatprep.subr.mxu0 0.0
    %1634 = vmatpush1.msra.mxu0 0.0
    %1635 = vmatprep.subr.mxu0 0.0
    %1636 = vmatpush1.msra.mxu0 0.0
    %1637 = vmatprep.subr.mxu0 0.0
    %1638 = vmatpush1.msra.mxu0 0.0
    %1639 = vmatprep.subr.mxu0 0.0
    %1640 = vmatpush1.msra.mxu0 0.0
    %1641 = vmatprep.mubr.f32.mxu0 0.0
    %1642 = vmatmul.mubr.f32.gmra.mrb[0].mxu0 %v1292
    %v1643 = vpop.f32.mrb[0].mxu0
    %v1644 = vadd.f32 %v1575, %v1643
    %v1645 = vpop.f32.mrb[0].mxu0
    %1646 = vmatprep.mubr.f32.mxu0 0.0
    %1647 = vmatmul.mubr.f32.gmra.mrb[0].mxu0 %v1293
    %v1648 = vpop.f32.mrb[0].mxu0
    %v1649 = vadd.f32 %v1575, %v1648
    %v1650 = vpop.f32.mrb[0].mxu0
    %1651 = vmatprep.mubr.f32.mxu0 0.0
    %1652 = vmatmul.mubr.f32.gmra.mrb[0].mxu0 %v1294
    %v1653 = vpop.f32.mrb[0].mxu0
    %v1654 = vadd.f32 %v1575, %v1653
    %v1655 = vpop.f32.mrb[0].mxu0
    %1656 = vmatprep.mubr.f32.mxu0 0.0
    %1657 = vmatmul.mubr.f32.gmra.mrb[0].mxu0 %v1295
    %v1658 = vpop.f32.mrb[0].mxu0
    %v1659 = vadd.f32 %v1575, %v1658
    %v1660 = vpop.f32.mrb[0].mxu0
    %1661 = vmatprep.mubr.f32.mxu0 0.0
    %1662 = vmatmul.mubr.f32.gmra.mrb[0].mxu0 %v1296
    %v1663 = vpop.f32.mrb[0].mxu0
    %v1664 = vadd.f32 %v1575, %v1663
    %v1665 = vpop.f32.mrb[0].mxu0
    %1666 = vmatprep.mubr.f32.mxu0 0.0
    %1667 = vmatmul.mubr.f32.gmra.mrb[0].mxu0 %v1297
    %v1668 = vpop.f32.mrb[0].mxu0
    %v1669 = vadd.f32 %v1575, %v1668
    %v1670 = vpop.f32.mrb[0].mxu0
    %1671 = vdwg.mxu0
    %v1672 = vpack.c.bf16 %v1461, %v1455
    %v1673 = vpack.c.bf16 %v1542, %v1536
    %v1674 = vpack.c.bf16 %v1467, %v1467
    %v1675 = vpack.c.bf16 %v1548, %v1548
    %v1677 = vsel %vm896, %v1674, 0
    %v1680 = vsel %vm896, %v1675, 0
    %1682 = vmatprep.subr.bf16.mxu0 %v1673
    %1683 = vmatpush1.bf16.msra.mxu0 %v1672
    %1684 = vmatprep.subr.bf16.mxu0 %v1680
    %1685 = vmatpush1.bf16.msra.mxu0 %v1677
    %1686 = vmatprep.subr.bf16.mxu0 0
    %1687 = vmatpush1.bf16.msra.mxu0 0
    %1688 = vmatprep.subr.bf16.mxu0 0
    %1689 = vmatpush1.bf16.msra.mxu0 0
    %1690 = vmatprep.subr.bf16.mxu0 0
    %1691 = vmatpush1.bf16.msra.mxu0 0
    %1692 = vmatprep.subr.bf16.mxu0 0
    %1693 = vmatpush1.bf16.msra.mxu0 0
    %1694 = vmatprep.subr.bf16.mxu0 0
    %1695 = vmatpush1.bf16.msra.mxu0 0
    %1696 = vmatprep.subr.bf16.mxu0 0
    %1697 = vmatpush1.bf16.msra.mxu0 0
    %1698 = vmatprep.subr.bf16.mxu0 0
    %1699 = vmatpush1.bf16.msra.mxu0 0
    %1700 = vmatprep.subr.bf16.mxu0 0
    %1701 = vmatpush1.bf16.msra.mxu0 0
    %1702 = vmatprep.subr.bf16.mxu0 0
    %1703 = vmatpush1.bf16.msra.mxu0 0
    %1704 = vmatprep.subr.bf16.mxu0 0
    %1705 = vmatpush1.bf16.msra.mxu0 0
    %1706 = vmatprep.subr.bf16.mxu0 0
    %1707 = vmatpush1.bf16.msra.mxu0 0
    %1708 = vmatprep.subr.bf16.mxu0 0
    %1709 = vmatpush1.bf16.msra.mxu0 0
    %1710 = vmatprep.subr.bf16.mxu0 0
    %1711 = vmatpush1.bf16.msra.mxu0 0
    %1712 = vmatprep.subr.bf16.mxu0 0
    %1713 = vmatpush1.bf16.msra.mxu0 0
    %1714 = vmatprep.mubr.bf16.mxu0 0
    %1715 = vmatmul.mubr.bf16.gmra.mrb[0].mxu0 %v888
    %v1716 = vpop.f32.mrb[0].mxu0
    %v1717 = vadd.f32 0.0, %v1716
    %v1718 = vpop.f32.mrb[0].mxu0
    %v1719 = vadd.f32 0.0, %v1718
    %v1720 = vpop.f32.mrb[0].mxu0
    %v1721 = vadd.f32 0.0, %v1720
    %v1722 = vpop.f32.mrb[0].mxu0
    %v1723 = vadd.f32 0.0, %v1722
    %1724 = vmatprep.mubr.bf16.mxu0 0
    %1725 = vmatmul.mubr.bf16.gmra.mrb[0].mxu0 %v891
    %v1726 = vpop.f32.mrb[0].mxu0
    %v1727 = vadd.f32 0.0, %v1726
    %v1728 = vpop.f32.mrb[0].mxu0
    %v1729 = vadd.f32 0.0, %v1728
    %v1730 = vpop.f32.mrb[0].mxu0
    %v1731 = vadd.f32 0.0, %v1730
    %v1732 = vpop.f32.mrb[0].mxu0
    %v1733 = vadd.f32 0.0, %v1732
    %1734 = vmatprep.mubr.bf16.mxu0 0
    %1735 = vmatmul.mubr.bf16.gmra.mrb[0].mxu0 %v894
    %v1736 = vpop.f32.mrb[0].mxu0
    %v1737 = vadd.f32 0.0, %v1736
    %v1738 = vpop.f32.mrb[0].mxu0
    %v1739 = vadd.f32 0.0, %v1738
    %v1740 = vpop.f32.mrb[0].mxu0
    %v1741 = vadd.f32 0.0, %v1740
    %v1742 = vpop.f32.mrb[0].mxu0
    %v1743 = vadd.f32 0.0, %v1742
    %1744 = vdwg.mxu0
    %v1745 = vpack.c.bf16 %v1544, %v1538
    %v1746 = vpack.c.bf16 %v1550, %v1550
    %v1748 = vsel %vm896, %v1746, 0
    %1750 = vmatprep.subr.bf16.mxu0 0
    %1751 = vmatpush1.bf16.msra.mxu0 %v1745
    %1752 = vmatprep.subr.bf16.mxu0 0
    %1753 = vmatpush1.bf16.msra.mxu0 %v1748
    %1754 = vmatprep.subr.bf16.mxu0 0
    %1755 = vmatpush1.bf16.msra.mxu0 0
    %1756 = vmatprep.subr.bf16.mxu0 0
    %1757 = vmatpush1.bf16.msra.mxu0 0
    %1758 = vmatprep.subr.bf16.mxu0 0
    %1759 = vmatpush1.bf16.msra.mxu0 0
    %1760 = vmatprep.subr.bf16.mxu0 0
    %1761 = vmatpush1.bf16.msra.mxu0 0
    %1762 = vmatprep.subr.bf16.mxu0 0
    %1763 = vmatpush1.bf16.msra.mxu0 0
    %1764 = vmatprep.subr.bf16.mxu0 0
    %1765 = vmatpush1.bf16.msra.mxu0 0
    %1766 = vmatprep.subr.bf16.mxu0 0
    %1767 = vmatpush1.bf16.msra.mxu0 0
    %1768 = vmatprep.subr.bf16.mxu0 0
    %1769 = vmatpush1.bf16.msra.mxu0 0
    %1770 = vmatprep.subr.bf16.mxu0 0
    %1771 = vmatpush1.bf16.msra.mxu0 0
    %1772 = vmatprep.subr.bf16.mxu0 0
    %1773 = vmatpush1.bf16.msra.mxu0 0
    %1774 = vmatprep.subr.bf16.mxu0 0
    %1775 = vmatpush1.bf16.msra.mxu0 0
    %1776 = vmatprep.subr.bf16.mxu0 0
    %1777 = vmatpush1.bf16.msra.mxu0 0
    %1778 = vmatprep.subr.bf16.mxu0 0
    %1779 = vmatpush1.bf16.msra.mxu0 0
    %1780 = vmatprep.subr.bf16.mxu0 0
    %1781 = vmatpush1.bf16.msra.mxu0 0
    %1782 = vmatprep.mubr.bf16.mxu0 0
    %1783 = vmatmul.mubr.bf16.gmra.mrb[0].mxu0 %v984
    %v1784 = vpop.f32.mrb[0].mxu0
    %v1785 = vadd.f32 0.0, %v1784
    %v1786 = vpop.f32.mrb[0].mxu0
    %v1787 = vpop.f32.mrb[0].mxu0
    %v1788 = vadd.f32 0.0, %v1787
    %v1789 = vpop.f32.mrb[0].mxu0
    %1790 = vmatprep.mubr.bf16.mxu0 0
    %1791 = vmatmul.mubr.bf16.gmra.mrb[0].mxu0 %v987
    %v1792 = vpop.f32.mrb[0].mxu0
    %v1793 = vadd.f32 0.0, %v1792
    %v1794 = vpop.f32.mrb[0].mxu0
    %v1795 = vpop.f32.mrb[0].mxu0
    %v1796 = vadd.f32 0.0, %v1795
    %v1797 = vpop.f32.mrb[0].mxu0
    %1798 = vmatprep.mubr.bf16.mxu0 0
    %1799 = vmatmul.mubr.bf16.gmra.mrb[0].mxu0 %v990
    %v1800 = vpop.f32.mrb[0].mxu0
    %v1801 = vadd.f32 0.0, %v1800
    %v1802 = vpop.f32.mrb[0].mxu0
    %v1803 = vpop.f32.mrb[0].mxu0
    %v1804 = vadd.f32 0.0, %v1803
    %v1805 = vpop.f32.mrb[0].mxu0
    %1806 = vdwg.mxu0
    %v1807 = vadd.f32 %v1644, %v1719
    %v1808 = vadd.f32 %v1649, %v1723
    %v1809 = vadd.f32 %v1654, %v1729
    %v1810 = vadd.f32 %v1659, %v1733
    %v1811 = vadd.f32 %v1664, %v1739
    %v1812 = vadd.f32 %v1669, %v1743
    %v1813 = vadd.f32 %v1807, %v1785
    %v1814 = vadd.f32 %v1808, %v1788
    %v1815 = vadd.f32 %v1809, %v1793
    %v1816 = vadd.f32 %v1810, %v1796
    %v1817 = vadd.f32 %v1811, %v1801
    %v1818 = vadd.f32 %v1812, %v1804
    %v1819 = vxor.u32 %v1813, 2147483648
    %v1820 = vxor.u32 %v1814, 2147483648
    %v1821 = vxor.u32 %v1815, 2147483648
    %v1822 = vxor.u32 %v1816, 2147483648
    %v1823 = vxor.u32 %v1817, 2147483648
    %v1824 = vxor.u32 %v1818, 2147483648
    %v1825 = vmul.f32 %v1819, 1.442695
    %v1826 = vpow.pop %v1825
    %v1827 = vmul.f32 %v1820, 1.442695
    %v1828 = vpow.pop %v1827
    %v1829 = vmul.f32 %v1821, 1.442695
    %v1830 = vpow.pop %v1829
    %v1831 = vmul.f32 %v1822, 1.442695
    %v1832 = vpow.pop %v1831
    %v1833 = vmul.f32 %v1823, 1.442695
    %v1834 = vpow.pop %v1833
    %v1835 = vmul.f32 %v1824, 1.442695
    %v1836 = vpow.pop %v1835
    %v1837 = vadd.f32 %v1826, 1.0
    %v1838 = vadd.f32 %v1828, 1.0
    %v1839 = vadd.f32 %v1830, 1.0
    %v1840 = vadd.f32 %v1832, 1.0
    %v1841 = vadd.f32 %v1834, 1.0
    %v1842 = vadd.f32 %v1836, 1.0
    %v1843 = vrcp.pop %v1837
    %v1844 = vmul.f32 1.0, %v1843
    %v1845 = vrcp.pop %v1838
    %v1846 = vmul.f32 1.0, %v1845
    %v1847 = vrcp.pop %v1839
    %v1848 = vmul.f32 1.0, %v1847
    %v1849 = vrcp.pop %v1840
    %v1850 = vmul.f32 1.0, %v1849
    %v1851 = vrcp.pop %v1841
    %v1852 = vmul.f32 1.0, %v1851
    %v1853 = vrcp.pop %v1842
    %v1854 = vmul.f32 1.0, %v1853
    %v1855 = vmul.f32 %v1844, %v1717
    %v1856 = vmul.f32 %v1846, %v1721
    %v1857 = vmul.f32 %v1848, %v1727
    %v1858 = vmul.f32 %v1850, %v1731
    %v1859 = vmul.f32 %v1852, %v1737
    %v1860 = vmul.f32 %v1854, %v1741
    %v1861 = vpack.c.bf16 %v1856, %v1855
    %v1862 = vpack.c.bf16 %v1846, %v1844
    %v1863 = vpack.c.bf16 %v1858, %v1857
    %v1864 = vpack.c.bf16 %v1850, %v1848
    %v1865 = vpack.c.bf16 %v1860, %v1859
    %v1866 = vpack.c.bf16 %v1854, %v1852
    %1867 = vmatprep.subr.bf16.mxu0 %v1862
    %1868 = vmatpush1.bf16.msra.mxu0 %v1861
    %1869 = vmatprep.subr.bf16.mxu0 %v1864
    %1870 = vmatpush1.bf16.msra.mxu0 %v1863
    %1871 = vmatprep.subr.bf16.mxu0 %v1866
    %1872 = vmatpush1.bf16.msra.mxu0 %v1865
    %1873 = vmatprep.subr.bf16.mxu0 0
    %1874 = vmatpush1.bf16.msra.mxu0 0
    %1875 = vmatprep.subr.bf16.mxu0 0
    %1876 = vmatpush1.bf16.msra.mxu0 0
    %1877 = vmatprep.subr.bf16.mxu0 0
    %1878 = vmatpush1.bf16.msra.mxu0 0
    %1879 = vmatprep.subr.bf16.mxu0 0
    %1880 = vmatpush1.bf16.msra.mxu0 0
    %1881 = vmatprep.subr.bf16.mxu0 0
    %1882 = vmatpush1.bf16.msra.mxu0 0
    %1883 = vmatprep.subr.bf16.mxu0 0
    %1884 = vmatpush1.bf16.msra.mxu0 0
    %1885 = vmatprep.subr.bf16.mxu0 0
    %1886 = vmatpush1.bf16.msra.mxu0 0
    %1887 = vmatprep.subr.bf16.mxu0 0
    %1888 = vmatpush1.bf16.msra.mxu0 0
    %1889 = vmatprep.subr.bf16.mxu0 0
    %1890 = vmatpush1.bf16.msra.mxu0 0
    %1891 = vmatprep.subr.bf16.mxu0 0
    %1892 = vmatpush1.bf16.msra.mxu0 0
    %1893 = vmatprep.subr.bf16.mxu0 0
    %1894 = vmatpush1.bf16.msra.mxu0 0
    %1895 = vmatprep.subr.bf16.mxu0 0
    %1896 = vmatpush1.bf16.msra.mxu0 0
    %1897 = vmatprep.subr.bf16.mxu0 0
    %1898 = vmatpush1.bf16.msra.mxu0 0
    %1899 = vmatprep.mubr.bf16.mxu0 0
    %1900 = vmatmul.mubr.bf16.gmra.mrb[0].mxu0 %v1122
    %v1901 = vpop.f32.mrb[0].mxu0
    %v1902 = vadd.f32 0.0, %v1901
    %v1903 = vpop.f32.mrb[0].mxu0
    %v1904 = vadd.f32 0.0, %v1903
    %v1905 = vpop.f32.mrb[0].mxu0
    %v1906 = vadd.f32 0.0, %v1905
    %v1907 = vpop.f32.mrb[0].mxu0
    %v1908 = vadd.f32 0.0, %v1907
    %1909 = vmatprep.mubr.bf16.mxu0 0
    %1910 = vmatmul.mubr.bf16.gmra.mrb[0].mxu0 %v1125
    %v1911 = vpop.f32.mrb[0].mxu0
    %v1912 = vadd.f32 0.0, %v1911
    %v1913 = vpop.f32.mrb[0].mxu0
    %v1914 = vadd.f32 0.0, %v1913
    %v1915 = vpop.f32.mrb[0].mxu0
    %v1916 = vpop.f32.mrb[0].mxu0
    %1917 = vdwg.mxu0
    %v1918 = vadd.f32 %v1904, 1e-06
    %v1919 = vadd.f32 %v1908, 1e-06
    %v1920 = vadd.f32 %v1914, 1e-06
    %v1921 = vrcp.pop %v1918
    %v1922 = vrcp.pop %v1919
    %v1923 = vrcp.pop %v1920
    %v1924 = vmul.f32 %v1902, %v1921
    %v1925 = vmul.f32 %v1906, %v1922
    %v1926 = vmul.f32 %v1912, %v1923
    %v1927 = vadd.f32 %v1453, %v1924
    %v1928 = vadd.f32 %v1459, %v1925
    %v1929 = vadd.f32 %v1465, %v1926
    %v1930 = vmul.f32 %v1927, %v1193
    %v1931 = vmul.f32 %v1928, %v1198
    %v1932 = vmul.f32 %v1929, %v1203
    %v1933 = vmul.f32 %v1813, %v1211
    %v1934 = vmul.f32 %v1814, %v1216
    %v1935 = vmul.f32 %v1815, %v1221
    %v1936 = vmul.f32 %v1816, %v1226
    %v1937 = vmul.f32 %v1817, %v1231
    %v1938 = vmul.f32 %v1818, %v1236
    %s1939 = scalar_lea.vmem %s16, 2
    %v1940 = vld [vmem:[%s1939] sm:$0x3]
    %s1941 = scalar_lea.vmem %s17, 2
    %v1942 = vld [vmem:[%s1941] sm:$0x3]
    %v1943 = vlaneseq
    %v1944 = vshrl.u32 %v1943, 7
    %v1945 = vsub.s32 0, %v1944
    %v1946 = vrot.slane %v1940, %v1945
    %v1947 = vmul.f32 %v1930, %v1946
    %v1948 = vmul.f32 %v1931, %v1946
    %v1949 = vmul.f32 %v1932, %v1946
    %v1950 = vlaneseq
    %v1951 = vshrl.u32 %v1950, 7
    %v1952 = vsub.s32 1, %v1951
    %v1953 = vrot.slane %v1940, %v1952
    %v1954 = vadd.f32 %v1947, %v1953
    %v1955 = vadd.f32 %v1948, %v1953
    %v1956 = vadd.f32 %v1949, %v1953
    %v1957 = vlaneseq
    %v1958 = vshrl.u32 %v1957, 7
    %v1959 = vsub.s32 0, %v1958
    %v1960 = vrot.slane %v1942, %v1959
    %v1961 = vmul.f32 %v1933, %v1960
    %v1962 = vmul.f32 %v1934, %v1960
    %v1963 = vmul.f32 %v1935, %v1960
    %v1964 = vmul.f32 %v1936, %v1960
    %v1965 = vmul.f32 %v1937, %v1960
    %v1966 = vmul.f32 %v1938, %v1960
    %v1967 = vlaneseq
    %v1968 = vshrl.u32 %v1967, 7
    %v1969 = vsub.s32 1, %v1968
    %v1970 = vrot.slane %v1942, %v1969
    %v1971 = vadd.f32 %v1961, %v1970
    %v1972 = vadd.f32 %v1962, %v1970
    %v1973 = vadd.f32 %v1963, %v1970
    %v1974 = vadd.f32 %v1964, %v1970
    %v1975 = vadd.f32 %v1965, %v1970
    %v1976 = vadd.f32 %v1966, %v1970
    %v1977 = vmax.f32 %v1954, 0.0
    %v1978 = vmax.f32 %v1955, 0.0
    %v1979 = vmax.f32 %v1956, 0.0
    %v1980 = vadd.f32 %v1283, %v1977
    %v1981 = vadd.f32 %v1284, %v1978
    %v1982 = vadd.f32 %v1285, %v1979
    %v1983 = vmax.f32 %v1971, 0.0
    %v1984 = vmax.f32 %v1972, 0.0
    %v1985 = vmax.f32 %v1973, 0.0
    %v1986 = vmax.f32 %v1974, 0.0
    %v1987 = vmax.f32 %v1975, 0.0
    %v1988 = vmax.f32 %v1976, 0.0
    %v1989 = vadd.f32 %v1292, %v1983
    %v1990 = vadd.f32 %v1293, %v1984
    %v1991 = vadd.f32 %v1294, %v1985
    %v1992 = vadd.f32 %v1295, %v1986
    %v1993 = vadd.f32 %v1296, %v1987
    %v1994 = vadd.f32 %v1297, %v1988
    %s1995 = scalar_lea.vmem [#allocation11], 1024
    %v1996 = vld [vmem:[%s1995] sm:$0xff]
    %v1997 = vld [vmem:[%s1995 + $0x8] sm:$0xff]
    %v1998 = vld [vmem:[%s1995 + $0x10] sm:$0xff]
    %v1999 = vld [vmem:[%s1995 + $0x18] sm:$0xff]
    %v2000 = vld [vmem:[%s1995 + $0x20] sm:$0xff]
    %v2001 = vld [vmem:[%s1995 + $0x28] sm:$0xff]
    %v2002 = vld [vmem:[%s1995 + $0x30] sm:$0xff]
    %v2003 = vld [vmem:[%s1995 + $0x38] sm:$0xff]
    %v2004 = vld [vmem:[%s1995 + $0x40] sm:$0xff]
    %v2005 = vld [vmem:[%s1995 + $0x48] sm:$0xff]
    %v2006 = vld [vmem:[%s1995 + $0x50] sm:$0xff]
    %v2007 = vld [vmem:[%s1995 + $0x58] sm:$0xff]
    %v2008 = vld [vmem:[%s1995 + $0x60] sm:$0xff]
    %v2009 = vld [vmem:[%s1995 + $0x68] sm:$0xff]
    %v2010 = vld [vmem:[%s1995 + $0x70] sm:$0xff]
    %v2011 = vld [vmem:[%s1995 + $0x78] sm:$0xff]
    %v2012 = vld [vmem:[%s1995 + $0x80] sm:$0xff]
    %v2013 = vld [vmem:[%s1995 + $0x88] sm:$0xff]
    %v2014 = vld [vmem:[%s1995 + $0x90] sm:$0xff]
    %v2015 = vld [vmem:[%s1995 + $0x98] sm:$0xff]
    %v2016 = vld [vmem:[%s1995 + $0xa0] sm:$0xff]
    %v2017 = vld [vmem:[%s1995 + $0xa8] sm:$0xff]
    %v2018 = vld [vmem:[%s1995 + $0xb0] sm:$0xff]
    %v2019 = vld [vmem:[%s1995 + $0xb8] sm:$0xff]
    %v2020 = vld [vmem:[%s1995 + $0xc0] sm:$0xff]
    %v2021 = vld [vmem:[%s1995 + $0xc8] sm:$0xff]
    %v2022 = vld [vmem:[%s1995 + $0xd0] sm:$0xff]
    %v2023 = vld [vmem:[%s1995 + $0xd8] sm:$0xff]
    %v2024 = vld [vmem:[%s1995 + $0xe0] sm:$0xff]
    %v2025 = vld [vmem:[%s1995 + $0xe8] sm:$0xff]
    %v2026 = vld [vmem:[%s1995 + $0xf0] sm:$0xff]
    %v2027 = vld [vmem:[%s1995 + $0xf8] sm:$0xff]
    %v2028 = vld [vmem:[%s1995 + $0x100] sm:$0xff]
    %v2029 = vld [vmem:[%s1995 + $0x108] sm:$0xff]
    %v2030 = vld [vmem:[%s1995 + $0x110] sm:$0xff]
    %v2031 = vld [vmem:[%s1995 + $0x118] sm:$0xff]
    %v2032 = vld [vmem:[%s1995 + $0x120] sm:$0xff]
    %v2033 = vld [vmem:[%s1995 + $0x128] sm:$0xff]
    %v2034 = vld [vmem:[%s1995 + $0x130] sm:$0xff]
    %v2035 = vld [vmem:[%s1995 + $0x138] sm:$0xff]
    %v2036 = vld [vmem:[%s1995 + $0x140] sm:$0xff]
    %v2037 = vld [vmem:[%s1995 + $0x148] sm:$0xff]
    %v2038 = vld [vmem:[%s1995 + $0x150] sm:$0xff]
    %v2039 = vld [vmem:[%s1995 + $0x158] sm:$0xff]
    %v2040 = vld [vmem:[%s1995 + $0x160] sm:$0xff]
    %v2041 = vld [vmem:[%s1995 + $0x168] sm:$0xff]
    %v2042 = vld [vmem:[%s1995 + $0x170] sm:$0xff]
    %v2043 = vld [vmem:[%s1995 + $0x178] sm:$0xff]
    %v2044 = vld [vmem:[%s1995 + $0x180] sm:$0xff]
    %v2045 = vld [vmem:[%s1995 + $0x188] sm:$0xff]
    %v2046 = vld [vmem:[%s1995 + $0x190] sm:$0xff]
    %v2047 = vld [vmem:[%s1995 + $0x198] sm:$0xff]
    %v2048 = vld [vmem:[%s1995 + $0x1a0] sm:$0xff]
    %v2049 = vld [vmem:[%s1995 + $0x1a8] sm:$0xff]
    %v2050 = vld [vmem:[%s1995 + $0x1b0] sm:$0xff]
    %v2051 = vld [vmem:[%s1995 + $0x1b8] sm:$0xff]
    %v2052 = vld [vmem:[%s1995 + $0x1c0] sm:$0xff]
    %v2053 = vld [vmem:[%s1995 + $0x1c8] sm:$0xff]
    %v2054 = vld [vmem:[%s1995 + $0x1d0] sm:$0xff]
    %v2055 = vld [vmem:[%s1995 + $0x1d8] sm:$0xff]
    %v2056 = vld [vmem:[%s1995 + $0x1e0] sm:$0xff]
    %v2057 = vld [vmem:[%s1995 + $0x1e8] sm:$0xff]
    %v2058 = vld [vmem:[%s1995 + $0x1f0] sm:$0xff]
    %v2059 = vld [vmem:[%s1995 + $0x1f8] sm:$0xff]
    %s2060 = scalar_lea.vmem %s13, 8
    %v2061 = vld [vmem:[%s2060] sm:$0xf]
    %v2063 = vlaneseq
    %v2064 = vshrl.u32 %v2063, 7
    %v2065 = vsub.s32 0, %v2064
    %v2066 = vrot.slane %v2061, %v2065
    %v2067 = vlaneseq
    %v2068 = vshrl.u32 %v2067, 7
    %v2069 = vsub.s32 1, %v2068
    %v2070 = vrot.slane %v2061, %v2069
    %v2071 = vlaneseq
    %v2072 = vshrl.u32 %v2071, 7
    %v2073 = vsub.s32 2, %v2072
    %v2074 = vrot.slane %v2061, %v2073
    %v2075 = vlaneseq
    %v2076 = vshrl.u32 %v2075, 7
    %v2077 = vsub.s32 3, %v2076
    %v2078 = vrot.slane %v2061, %v2077
    %2083 = vmatprep.subr.mxu0 %v1997
    %2084 = vmatpush1.msra.mxu0 %v1996
    %2085 = vmatprep.subr.mxu0 %v2001
    %2086 = vmatpush1.msra.mxu0 %v2000
    %2087 = vmatprep.subr.mxu0 %v2005
    %2088 = vmatpush1.msra.mxu0 %v2004
    %2089 = vmatprep.subr.mxu0 %v2009
    %2090 = vmatpush1.msra.mxu0 %v2008
    %2091 = vmatprep.subr.mxu0 %v2013
    %2092 = vmatpush1.msra.mxu0 %v2012
    %2093 = vmatprep.subr.mxu0 %v2017
    %2094 = vmatpush1.msra.mxu0 %v2016
    %2095 = vmatprep.subr.mxu0 %v2021
    %2096 = vmatpush1.msra.mxu0 %v2020
    %2097 = vmatprep.subr.mxu0 %v2025
    %2098 = vmatpush1.msra.mxu0 %v2024
    %2099 = vmatprep.subr.mxu0 %v2029
    %2100 = vmatpush1.msra.mxu0 %v2028
    %2101 = vmatprep.subr.mxu0 %v2033
    %2102 = vmatpush1.msra.mxu0 %v2032
    %2103 = vmatprep.subr.mxu0 %v2037
    %2104 = vmatpush1.msra.mxu0 %v2036
    %2105 = vmatprep.subr.mxu0 %v2041
    %2106 = vmatpush1.msra.mxu0 %v2040
    %2107 = vmatprep.subr.mxu0 %v2045
    %2108 = vmatpush1.msra.mxu0 %v2044
    %2109 = vmatprep.subr.mxu0 %v2049
    %2110 = vmatpush1.msra.mxu0 %v2048
    %2111 = vmatprep.subr.mxu0 %v2053
    %2112 = vmatpush1.msra.mxu0 %v2052
    %2113 = vmatprep.subr.mxu0 %v2057
    %2114 = vmatpush1.msra.mxu0 %v2056
    %2115 = vmatprep.subr.mxu0 0.0
    %2116 = vmatpush1.msra.mxu0 0.0
    %2117 = vmatprep.subr.mxu0 0.0
    %2118 = vmatpush1.msra.mxu0 0.0
    %2119 = vmatprep.subr.mxu0 0.0
    %2120 = vmatpush1.msra.mxu0 0.0
    %2121 = vmatprep.subr.mxu0 0.0
    %2122 = vmatpush1.msra.mxu0 0.0
    %2123 = vmatprep.subr.mxu0 0.0
    %2124 = vmatpush1.msra.mxu0 0.0
    %2125 = vmatprep.subr.mxu0 0.0
    %2126 = vmatpush1.msra.mxu0 0.0
    %2127 = vmatprep.subr.mxu0 0.0
    %2128 = vmatpush1.msra.mxu0 0.0
    %2129 = vmatprep.subr.mxu0 0.0
    %2130 = vmatpush1.msra.mxu0 0.0
    %2131 = vmatprep.subr.mxu0 0.0
    %2132 = vmatpush1.msra.mxu0 0.0
    %2133 = vmatprep.subr.mxu0 0.0
    %2134 = vmatpush1.msra.mxu0 0.0
    %2135 = vmatprep.subr.mxu0 0.0
    %2136 = vmatpush1.msra.mxu0 0.0
    %2137 = vmatprep.subr.mxu0 0.0
    %2138 = vmatpush1.msra.mxu0 0.0
    %2139 = vmatprep.subr.mxu0 0.0
    %2140 = vmatpush1.msra.mxu0 0.0
    %2141 = vmatprep.subr.mxu0 0.0
    %2142 = vmatpush1.msra.mxu0 0.0
    %2143 = vmatprep.subr.mxu0 0.0
    %2144 = vmatpush1.msra.mxu0 0.0
    %2145 = vmatprep.subr.mxu0 0.0
    %2146 = vmatpush1.msra.mxu0 0.0
    %2147 = vmatprep.mubr.f32.mxu0 0.0
    %2148 = vmatmul.mubr.f32.gmra.mrb[0].mxu0 %v1980
    %v2149 = vpop.f32.mrb[0].mxu0
    %v2150 = vadd.f32 %v2066, %v2149
    %v2151 = vpop.f32.mrb[0].mxu0
    %v2152 = vadd.f32 %v2070, %v2151
    %2153 = vmatprep.mubr.f32.mxu0 0.0
    %2154 = vmatmul.mubr.f32.gmra.mrb[0].mxu0 %v1981
    %v2155 = vpop.f32.mrb[0].mxu0
    %v2156 = vadd.f32 %v2066, %v2155
    %v2157 = vpop.f32.mrb[0].mxu0
    %v2158 = vadd.f32 %v2070, %v2157
    %2159 = vmatprep.mubr.f32.mxu0 0.0
    %2160 = vmatmul.mubr.f32.gmra.mrb[0].mxu0 %v1982
    %v2161 = vpop.f32.mrb[0].mxu0
    %v2162 = vadd.f32 %v2066, %v2161
    %v2163 = vpop.f32.mrb[0].mxu0
    %v2164 = vadd.f32 %v2070, %v2163
    %2165 = vdwg.mxu0
    %2166 = vmatprep.subr.mxu0 %v1999
    %2167 = vmatpush1.msra.mxu0 %v1998
    %2168 = vmatprep.subr.mxu0 %v2003
    %2169 = vmatpush1.msra.mxu0 %v2002
    %2170 = vmatprep.subr.mxu0 %v2007
    %2171 = vmatpush1.msra.mxu0 %v2006
    %2172 = vmatprep.subr.mxu0 %v2011
    %2173 = vmatpush1.msra.mxu0 %v2010
    %2174 = vmatprep.subr.mxu0 %v2015
    %2175 = vmatpush1.msra.mxu0 %v2014
    %2176 = vmatprep.subr.mxu0 %v2019
    %2177 = vmatpush1.msra.mxu0 %v2018
    %2178 = vmatprep.subr.mxu0 %v2023
    %2179 = vmatpush1.msra.mxu0 %v2022
    %2180 = vmatprep.subr.mxu0 %v2027
    %2181 = vmatpush1.msra.mxu0 %v2026
    %2182 = vmatprep.subr.mxu0 %v2031
    %2183 = vmatpush1.msra.mxu0 %v2030
    %2184 = vmatprep.subr.mxu0 %v2035
    %2185 = vmatpush1.msra.mxu0 %v2034
    %2186 = vmatprep.subr.mxu0 %v2039
    %2187 = vmatpush1.msra.mxu0 %v2038
    %2188 = vmatprep.subr.mxu0 %v2043
    %2189 = vmatpush1.msra.mxu0 %v2042
    %2190 = vmatprep.subr.mxu0 %v2047
    %2191 = vmatpush1.msra.mxu0 %v2046
    %2192 = vmatprep.subr.mxu0 %v2051
    %2193 = vmatpush1.msra.mxu0 %v2050
    %2194 = vmatprep.subr.mxu0 %v2055
    %2195 = vmatpush1.msra.mxu0 %v2054
    %2196 = vmatprep.subr.mxu0 %v2059
    %2197 = vmatpush1.msra.mxu0 %v2058
    %2198 = vmatprep.subr.mxu0 0.0
    %2199 = vmatpush1.msra.mxu0 0.0
    %2200 = vmatprep.subr.mxu0 0.0
    %2201 = vmatpush1.msra.mxu0 0.0
    %2202 = vmatprep.subr.mxu0 0.0
    %2203 = vmatpush1.msra.mxu0 0.0
    %2204 = vmatprep.subr.mxu0 0.0
    %2205 = vmatpush1.msra.mxu0 0.0
    %2206 = vmatprep.subr.mxu0 0.0
    %2207 = vmatpush1.msra.mxu0 0.0
    %2208 = vmatprep.subr.mxu0 0.0
    %2209 = vmatpush1.msra.mxu0 0.0
    %2210 = vmatprep.subr.mxu0 0.0
    %2211 = vmatpush1.msra.mxu0 0.0
    %2212 = vmatprep.subr.mxu0 0.0
    %2213 = vmatpush1.msra.mxu0 0.0
    %2214 = vmatprep.subr.mxu0 0.0
    %2215 = vmatpush1.msra.mxu0 0.0
    %2216 = vmatprep.subr.mxu0 0.0
    %2217 = vmatpush1.msra.mxu0 0.0
    %2218 = vmatprep.subr.mxu0 0.0
    %2219 = vmatpush1.msra.mxu0 0.0
    %2220 = vmatprep.subr.mxu0 0.0
    %2221 = vmatpush1.msra.mxu0 0.0
    %2222 = vmatprep.subr.mxu0 0.0
    %2223 = vmatpush1.msra.mxu0 0.0
    %2224 = vmatprep.subr.mxu0 0.0
    %2225 = vmatpush1.msra.mxu0 0.0
    %2226 = vmatprep.subr.mxu0 0.0
    %2227 = vmatpush1.msra.mxu0 0.0
    %2228 = vmatprep.subr.mxu0 0.0
    %2229 = vmatpush1.msra.mxu0 0.0
    %2230 = vmatprep.mubr.f32.mxu0 0.0
    %2231 = vmatmul.mubr.f32.gmra.mrb[0].mxu0 %v1980
    %v2232 = vpop.f32.mrb[0].mxu0
    %v2233 = vadd.f32 %v2074, %v2232
    %v2234 = vpop.f32.mrb[0].mxu0
    %v2235 = vadd.f32 %v2078, %v2234
    %2236 = vmatprep.mubr.f32.mxu0 0.0
    %2237 = vmatmul.mubr.f32.gmra.mrb[0].mxu0 %v1981
    %v2238 = vpop.f32.mrb[0].mxu0
    %v2239 = vadd.f32 %v2074, %v2238
    %v2240 = vpop.f32.mrb[0].mxu0
    %v2241 = vadd.f32 %v2078, %v2240
    %2242 = vmatprep.mubr.f32.mxu0 0.0
    %2243 = vmatmul.mubr.f32.gmra.mrb[0].mxu0 %v1982
    %v2244 = vpop.f32.mrb[0].mxu0
    %v2245 = vadd.f32 %v2074, %v2244
    %v2246 = vpop.f32.mrb[0].mxu0
    %v2247 = vadd.f32 %v2078, %v2246
    %2248 = vdwg.mxu0
    %s2249 = scalar_lea.vmem [#allocation13], 256
    %v2250 = vld [vmem:[%s2249] sm:$0xff]
    %v2251 = vld [vmem:[%s2249 + $0x8] sm:$0xff]
    %v2252 = vld [vmem:[%s2249 + $0x10] sm:$0xff]
    %v2253 = vld [vmem:[%s2249 + $0x18] sm:$0xff]
    %v2254 = vld [vmem:[%s2249 + $0x20] sm:$0xff]
    %v2255 = vld [vmem:[%s2249 + $0x28] sm:$0xff]
    %v2256 = vld [vmem:[%s2249 + $0x30] sm:$0xff]
    %v2257 = vld [vmem:[%s2249 + $0x38] sm:$0xff]
    %v2258 = vld [vmem:[%s2249 + $0x40] sm:$0xff]
    %v2259 = vld [vmem:[%s2249 + $0x48] sm:$0xff]
    %v2260 = vld [vmem:[%s2249 + $0x50] sm:$0xff]
    %v2261 = vld [vmem:[%s2249 + $0x58] sm:$0xff]
    %v2262 = vld [vmem:[%s2249 + $0x60] sm:$0xff]
    %v2263 = vld [vmem:[%s2249 + $0x68] sm:$0xff]
    %v2264 = vld [vmem:[%s2249 + $0x70] sm:$0xff]
    %v2265 = vld [vmem:[%s2249 + $0x78] sm:$0xff]
    %s2266 = scalar_lea.vmem [#allocation14], 2
    %v2267 = vld [vmem:[%s2266] sm:$0x1]
    %v2269 = vlaneseq
    %v2270 = vshrl.u32 %v2269, 7
    %v2271 = vsub.s32 0, %v2270
    %v2272 = vrot.slane %v2267, %v2271
    %2274 = vmatprep.subr.mxu0 0.0
    %2275 = vmatpush1.msra.mxu0 %v2250
    %2276 = vmatprep.subr.mxu0 0.0
    %2277 = vmatpush1.msra.mxu0 %v2251
    %2278 = vmatprep.subr.mxu0 0.0
    %2279 = vmatpush1.msra.mxu0 %v2252
    %2280 = vmatprep.subr.mxu0 0.0
    %2281 = vmatpush1.msra.mxu0 %v2253
    %2282 = vmatprep.subr.mxu0 0.0
    %2283 = vmatpush1.msra.mxu0 %v2254
    %2284 = vmatprep.subr.mxu0 0.0
    %2285 = vmatpush1.msra.mxu0 %v2255
    %2286 = vmatprep.subr.mxu0 0.0
    %2287 = vmatpush1.msra.mxu0 %v2256
    %2288 = vmatprep.subr.mxu0 0.0
    %2289 = vmatpush1.msra.mxu0 %v2257
    %2290 = vmatprep.subr.mxu0 0.0
    %2291 = vmatpush1.msra.mxu0 %v2258
    %2292 = vmatprep.subr.mxu0 0.0
    %2293 = vmatpush1.msra.mxu0 %v2259
    %2294 = vmatprep.subr.mxu0 0.0
    %2295 = vmatpush1.msra.mxu0 %v2260
    %2296 = vmatprep.subr.mxu0 0.0
    %2297 = vmatpush1.msra.mxu0 %v2261
    %2298 = vmatprep.subr.mxu0 0.0
    %2299 = vmatpush1.msra.mxu0 %v2262
    %2300 = vmatprep.subr.mxu0 0.0
    %2301 = vmatpush1.msra.mxu0 %v2263
    %2302 = vmatprep.subr.mxu0 0.0
    %2303 = vmatpush1.msra.mxu0 %v2264
    %2304 = vmatprep.subr.mxu0 0.0
    %2305 = vmatpush1.msra.mxu0 %v2265
    %2306 = vmatprep.subr.mxu0 0.0
    %2307 = vmatpush1.msra.mxu0 0.0
    %2308 = vmatprep.subr.mxu0 0.0
    %2309 = vmatpush1.msra.mxu0 0.0
    %2310 = vmatprep.subr.mxu0 0.0
    %2311 = vmatpush1.msra.mxu0 0.0
    %2312 = vmatprep.subr.mxu0 0.0
    %2313 = vmatpush1.msra.mxu0 0.0
    %2314 = vmatprep.subr.mxu0 0.0
    %2315 = vmatpush1.msra.mxu0 0.0
    %2316 = vmatprep.subr.mxu0 0.0
    %2317 = vmatpush1.msra.mxu0 0.0
    %2318 = vmatprep.subr.mxu0 0.0
    %2319 = vmatpush1.msra.mxu0 0.0
    %2320 = vmatprep.subr.mxu0 0.0
    %2321 = vmatpush1.msra.mxu0 0.0
    %2322 = vmatprep.subr.mxu0 0.0
    %2323 = vmatpush1.msra.mxu0 0.0
    %2324 = vmatprep.subr.mxu0 0.0
    %2325 = vmatpush1.msra.mxu0 0.0
    %2326 = vmatprep.subr.mxu0 0.0
    %2327 = vmatpush1.msra.mxu0 0.0
    %2328 = vmatprep.subr.mxu0 0.0
    %2329 = vmatpush1.msra.mxu0 0.0
    %2330 = vmatprep.subr.mxu0 0.0
    %2331 = vmatpush1.msra.mxu0 0.0
    %2332 = vmatprep.subr.mxu0 0.0
    %2333 = vmatpush1.msra.mxu0 0.0
    %2334 = vmatprep.subr.mxu0 0.0
    %2335 = vmatpush1.msra.mxu0 0.0
    %2336 = vmatprep.subr.mxu0 0.0
    %2337 = vmatpush1.msra.mxu0 0.0
    %2338 = vmatprep.mubr.f32.mxu0 0.0
    %2339 = vmatmul.mubr.f32.gmra.mrb[0].mxu0 %v1989
    %v2340 = vpop.f32.mrb[0].mxu0
    %v2341 = vadd.f32 %v2272, %v2340
    %v2342 = vpop.f32.mrb[0].mxu0
    %2343 = vmatprep.mubr.f32.mxu0 0.0
    %2344 = vmatmul.mubr.f32.gmra.mrb[0].mxu0 %v1990
    %v2345 = vpop.f32.mrb[0].mxu0
    %v2346 = vadd.f32 %v2272, %v2345
    %v2347 = vpop.f32.mrb[0].mxu0
    %2348 = vmatprep.mubr.f32.mxu0 0.0
    %2349 = vmatmul.mubr.f32.gmra.mrb[0].mxu0 %v1991
    %v2350 = vpop.f32.mrb[0].mxu0
    %v2351 = vadd.f32 %v2272, %v2350
    %v2352 = vpop.f32.mrb[0].mxu0
    %2353 = vmatprep.mubr.f32.mxu0 0.0
    %2354 = vmatmul.mubr.f32.gmra.mrb[0].mxu0 %v1992
    %v2355 = vpop.f32.mrb[0].mxu0
    %v2356 = vadd.f32 %v2272, %v2355
    %v2357 = vpop.f32.mrb[0].mxu0
    %2358 = vmatprep.mubr.f32.mxu0 0.0
    %2359 = vmatmul.mubr.f32.gmra.mrb[0].mxu0 %v1993
    %v2360 = vpop.f32.mrb[0].mxu0
    %v2361 = vadd.f32 %v2272, %v2360
    %v2362 = vpop.f32.mrb[0].mxu0
    %2363 = vmatprep.mubr.f32.mxu0 0.0
    %2364 = vmatmul.mubr.f32.gmra.mrb[0].mxu0 %v1994
    %v2365 = vpop.f32.mrb[0].mxu0
    %v2366 = vadd.f32 %v2272, %v2365
    %v2367 = vpop.f32.mrb[0].mxu0
    %2368 = vdwg.mxu0
    %v2369 = vpack.c.bf16 %v2158, %v2152
    %v2370 = vpack.c.bf16 %v2239, %v2233
    %v2371 = vpack.c.bf16 %v2164, %v2164
    %v2372 = vpack.c.bf16 %v2245, %v2245
    %v2374 = vsel %vm896, %v2371, 0
    %v2377 = vsel %vm896, %v2372, 0
    %2379 = vmatprep.subr.bf16.mxu0 %v2370
    %2380 = vmatpush1.bf16.msra.mxu0 %v2369
    %2381 = vmatprep.subr.bf16.mxu0 %v2377
    %2382 = vmatpush1.bf16.msra.mxu0 %v2374
    %2383 = vmatprep.subr.bf16.mxu0 0
    %2384 = vmatpush1.bf16.msra.mxu0 0
    %2385 = vmatprep.subr.bf16.mxu0 0
    %2386 = vmatpush1.bf16.msra.mxu0 0
    %2387 = vmatprep.subr.bf16.mxu0 0
    %2388 = vmatpush1.bf16.msra.mxu0 0
    %2389 = vmatprep.subr.bf16.mxu0 0
    %2390 = vmatpush1.bf16.msra.mxu0 0
    %2391 = vmatprep.subr.bf16.mxu0 0
    %2392 = vmatpush1.bf16.msra.mxu0 0
    %2393 = vmatprep.subr.bf16.mxu0 0
    %2394 = vmatpush1.bf16.msra.mxu0 0
    %2395 = vmatprep.subr.bf16.mxu0 0
    %2396 = vmatpush1.bf16.msra.mxu0 0
    %2397 = vmatprep.subr.bf16.mxu0 0
    %2398 = vmatpush1.bf16.msra.mxu0 0
    %2399 = vmatprep.subr.bf16.mxu0 0
    %2400 = vmatpush1.bf16.msra.mxu0 0
    %2401 = vmatprep.subr.bf16.mxu0 0
    %2402 = vmatpush1.bf16.msra.mxu0 0
    %2403 = vmatprep.subr.bf16.mxu0 0
    %2404 = vmatpush1.bf16.msra.mxu0 0
    %2405 = vmatprep.subr.bf16.mxu0 0
    %2406 = vmatpush1.bf16.msra.mxu0 0
    %2407 = vmatprep.subr.bf16.mxu0 0
    %2408 = vmatpush1.bf16.msra.mxu0 0
    %2409 = vmatprep.subr.bf16.mxu0 0
    %2410 = vmatpush1.bf16.msra.mxu0 0
    %2411 = vmatprep.mubr.bf16.mxu0 0
    %2412 = vmatmul.mubr.bf16.gmra.mrb[0].mxu0 %v888
    %v2413 = vpop.f32.mrb[0].mxu0
    %v2414 = vadd.f32 0.0, %v2413
    %v2415 = vpop.f32.mrb[0].mxu0
    %v2416 = vadd.f32 0.0, %v2415
    %v2417 = vpop.f32.mrb[0].mxu0
    %v2418 = vadd.f32 0.0, %v2417
    %v2419 = vpop.f32.mrb[0].mxu0
    %v2420 = vadd.f32 0.0, %v2419
    %2421 = vmatprep.mubr.bf16.mxu0 0
    %2422 = vmatmul.mubr.bf16.gmra.mrb[0].mxu0 %v891
    %v2423 = vpop.f32.mrb[0].mxu0
    %v2424 = vadd.f32 0.0, %v2423
    %v2425 = vpop.f32.mrb[0].mxu0
    %v2426 = vadd.f32 0.0, %v2425
    %v2427 = vpop.f32.mrb[0].mxu0
    %v2428 = vadd.f32 0.0, %v2427
    %v2429 = vpop.f32.mrb[0].mxu0
    %v2430 = vadd.f32 0.0, %v2429
    %2431 = vmatprep.mubr.bf16.mxu0 0
    %2432 = vmatmul.mubr.bf16.gmra.mrb[0].mxu0 %v894
    %v2433 = vpop.f32.mrb[0].mxu0
    %v2434 = vadd.f32 0.0, %v2433
    %v2435 = vpop.f32.mrb[0].mxu0
    %v2436 = vadd.f32 0.0, %v2435
    %v2437 = vpop.f32.mrb[0].mxu0
    %v2438 = vadd.f32 0.0, %v2437
    %v2439 = vpop.f32.mrb[0].mxu0
    %v2440 = vadd.f32 0.0, %v2439
    %2441 = vdwg.mxu0
    %v2442 = vpack.c.bf16 %v2241, %v2235
    %v2443 = vpack.c.bf16 %v2247, %v2247
    %v2445 = vsel %vm896, %v2443, 0
    %2447 = vmatprep.subr.bf16.mxu0 0
    %2448 = vmatpush1.bf16.msra.mxu0 %v2442
    %2449 = vmatprep.subr.bf16.mxu0 0
    %2450 = vmatpush1.bf16.msra.mxu0 %v2445
    %2451 = vmatprep.subr.bf16.mxu0 0
    %2452 = vmatpush1.bf16.msra.mxu0 0
    %2453 = vmatprep.subr.bf16.mxu0 0
    %2454 = vmatpush1.bf16.msra.mxu0 0
    %2455 = vmatprep.subr.bf16.mxu0 0
    %2456 = vmatpush1.bf16.msra.mxu0 0
    %2457 = vmatprep.subr.bf16.mxu0 0
    %2458 = vmatpush1.bf16.msra.mxu0 0
    %2459 = vmatprep.subr.bf16.mxu0 0
    %2460 = vmatpush1.bf16.msra.mxu0 0
    %2461 = vmatprep.subr.bf16.mxu0 0
    %2462 = vmatpush1.bf16.msra.mxu0 0
    %2463 = vmatprep.subr.bf16.mxu0 0
    %2464 = vmatpush1.bf16.msra.mxu0 0
    %2465 = vmatprep.subr.bf16.mxu0 0
    %2466 = vmatpush1.bf16.msra.mxu0 0
    %2467 = vmatprep.subr.bf16.mxu0 0
    %2468 = vmatpush1.bf16.msra.mxu0 0
    %2469 = vmatprep.subr.bf16.mxu0 0
    %2470 = vmatpush1.bf16.msra.mxu0 0
    %2471 = vmatprep.subr.bf16.mxu0 0
    %2472 = vmatpush1.bf16.msra.mxu0 0
    %2473 = vmatprep.subr.bf16.mxu0 0
    %2474 = vmatpush1.bf16.msra.mxu0 0
    %2475 = vmatprep.subr.bf16.mxu0 0
    %2476 = vmatpush1.bf16.msra.mxu0 0
    %2477 = vmatprep.subr.bf16.mxu0 0
    %2478 = vmatpush1.bf16.msra.mxu0 0
    %2479 = vmatprep.mubr.bf16.mxu0 0
    %2480 = vmatmul.mubr.bf16.gmra.mrb[0].mxu0 %v984
    %v2481 = vpop.f32.mrb[0].mxu0
    %v2482 = vadd.f32 0.0, %v2481
    %v2483 = vpop.f32.mrb[0].mxu0
    %v2484 = vpop.f32.mrb[0].mxu0
    %v2485 = vadd.f32 0.0, %v2484
    %v2486 = vpop.f32.mrb[0].mxu0
    %2487 = vmatprep.mubr.bf16.mxu0 0
    %2488 = vmatmul.mubr.bf16.gmra.mrb[0].mxu0 %v987
    %v2489 = vpop.f32.mrb[0].mxu0
    %v2490 = vadd.f32 0.0, %v2489
    %v2491 = vpop.f32.mrb[0].mxu0
    %v2492 = vpop.f32.mrb[0].mxu0
    %v2493 = vadd.f32 0.0, %v2492
    %v2494 = vpop.f32.mrb[0].mxu0
    %2495 = vmatprep.mubr.bf16.mxu0 0
    %2496 = vmatmul.mubr.bf16.gmra.mrb[0].mxu0 %v990
    %v2497 = vpop.f32.mrb[0].mxu0
    %v2498 = vadd.f32 0.0, %v2497
    %v2499 = vpop.f32.mrb[0].mxu0
    %v2500 = vpop.f32.mrb[0].mxu0
    %v2501 = vadd.f32 0.0, %v2500
    %v2502 = vpop.f32.mrb[0].mxu0
    %2503 = vdwg.mxu0
    %v2504 = vadd.f32 %v2341, %v2416
    %v2505 = vadd.f32 %v2346, %v2420
    %v2506 = vadd.f32 %v2351, %v2426
    %v2507 = vadd.f32 %v2356, %v2430
    %v2508 = vadd.f32 %v2361, %v2436
    %v2509 = vadd.f32 %v2366, %v2440
    %v2510 = vadd.f32 %v2504, %v2482
    %v2511 = vadd.f32 %v2505, %v2485
    %v2512 = vadd.f32 %v2506, %v2490
    %v2513 = vadd.f32 %v2507, %v2493
    %v2514 = vadd.f32 %v2508, %v2498
    %v2515 = vadd.f32 %v2509, %v2501
    %v2516 = vxor.u32 %v2510, 2147483648
    %v2517 = vxor.u32 %v2511, 2147483648
    %v2518 = vxor.u32 %v2512, 2147483648
    %v2519 = vxor.u32 %v2513, 2147483648
    %v2520 = vxor.u32 %v2514, 2147483648
    %v2521 = vxor.u32 %v2515, 2147483648
    %v2522 = vmul.f32 %v2516, 1.442695
    %v2523 = vpow.pop %v2522
    %v2524 = vmul.f32 %v2517, 1.442695
    %v2525 = vpow.pop %v2524
    %v2526 = vmul.f32 %v2518, 1.442695
    %v2527 = vpow.pop %v2526
    %v2528 = vmul.f32 %v2519, 1.442695
    %v2529 = vpow.pop %v2528
    %v2530 = vmul.f32 %v2520, 1.442695
    %v2531 = vpow.pop %v2530
    %v2532 = vmul.f32 %v2521, 1.442695
    %v2533 = vpow.pop %v2532
    %v2534 = vadd.f32 %v2523, 1.0
    %v2535 = vadd.f32 %v2525, 1.0
    %v2536 = vadd.f32 %v2527, 1.0
    %v2537 = vadd.f32 %v2529, 1.0
    %v2538 = vadd.f32 %v2531, 1.0
    %v2539 = vadd.f32 %v2533, 1.0
    %v2540 = vrcp.pop %v2534
    %v2541 = vmul.f32 1.0, %v2540
    %v2542 = vrcp.pop %v2535
    %v2543 = vmul.f32 1.0, %v2542
    %v2544 = vrcp.pop %v2536
    %v2545 = vmul.f32 1.0, %v2544
    %v2546 = vrcp.pop %v2537
    %v2547 = vmul.f32 1.0, %v2546
    %v2548 = vrcp.pop %v2538
    %v2549 = vmul.f32 1.0, %v2548
    %v2550 = vrcp.pop %v2539
    %v2551 = vmul.f32 1.0, %v2550
    %v2552 = vmul.f32 %v2541, %v2414
    %v2553 = vmul.f32 %v2543, %v2418
    %v2554 = vmul.f32 %v2545, %v2424
    %v2555 = vmul.f32 %v2547, %v2428
    %v2556 = vmul.f32 %v2549, %v2434
    %v2557 = vmul.f32 %v2551, %v2438
    %v2558 = vpack.c.bf16 %v2553, %v2552
    %v2559 = vpack.c.bf16 %v2543, %v2541
    %v2560 = vpack.c.bf16 %v2555, %v2554
    %v2561 = vpack.c.bf16 %v2547, %v2545
    %v2562 = vpack.c.bf16 %v2557, %v2556
    %v2563 = vpack.c.bf16 %v2551, %v2549
    %2564 = vmatprep.subr.bf16.mxu0 %v2559
    %2565 = vmatpush1.bf16.msra.mxu0 %v2558
    %2566 = vmatprep.subr.bf16.mxu0 %v2561
    %2567 = vmatpush1.bf16.msra.mxu0 %v2560
    %2568 = vmatprep.subr.bf16.mxu0 %v2563
    %2569 = vmatpush1.bf16.msra.mxu0 %v2562
    %2570 = vmatprep.subr.bf16.mxu0 0
    %2571 = vmatpush1.bf16.msra.mxu0 0
    %2572 = vmatprep.subr.bf16.mxu0 0
    %2573 = vmatpush1.bf16.msra.mxu0 0
    %2574 = vmatprep.subr.bf16.mxu0 0
    %2575 = vmatpush1.bf16.msra.mxu0 0
    %2576 = vmatprep.subr.bf16.mxu0 0
    %2577 = vmatpush1.bf16.msra.mxu0 0
    %2578 = vmatprep.subr.bf16.mxu0 0
    %2579 = vmatpush1.bf16.msra.mxu0 0
    %2580 = vmatprep.subr.bf16.mxu0 0
    %2581 = vmatpush1.bf16.msra.mxu0 0
    %2582 = vmatprep.subr.bf16.mxu0 0
    %2583 = vmatpush1.bf16.msra.mxu0 0
    %2584 = vmatprep.subr.bf16.mxu0 0
    %2585 = vmatpush1.bf16.msra.mxu0 0
    %2586 = vmatprep.subr.bf16.mxu0 0
    %2587 = vmatpush1.bf16.msra.mxu0 0
    %2588 = vmatprep.subr.bf16.mxu0 0
    %2589 = vmatpush1.bf16.msra.mxu0 0
    %2590 = vmatprep.subr.bf16.mxu0 0
    %2591 = vmatpush1.bf16.msra.mxu0 0
    %2592 = vmatprep.subr.bf16.mxu0 0
    %2593 = vmatpush1.bf16.msra.mxu0 0
    %2594 = vmatprep.subr.bf16.mxu0 0
    %2595 = vmatpush1.bf16.msra.mxu0 0
    %2596 = vmatprep.mubr.bf16.mxu0 0
    %2597 = vmatmul.mubr.bf16.gmra.mrb[0].mxu0 %v1122
    %v2598 = vpop.f32.mrb[0].mxu0
    %v2599 = vadd.f32 0.0, %v2598
    %v2600 = vpop.f32.mrb[0].mxu0
    %v2601 = vadd.f32 0.0, %v2600
    %v2602 = vpop.f32.mrb[0].mxu0
    %v2603 = vadd.f32 0.0, %v2602
    %v2604 = vpop.f32.mrb[0].mxu0
    %v2605 = vadd.f32 0.0, %v2604
    %2606 = vmatprep.mubr.bf16.mxu0 0
    %2607 = vmatmul.mubr.bf16.gmra.mrb[0].mxu0 %v1125
    %v2608 = vpop.f32.mrb[0].mxu0
    %v2609 = vadd.f32 0.0, %v2608
    %v2610 = vpop.f32.mrb[0].mxu0
    %v2611 = vadd.f32 0.0, %v2610
    %v2612 = vpop.f32.mrb[0].mxu0
    %v2613 = vpop.f32.mrb[0].mxu0
    %2614 = vdwg.mxu0
    %v2615 = vadd.f32 %v2601, 1e-06
    %v2616 = vadd.f32 %v2605, 1e-06
    %v2617 = vadd.f32 %v2611, 1e-06
    %v2618 = vrcp.pop %v2615
    %v2619 = vrcp.pop %v2616
    %v2620 = vrcp.pop %v2617
    %v2621 = vmul.f32 %v2599, %v2618
    %v2622 = vmul.f32 %v2603, %v2619
    %v2623 = vmul.f32 %v2609, %v2620
    %v2624 = vadd.f32 %v2150, %v2621
    %v2625 = vadd.f32 %v2156, %v2622
    %v2626 = vadd.f32 %v2162, %v2623
    %v2627 = vmul.f32 %v2624, %v1193
    %v2628 = vmul.f32 %v2625, %v1198
    %v2629 = vmul.f32 %v2626, %v1203
    %v2630 = vmul.f32 %v2510, %v1211
    %v2631 = vmul.f32 %v2511, %v1216
    %v2632 = vmul.f32 %v2512, %v1221
    %v2633 = vmul.f32 %v2513, %v1226
    %v2634 = vmul.f32 %v2514, %v1231
    %v2635 = vmul.f32 %v2515, %v1236
    %s2636 = scalar_lea.vmem %s16, 4
    %v2637 = vld [vmem:[%s2636] sm:$0x3]
    %s2638 = scalar_lea.vmem %s17, 4
    %v2639 = vld [vmem:[%s2638] sm:$0x3]
    %v2640 = vlaneseq
    %v2641 = vshrl.u32 %v2640, 7
    %v2642 = vsub.s32 0, %v2641
    %v2643 = vrot.slane %v2637, %v2642
    %v2644 = vmul.f32 %v2627, %v2643
    %v2645 = vmul.f32 %v2628, %v2643
    %v2646 = vmul.f32 %v2629, %v2643
    %v2647 = vlaneseq
    %v2648 = vshrl.u32 %v2647, 7
    %v2649 = vsub.s32 1, %v2648
    %v2650 = vrot.slane %v2637, %v2649
    %v2651 = vadd.f32 %v2644, %v2650
    %v2652 = vadd.f32 %v2645, %v2650
    %v2653 = vadd.f32 %v2646, %v2650
    %v2654 = vlaneseq
    %v2655 = vshrl.u32 %v2654, 7
    %v2656 = vsub.s32 0, %v2655
    %v2657 = vrot.slane %v2639, %v2656
    %v2658 = vmul.f32 %v2630, %v2657
    %v2659 = vmul.f32 %v2631, %v2657
    %v2660 = vmul.f32 %v2632, %v2657
    %v2661 = vmul.f32 %v2633, %v2657
    %v2662 = vmul.f32 %v2634, %v2657
    %v2663 = vmul.f32 %v2635, %v2657
    %v2664 = vlaneseq
    %v2665 = vshrl.u32 %v2664, 7
    %v2666 = vsub.s32 1, %v2665
    %v2667 = vrot.slane %v2639, %v2666
    %v2668 = vadd.f32 %v2658, %v2667
    %v2669 = vadd.f32 %v2659, %v2667
    %v2670 = vadd.f32 %v2660, %v2667
    %v2671 = vadd.f32 %v2661, %v2667
    %v2672 = vadd.f32 %v2662, %v2667
    %v2673 = vadd.f32 %v2663, %v2667
    %v2674 = vmax.f32 %v2651, 0.0
    %v2675 = vmax.f32 %v2652, 0.0
    %v2676 = vmax.f32 %v2653, 0.0
    %v2677 = vadd.f32 %v1980, %v2674
    %v2678 = vadd.f32 %v1981, %v2675
    %v2679 = vadd.f32 %v1982, %v2676
    %v2680 = vmax.f32 %v2668, 0.0
    %v2681 = vmax.f32 %v2669, 0.0
    %v2682 = vmax.f32 %v2670, 0.0
    %v2683 = vmax.f32 %v2671, 0.0
    %v2684 = vmax.f32 %v2672, 0.0
    %v2685 = vmax.f32 %v2673, 0.0
    %v2686 = vadd.f32 %v1989, %v2680
    %v2687 = vadd.f32 %v1990, %v2681
    %v2688 = vadd.f32 %v1991, %v2682
    %v2689 = vadd.f32 %v1992, %v2683
    %v2690 = vadd.f32 %v1993, %v2684
    %v2691 = vadd.f32 %v1994, %v2685
    %s2692 = scalar_lea.vmem [#allocation11], 1536
    %v2693 = vld [vmem:[%s2692] sm:$0xff]
    %v2694 = vld [vmem:[%s2692 + $0x8] sm:$0xff]
    %v2695 = vld [vmem:[%s2692 + $0x10] sm:$0xff]
    %v2696 = vld [vmem:[%s2692 + $0x18] sm:$0xff]
    %v2697 = vld [vmem:[%s2692 + $0x20] sm:$0xff]
    %v2698 = vld [vmem:[%s2692 + $0x28] sm:$0xff]
    %v2699 = vld [vmem:[%s2692 + $0x30] sm:$0xff]
    %v2700 = vld [vmem:[%s2692 + $0x38] sm:$0xff]
    %v2701 = vld [vmem:[%s2692 + $0x40] sm:$0xff]
    %v2702 = vld [vmem:[%s2692 + $0x48] sm:$0xff]
    %v2703 = vld [vmem:[%s2692 + $0x50] sm:$0xff]
    %v2704 = vld [vmem:[%s2692 + $0x58] sm:$0xff]
    %v2705 = vld [vmem:[%s2692 + $0x60] sm:$0xff]
    %v2706 = vld [vmem:[%s2692 + $0x68] sm:$0xff]
    %v2707 = vld [vmem:[%s2692 + $0x70] sm:$0xff]
    %v2708 = vld [vmem:[%s2692 + $0x78] sm:$0xff]
    %v2709 = vld [vmem:[%s2692 + $0x80] sm:$0xff]
    %v2710 = vld [vmem:[%s2692 + $0x88] sm:$0xff]
    %v2711 = vld [vmem:[%s2692 + $0x90] sm:$0xff]
    %v2712 = vld [vmem:[%s2692 + $0x98] sm:$0xff]
    %v2713 = vld [vmem:[%s2692 + $0xa0] sm:$0xff]
    %v2714 = vld [vmem:[%s2692 + $0xa8] sm:$0xff]
    %v2715 = vld [vmem:[%s2692 + $0xb0] sm:$0xff]
    %v2716 = vld [vmem:[%s2692 + $0xb8] sm:$0xff]
    %v2717 = vld [vmem:[%s2692 + $0xc0] sm:$0xff]
    %v2718 = vld [vmem:[%s2692 + $0xc8] sm:$0xff]
    %v2719 = vld [vmem:[%s2692 + $0xd0] sm:$0xff]
    %v2720 = vld [vmem:[%s2692 + $0xd8] sm:$0xff]
    %v2721 = vld [vmem:[%s2692 + $0xe0] sm:$0xff]
    %v2722 = vld [vmem:[%s2692 + $0xe8] sm:$0xff]
    %v2723 = vld [vmem:[%s2692 + $0xf0] sm:$0xff]
    %v2724 = vld [vmem:[%s2692 + $0xf8] sm:$0xff]
    %v2725 = vld [vmem:[%s2692 + $0x100] sm:$0xff]
    %v2726 = vld [vmem:[%s2692 + $0x108] sm:$0xff]
    %v2727 = vld [vmem:[%s2692 + $0x110] sm:$0xff]
    %v2728 = vld [vmem:[%s2692 + $0x118] sm:$0xff]
    %v2729 = vld [vmem:[%s2692 + $0x120] sm:$0xff]
    %v2730 = vld [vmem:[%s2692 + $0x128] sm:$0xff]
    %v2731 = vld [vmem:[%s2692 + $0x130] sm:$0xff]
    %v2732 = vld [vmem:[%s2692 + $0x138] sm:$0xff]
    %v2733 = vld [vmem:[%s2692 + $0x140] sm:$0xff]
    %v2734 = vld [vmem:[%s2692 + $0x148] sm:$0xff]
    %v2735 = vld [vmem:[%s2692 + $0x150] sm:$0xff]
    %v2736 = vld [vmem:[%s2692 + $0x158] sm:$0xff]
    %v2737 = vld [vmem:[%s2692 + $0x160] sm:$0xff]
    %v2738 = vld [vmem:[%s2692 + $0x168] sm:$0xff]
    %v2739 = vld [vmem:[%s2692 + $0x170] sm:$0xff]
    %v2740 = vld [vmem:[%s2692 + $0x178] sm:$0xff]
    %v2741 = vld [vmem:[%s2692 + $0x180] sm:$0xff]
    %v2742 = vld [vmem:[%s2692 + $0x188] sm:$0xff]
    %v2743 = vld [vmem:[%s2692 + $0x190] sm:$0xff]
    %v2744 = vld [vmem:[%s2692 + $0x198] sm:$0xff]
    %v2745 = vld [vmem:[%s2692 + $0x1a0] sm:$0xff]
    %v2746 = vld [vmem:[%s2692 + $0x1a8] sm:$0xff]
    %v2747 = vld [vmem:[%s2692 + $0x1b0] sm:$0xff]
    %v2748 = vld [vmem:[%s2692 + $0x1b8] sm:$0xff]
    %v2749 = vld [vmem:[%s2692 + $0x1c0] sm:$0xff]
    %v2750 = vld [vmem:[%s2692 + $0x1c8] sm:$0xff]
    %v2751 = vld [vmem:[%s2692 + $0x1d0] sm:$0xff]
    %v2752 = vld [vmem:[%s2692 + $0x1d8] sm:$0xff]
    %v2753 = vld [vmem:[%s2692 + $0x1e0] sm:$0xff]
    %v2754 = vld [vmem:[%s2692 + $0x1e8] sm:$0xff]
    %v2755 = vld [vmem:[%s2692 + $0x1f0] sm:$0xff]
    %v2756 = vld [vmem:[%s2692 + $0x1f8] sm:$0xff]
    %s2757 = scalar_lea.vmem %s13, 12
    %v2758 = vld [vmem:[%s2757] sm:$0xf]
    %v2760 = vlaneseq
    %v2761 = vshrl.u32 %v2760, 7
    %v2762 = vsub.s32 0, %v2761
    %v2763 = vrot.slane %v2758, %v2762
    %v2764 = vlaneseq
    %v2765 = vshrl.u32 %v2764, 7
    %v2766 = vsub.s32 1, %v2765
    %v2767 = vrot.slane %v2758, %v2766
    %v2768 = vlaneseq
    %v2769 = vshrl.u32 %v2768, 7
    %v2770 = vsub.s32 2, %v2769
    %v2771 = vrot.slane %v2758, %v2770
    %v2772 = vlaneseq
    %v2773 = vshrl.u32 %v2772, 7
    %v2774 = vsub.s32 3, %v2773
    %v2775 = vrot.slane %v2758, %v2774
    %2780 = vmatprep.subr.mxu0 %v2694
    %2781 = vmatpush1.msra.mxu0 %v2693
    %2782 = vmatprep.subr.mxu0 %v2698
    %2783 = vmatpush1.msra.mxu0 %v2697
    %2784 = vmatprep.subr.mxu0 %v2702
    %2785 = vmatpush1.msra.mxu0 %v2701
    %2786 = vmatprep.subr.mxu0 %v2706
    %2787 = vmatpush1.msra.mxu0 %v2705
    %2788 = vmatprep.subr.mxu0 %v2710
    %2789 = vmatpush1.msra.mxu0 %v2709
    %2790 = vmatprep.subr.mxu0 %v2714
    %2791 = vmatpush1.msra.mxu0 %v2713
    %2792 = vmatprep.subr.mxu0 %v2718
    %2793 = vmatpush1.msra.mxu0 %v2717
    %2794 = vmatprep.subr.mxu0 %v2722
    %2795 = vmatpush1.msra.mxu0 %v2721
    %2796 = vmatprep.subr.mxu0 %v2726
    %2797 = vmatpush1.msra.mxu0 %v2725
    %2798 = vmatprep.subr.mxu0 %v2730
    %2799 = vmatpush1.msra.mxu0 %v2729
    %2800 = vmatprep.subr.mxu0 %v2734
    %2801 = vmatpush1.msra.mxu0 %v2733
    %2802 = vmatprep.subr.mxu0 %v2738
    %2803 = vmatpush1.msra.mxu0 %v2737
    %2804 = vmatprep.subr.mxu0 %v2742
    %2805 = vmatpush1.msra.mxu0 %v2741
    %2806 = vmatprep.subr.mxu0 %v2746
    %2807 = vmatpush1.msra.mxu0 %v2745
    %2808 = vmatprep.subr.mxu0 %v2750
    %2809 = vmatpush1.msra.mxu0 %v2749
    %2810 = vmatprep.subr.mxu0 %v2754
    %2811 = vmatpush1.msra.mxu0 %v2753
    %2812 = vmatprep.subr.mxu0 0.0
    %2813 = vmatpush1.msra.mxu0 0.0
    %2814 = vmatprep.subr.mxu0 0.0
    %2815 = vmatpush1.msra.mxu0 0.0
    %2816 = vmatprep.subr.mxu0 0.0
    %2817 = vmatpush1.msra.mxu0 0.0
    %2818 = vmatprep.subr.mxu0 0.0
    %2819 = vmatpush1.msra.mxu0 0.0
    %2820 = vmatprep.subr.mxu0 0.0
    %2821 = vmatpush1.msra.mxu0 0.0
    %2822 = vmatprep.subr.mxu0 0.0
    %2823 = vmatpush1.msra.mxu0 0.0
    %2824 = vmatprep.subr.mxu0 0.0
    %2825 = vmatpush1.msra.mxu0 0.0
    %2826 = vmatprep.subr.mxu0 0.0
    %2827 = vmatpush1.msra.mxu0 0.0
    %2828 = vmatprep.subr.mxu0 0.0
    %2829 = vmatpush1.msra.mxu0 0.0
    %2830 = vmatprep.subr.mxu0 0.0
    %2831 = vmatpush1.msra.mxu0 0.0
    %2832 = vmatprep.subr.mxu0 0.0
    %2833 = vmatpush1.msra.mxu0 0.0
    %2834 = vmatprep.subr.mxu0 0.0
    %2835 = vmatpush1.msra.mxu0 0.0
    %2836 = vmatprep.subr.mxu0 0.0
    %2837 = vmatpush1.msra.mxu0 0.0
    %2838 = vmatprep.subr.mxu0 0.0
    %2839 = vmatpush1.msra.mxu0 0.0
    %2840 = vmatprep.subr.mxu0 0.0
    %2841 = vmatpush1.msra.mxu0 0.0
    %2842 = vmatprep.subr.mxu0 0.0
    %2843 = vmatpush1.msra.mxu0 0.0
    %2844 = vmatprep.mubr.f32.mxu0 0.0
    %2845 = vmatmul.mubr.f32.gmra.mrb[0].mxu0 %v2677
    %v2846 = vpop.f32.mrb[0].mxu0
    %v2847 = vadd.f32 %v2763, %v2846
    %v2848 = vpop.f32.mrb[0].mxu0
    %v2849 = vadd.f32 %v2767, %v2848
    %2850 = vmatprep.mubr.f32.mxu0 0.0
    %2851 = vmatmul.mubr.f32.gmra.mrb[0].mxu0 %v2678
    %v2852 = vpop.f32.mrb[0].mxu0
    %v2853 = vadd.f32 %v2763, %v2852
    %v2854 = vpop.f32.mrb[0].mxu0
    %v2855 = vadd.f32 %v2767, %v2854
    %2856 = vmatprep.mubr.f32.mxu0 0.0
    %2857 = vmatmul.mubr.f32.gmra.mrb[0].mxu0 %v2679
    %v2858 = vpop.f32.mrb[0].mxu0
    %v2859 = vadd.f32 %v2763, %v2858
    %v2860 = vpop.f32.mrb[0].mxu0
    %v2861 = vadd.f32 %v2767, %v2860
    %2862 = vdwg.mxu0
    %2863 = vmatprep.subr.mxu0 %v2696
    %2864 = vmatpush1.msra.mxu0 %v2695
    %2865 = vmatprep.subr.mxu0 %v2700
    %2866 = vmatpush1.msra.mxu0 %v2699
    %2867 = vmatprep.subr.mxu0 %v2704
    %2868 = vmatpush1.msra.mxu0 %v2703
    %2869 = vmatprep.subr.mxu0 %v2708
    %2870 = vmatpush1.msra.mxu0 %v2707
    %2871 = vmatprep.subr.mxu0 %v2712
    %2872 = vmatpush1.msra.mxu0 %v2711
    %2873 = vmatprep.subr.mxu0 %v2716
    %2874 = vmatpush1.msra.mxu0 %v2715
    %2875 = vmatprep.subr.mxu0 %v2720
    %2876 = vmatpush1.msra.mxu0 %v2719
    %2877 = vmatprep.subr.mxu0 %v2724
    %2878 = vmatpush1.msra.mxu0 %v2723
    %2879 = vmatprep.subr.mxu0 %v2728
    %2880 = vmatpush1.msra.mxu0 %v2727
    %2881 = vmatprep.subr.mxu0 %v2732
    %2882 = vmatpush1.msra.mxu0 %v2731
    %2883 = vmatprep.subr.mxu0 %v2736
    %2884 = vmatpush1.msra.mxu0 %v2735
    %2885 = vmatprep.subr.mxu0 %v2740
    %2886 = vmatpush1.msra.mxu0 %v2739
    %2887 = vmatprep.subr.mxu0 %v2744
    %2888 = vmatpush1.msra.mxu0 %v2743
    %2889 = vmatprep.subr.mxu0 %v2748
    %2890 = vmatpush1.msra.mxu0 %v2747
    %2891 = vmatprep.subr.mxu0 %v2752
    %2892 = vmatpush1.msra.mxu0 %v2751
    %2893 = vmatprep.subr.mxu0 %v2756
    %2894 = vmatpush1.msra.mxu0 %v2755
    %2895 = vmatprep.subr.mxu0 0.0
    %2896 = vmatpush1.msra.mxu0 0.0
    %2897 = vmatprep.subr.mxu0 0.0
    %2898 = vmatpush1.msra.mxu0 0.0
    %2899 = vmatprep.subr.mxu0 0.0
    %2900 = vmatpush1.msra.mxu0 0.0
    %2901 = vmatprep.subr.mxu0 0.0
    %2902 = vmatpush1.msra.mxu0 0.0
    %2903 = vmatprep.subr.mxu0 0.0
    %2904 = vmatpush1.msra.mxu0 0.0
    %2905 = vmatprep.subr.mxu0 0.0
    %2906 = vmatpush1.msra.mxu0 0.0
    %2907 = vmatprep.subr.mxu0 0.0
    %2908 = vmatpush1.msra.mxu0 0.0
    %2909 = vmatprep.subr.mxu0 0.0
    %2910 = vmatpush1.msra.mxu0 0.0
    %2911 = vmatprep.subr.mxu0 0.0
    %2912 = vmatpush1.msra.mxu0 0.0
    %2913 = vmatprep.subr.mxu0 0.0
    %2914 = vmatpush1.msra.mxu0 0.0
    %2915 = vmatprep.subr.mxu0 0.0
    %2916 = vmatpush1.msra.mxu0 0.0
    %2917 = vmatprep.subr.mxu0 0.0
    %2918 = vmatpush1.msra.mxu0 0.0
    %2919 = vmatprep.subr.mxu0 0.0
    %2920 = vmatpush1.msra.mxu0 0.0
    %2921 = vmatprep.subr.mxu0 0.0
    %2922 = vmatpush1.msra.mxu0 0.0
    %2923 = vmatprep.subr.mxu0 0.0
    %2924 = vmatpush1.msra.mxu0 0.0
    %2925 = vmatprep.subr.mxu0 0.0
    %2926 = vmatpush1.msra.mxu0 0.0
    %2927 = vmatprep.mubr.f32.mxu0 0.0
    %2928 = vmatmul.mubr.f32.gmra.mrb[0].mxu0 %v2677
    %v2929 = vpop.f32.mrb[0].mxu0
    %v2930 = vadd.f32 %v2771, %v2929
    %v2931 = vpop.f32.mrb[0].mxu0
    %v2932 = vadd.f32 %v2775, %v2931
    %2933 = vmatprep.mubr.f32.mxu0 0.0
    %2934 = vmatmul.mubr.f32.gmra.mrb[0].mxu0 %v2678
    %v2935 = vpop.f32.mrb[0].mxu0
    %v2936 = vadd.f32 %v2771, %v2935
    %v2937 = vpop.f32.mrb[0].mxu0
    %v2938 = vadd.f32 %v2775, %v2937
    %2939 = vmatprep.mubr.f32.mxu0 0.0
    %2940 = vmatmul.mubr.f32.gmra.mrb[0].mxu0 %v2679
    %v2941 = vpop.f32.mrb[0].mxu0
    %v2942 = vadd.f32 %v2771, %v2941
    %v2943 = vpop.f32.mrb[0].mxu0
    %v2944 = vadd.f32 %v2775, %v2943
    %2945 = vdwg.mxu0
    %s2946 = scalar_lea.vmem [#allocation13], 384
    %v2947 = vld [vmem:[%s2946] sm:$0xff]
    %v2948 = vld [vmem:[%s2946 + $0x8] sm:$0xff]
    %v2949 = vld [vmem:[%s2946 + $0x10] sm:$0xff]
    %v2950 = vld [vmem:[%s2946 + $0x18] sm:$0xff]
    %v2951 = vld [vmem:[%s2946 + $0x20] sm:$0xff]
    %v2952 = vld [vmem:[%s2946 + $0x28] sm:$0xff]
    %v2953 = vld [vmem:[%s2946 + $0x30] sm:$0xff]
    %v2954 = vld [vmem:[%s2946 + $0x38] sm:$0xff]
    %v2955 = vld [vmem:[%s2946 + $0x40] sm:$0xff]
    %v2956 = vld [vmem:[%s2946 + $0x48] sm:$0xff]
    %v2957 = vld [vmem:[%s2946 + $0x50] sm:$0xff]
    %v2958 = vld [vmem:[%s2946 + $0x58] sm:$0xff]
    %v2959 = vld [vmem:[%s2946 + $0x60] sm:$0xff]
    %v2960 = vld [vmem:[%s2946 + $0x68] sm:$0xff]
    %v2961 = vld [vmem:[%s2946 + $0x70] sm:$0xff]
    %v2962 = vld [vmem:[%s2946 + $0x78] sm:$0xff]
    %s2963 = scalar_lea.vmem [#allocation14], 3
    %v2964 = vld [vmem:[%s2963] sm:$0x1]
    %v2966 = vlaneseq
    %v2967 = vshrl.u32 %v2966, 7
    %v2968 = vsub.s32 0, %v2967
    %v2969 = vrot.slane %v2964, %v2968
    %2971 = vmatprep.subr.mxu0 0.0
    %2972 = vmatpush1.msra.mxu0 %v2947
    %2973 = vmatprep.subr.mxu0 0.0
    %2974 = vmatpush1.msra.mxu0 %v2948
    %2975 = vmatprep.subr.mxu0 0.0
    %2976 = vmatpush1.msra.mxu0 %v2949
    %2977 = vmatprep.subr.mxu0 0.0
    %2978 = vmatpush1.msra.mxu0 %v2950
    %2979 = vmatprep.subr.mxu0 0.0
    %2980 = vmatpush1.msra.mxu0 %v2951
    %2981 = vmatprep.subr.mxu0 0.0
    %2982 = vmatpush1.msra.mxu0 %v2952
    %2983 = vmatprep.subr.mxu0 0.0
    %2984 = vmatpush1.msra.mxu0 %v2953
    %2985 = vmatprep.subr.mxu0 0.0
    %2986 = vmatpush1.msra.mxu0 %v2954
    %2987 = vmatprep.subr.mxu0 0.0
    %2988 = vmatpush1.msra.mxu0 %v2955
    %2989 = vmatprep.subr.mxu0 0.0
    %2990 = vmatpush1.msra.mxu0 %v2956
    %2991 = vmatprep.subr.mxu0 0.0
    %2992 = vmatpush1.msra.mxu0 %v2957
    %2993 = vmatprep.subr.mxu0 0.0
    %2994 = vmatpush1.msra.mxu0 %v2958
    %2995 = vmatprep.subr.mxu0 0.0
    %2996 = vmatpush1.msra.mxu0 %v2959
    %2997 = vmatprep.subr.mxu0 0.0
    %2998 = vmatpush1.msra.mxu0 %v2960
    %2999 = vmatprep.subr.mxu0 0.0
    %3000 = vmatpush1.msra.mxu0 %v2961
    %3001 = vmatprep.subr.mxu0 0.0
    %3002 = vmatpush1.msra.mxu0 %v2962
    %3003 = vmatprep.subr.mxu0 0.0
    %3004 = vmatpush1.msra.mxu0 0.0
    %3005 = vmatprep.subr.mxu0 0.0
    %3006 = vmatpush1.msra.mxu0 0.0
    %3007 = vmatprep.subr.mxu0 0.0
    %3008 = vmatpush1.msra.mxu0 0.0
    %3009 = vmatprep.subr.mxu0 0.0
    %3010 = vmatpush1.msra.mxu0 0.0
    %3011 = vmatprep.subr.mxu0 0.0
    %3012 = vmatpush1.msra.mxu0 0.0
    %3013 = vmatprep.subr.mxu0 0.0
    %3014 = vmatpush1.msra.mxu0 0.0
    %3015 = vmatprep.subr.mxu0 0.0
    %3016 = vmatpush1.msra.mxu0 0.0
    %3017 = vmatprep.subr.mxu0 0.0
    %3018 = vmatpush1.msra.mxu0 0.0
    %3019 = vmatprep.subr.mxu0 0.0
    %3020 = vmatpush1.msra.mxu0 0.0
    %3021 = vmatprep.subr.mxu0 0.0
    %3022 = vmatpush1.msra.mxu0 0.0
    %3023 = vmatprep.subr.mxu0 0.0
    %3024 = vmatpush1.msra.mxu0 0.0
    %3025 = vmatprep.subr.mxu0 0.0
    %3026 = vmatpush1.msra.mxu0 0.0
    %3027 = vmatprep.subr.mxu0 0.0
    %3028 = vmatpush1.msra.mxu0 0.0
    %3029 = vmatprep.subr.mxu0 0.0
    %3030 = vmatpush1.msra.mxu0 0.0
    %3031 = vmatprep.subr.mxu0 0.0
    %3032 = vmatpush1.msra.mxu0 0.0
    %3033 = vmatprep.subr.mxu0 0.0
    %3034 = vmatpush1.msra.mxu0 0.0
    %3035 = vmatprep.mubr.f32.mxu0 0.0
    %3036 = vmatmul.mubr.f32.gmra.mrb[0].mxu0 %v2686
    %v3037 = vpop.f32.mrb[0].mxu0
    %v3038 = vadd.f32 %v2969, %v3037
    %v3039 = vpop.f32.mrb[0].mxu0
    %3040 = vmatprep.mubr.f32.mxu0 0.0
    %3041 = vmatmul.mubr.f32.gmra.mrb[0].mxu0 %v2687
    %v3042 = vpop.f32.mrb[0].mxu0
    %v3043 = vadd.f32 %v2969, %v3042
    %v3044 = vpop.f32.mrb[0].mxu0
    %3045 = vmatprep.mubr.f32.mxu0 0.0
    %3046 = vmatmul.mubr.f32.gmra.mrb[0].mxu0 %v2688
    %v3047 = vpop.f32.mrb[0].mxu0
    %v3048 = vadd.f32 %v2969, %v3047
    %v3049 = vpop.f32.mrb[0].mxu0
    %3050 = vmatprep.mubr.f32.mxu0 0.0
    %3051 = vmatmul.mubr.f32.gmra.mrb[0].mxu0 %v2689
    %v3052 = vpop.f32.mrb[0].mxu0
    %v3053 = vadd.f32 %v2969, %v3052
    %v3054 = vpop.f32.mrb[0].mxu0
    %3055 = vmatprep.mubr.f32.mxu0 0.0
    %3056 = vmatmul.mubr.f32.gmra.mrb[0].mxu0 %v2690
    %v3057 = vpop.f32.mrb[0].mxu0
    %v3058 = vadd.f32 %v2969, %v3057
    %v3059 = vpop.f32.mrb[0].mxu0
    %3060 = vmatprep.mubr.f32.mxu0 0.0
    %3061 = vmatmul.mubr.f32.gmra.mrb[0].mxu0 %v2691
    %v3062 = vpop.f32.mrb[0].mxu0
    %v3063 = vadd.f32 %v2969, %v3062
    %v3064 = vpop.f32.mrb[0].mxu0
    %3065 = vdwg.mxu0
    %v3066 = vpack.c.bf16 %v2855, %v2849
    %v3067 = vpack.c.bf16 %v2936, %v2930
    %v3068 = vpack.c.bf16 %v2861, %v2861
    %v3069 = vpack.c.bf16 %v2942, %v2942
    %v3071 = vsel %vm896, %v3068, 0
    %v3074 = vsel %vm896, %v3069, 0
    %3076 = vmatprep.subr.bf16.mxu0 %v3067
    %3077 = vmatpush1.bf16.msra.mxu0 %v3066
    %3078 = vmatprep.subr.bf16.mxu0 %v3074
    %3079 = vmatpush1.bf16.msra.mxu0 %v3071
    %3080 = vmatprep.subr.bf16.mxu0 0
    %3081 = vmatpush1.bf16.msra.mxu0 0
    %3082 = vmatprep.subr.bf16.mxu0 0
    %3083 = vmatpush1.bf16.msra.mxu0 0
    %3084 = vmatprep.subr.bf16.mxu0 0
    %3085 = vmatpush1.bf16.msra.mxu0 0
    %3086 = vmatprep.subr.bf16.mxu0 0
    %3087 = vmatpush1.bf16.msra.mxu0 0
    %3088 = vmatprep.subr.bf16.mxu0 0
    %3089 = vmatpush1.bf16.msra.mxu0 0
    %3090 = vmatprep.subr.bf16.mxu0 0
    %3091 = vmatpush1.bf16.msra.mxu0 0
    %3092 = vmatprep.subr.bf16.mxu0 0
    %3093 = vmatpush1.bf16.msra.mxu0 0
    %3094 = vmatprep.subr.bf16.mxu0 0
    %3095 = vmatpush1.bf16.msra.mxu0 0
    %3096 = vmatprep.subr.bf16.mxu0 0
    %3097 = vmatpush1.bf16.msra.mxu0 0
    %3098 = vmatprep.subr.bf16.mxu0 0
    %3099 = vmatpush1.bf16.msra.mxu0 0
    %3100 = vmatprep.subr.bf16.mxu0 0
    %3101 = vmatpush1.bf16.msra.mxu0 0
    %3102 = vmatprep.subr.bf16.mxu0 0
    %3103 = vmatpush1.bf16.msra.mxu0 0
    %3104 = vmatprep.subr.bf16.mxu0 0
    %3105 = vmatpush1.bf16.msra.mxu0 0
    %3106 = vmatprep.subr.bf16.mxu0 0
    %3107 = vmatpush1.bf16.msra.mxu0 0
    %3108 = vmatprep.mubr.bf16.mxu0 0
    %3109 = vmatmul.mubr.bf16.gmra.mrb[0].mxu0 %v888
    %v3110 = vpop.f32.mrb[0].mxu0
    %v3111 = vadd.f32 0.0, %v3110
    %v3112 = vpop.f32.mrb[0].mxu0
    %v3113 = vadd.f32 0.0, %v3112
    %v3114 = vpop.f32.mrb[0].mxu0
    %v3115 = vadd.f32 0.0, %v3114
    %v3116 = vpop.f32.mrb[0].mxu0
    %v3117 = vadd.f32 0.0, %v3116
    %3118 = vmatprep.mubr.bf16.mxu0 0
    %3119 = vmatmul.mubr.bf16.gmra.mrb[0].mxu0 %v891
    %v3120 = vpop.f32.mrb[0].mxu0
    %v3121 = vadd.f32 0.0, %v3120
    %v3122 = vpop.f32.mrb[0].mxu0
    %v3123 = vadd.f32 0.0, %v3122
    %v3124 = vpop.f32.mrb[0].mxu0
    %v3125 = vadd.f32 0.0, %v3124
    %v3126 = vpop.f32.mrb[0].mxu0
    %v3127 = vadd.f32 0.0, %v3126
    %3128 = vmatprep.mubr.bf16.mxu0 0
    %3129 = vmatmul.mubr.bf16.gmra.mrb[0].mxu0 %v894
    %v3130 = vpop.f32.mrb[0].mxu0
    %v3131 = vadd.f32 0.0, %v3130
    %v3132 = vpop.f32.mrb[0].mxu0
    %v3133 = vadd.f32 0.0, %v3132
    %v3134 = vpop.f32.mrb[0].mxu0
    %v3135 = vadd.f32 0.0, %v3134
    %v3136 = vpop.f32.mrb[0].mxu0
    %v3137 = vadd.f32 0.0, %v3136
    %3138 = vdwg.mxu0
    %v3139 = vpack.c.bf16 %v2938, %v2932
    %v3140 = vpack.c.bf16 %v2944, %v2944
    %v3142 = vsel %vm896, %v3140, 0
    %3144 = vmatprep.subr.bf16.mxu0 0
    %3145 = vmatpush1.bf16.msra.mxu0 %v3139
    %3146 = vmatprep.subr.bf16.mxu0 0
    %3147 = vmatpush1.bf16.msra.mxu0 %v3142
    %3148 = vmatprep.subr.bf16.mxu0 0
    %3149 = vmatpush1.bf16.msra.mxu0 0
    %3150 = vmatprep.subr.bf16.mxu0 0
    %3151 = vmatpush1.bf16.msra.mxu0 0
    %3152 = vmatprep.subr.bf16.mxu0 0
    %3153 = vmatpush1.bf16.msra.mxu0 0
    %3154 = vmatprep.subr.bf16.mxu0 0
    %3155 = vmatpush1.bf16.msra.mxu0 0
    %3156 = vmatprep.subr.bf16.mxu0 0
    %3157 = vmatpush1.bf16.msra.mxu0 0
    %3158 = vmatprep.subr.bf16.mxu0 0
    %3159 = vmatpush1.bf16.msra.mxu0 0
    %3160 = vmatprep.subr.bf16.mxu0 0
    %3161 = vmatpush1.bf16.msra.mxu0 0
    %3162 = vmatprep.subr.bf16.mxu0 0
    %3163 = vmatpush1.bf16.msra.mxu0 0
    %3164 = vmatprep.subr.bf16.mxu0 0
    %3165 = vmatpush1.bf16.msra.mxu0 0
    %3166 = vmatprep.subr.bf16.mxu0 0
    %3167 = vmatpush1.bf16.msra.mxu0 0
    %3168 = vmatprep.subr.bf16.mxu0 0
    %3169 = vmatpush1.bf16.msra.mxu0 0
    %3170 = vmatprep.subr.bf16.mxu0 0
    %3171 = vmatpush1.bf16.msra.mxu0 0
    %3172 = vmatprep.subr.bf16.mxu0 0
    %3173 = vmatpush1.bf16.msra.mxu0 0
    %3174 = vmatprep.subr.bf16.mxu0 0
    %3175 = vmatpush1.bf16.msra.mxu0 0
    %3176 = vmatprep.mubr.bf16.mxu0 0
    %3177 = vmatmul.mubr.bf16.gmra.mrb[0].mxu0 %v984
    %v3178 = vpop.f32.mrb[0].mxu0
    %v3179 = vadd.f32 0.0, %v3178
    %v3180 = vpop.f32.mrb[0].mxu0
    %v3181 = vpop.f32.mrb[0].mxu0
    %v3182 = vadd.f32 0.0, %v3181
    %v3183 = vpop.f32.mrb[0].mxu0
    %3184 = vmatprep.mubr.bf16.mxu0 0
    %3185 = vmatmul.mubr.bf16.gmra.mrb[0].mxu0 %v987
    %v3186 = vpop.f32.mrb[0].mxu0
    %v3187 = vadd.f32 0.0, %v3186
    %v3188 = vpop.f32.mrb[0].mxu0
    %v3189 = vpop.f32.mrb[0].mxu0
    %v3190 = vadd.f32 0.0, %v3189
    %v3191 = vpop.f32.mrb[0].mxu0
    %3192 = vmatprep.mubr.bf16.mxu0 0
    %3193 = vmatmul.mubr.bf16.gmra.mrb[0].mxu0 %v990
    %v3194 = vpop.f32.mrb[0].mxu0
    %v3195 = vadd.f32 0.0, %v3194
    %v3196 = vpop.f32.mrb[0].mxu0
    %v3197 = vpop.f32.mrb[0].mxu0
    %v3198 = vadd.f32 0.0, %v3197
    %v3199 = vpop.f32.mrb[0].mxu0
    %3200 = vdwg.mxu0
    %v3201 = vadd.f32 %v3038, %v3113
    %v3202 = vadd.f32 %v3043, %v3117
    %v3203 = vadd.f32 %v3048, %v3123
    %v3204 = vadd.f32 %v3053, %v3127
    %v3205 = vadd.f32 %v3058, %v3133
    %v3206 = vadd.f32 %v3063, %v3137
    %v3207 = vadd.f32 %v3201, %v3179
    %v3208 = vadd.f32 %v3202, %v3182
    %v3209 = vadd.f32 %v3203, %v3187
    %v3210 = vadd.f32 %v3204, %v3190
    %v3211 = vadd.f32 %v3205, %v3195
    %v3212 = vadd.f32 %v3206, %v3198
    %v3213 = vxor.u32 %v3207, 2147483648
    %v3214 = vxor.u32 %v3208, 2147483648
    %v3215 = vxor.u32 %v3209, 2147483648
    %v3216 = vxor.u32 %v3210, 2147483648
    %v3217 = vxor.u32 %v3211, 2147483648
    %v3218 = vxor.u32 %v3212, 2147483648
    %v3219 = vmul.f32 %v3213, 1.442695
    %v3220 = vpow.pop %v3219
    %v3221 = vmul.f32 %v3214, 1.442695
    %v3222 = vpow.pop %v3221
    %v3223 = vmul.f32 %v3215, 1.442695
    %v3224 = vpow.pop %v3223
    %v3225 = vmul.f32 %v3216, 1.442695
    %v3226 = vpow.pop %v3225
    %v3227 = vmul.f32 %v3217, 1.442695
    %v3228 = vpow.pop %v3227
    %v3229 = vmul.f32 %v3218, 1.442695
    %v3230 = vpow.pop %v3229
    %v3231 = vadd.f32 %v3220, 1.0
    %v3232 = vadd.f32 %v3222, 1.0
    %v3233 = vadd.f32 %v3224, 1.0
    %v3234 = vadd.f32 %v3226, 1.0
    %v3235 = vadd.f32 %v3228, 1.0
    %v3236 = vadd.f32 %v3230, 1.0
    %v3237 = vrcp.pop %v3231
    %v3238 = vmul.f32 1.0, %v3237
    %v3239 = vrcp.pop %v3232
    %v3240 = vmul.f32 1.0, %v3239
    %v3241 = vrcp.pop %v3233
    %v3242 = vmul.f32 1.0, %v3241
    %v3243 = vrcp.pop %v3234
    %v3244 = vmul.f32 1.0, %v3243
    %v3245 = vrcp.pop %v3235
    %v3246 = vmul.f32 1.0, %v3245
    %v3247 = vrcp.pop %v3236
    %v3248 = vmul.f32 1.0, %v3247
    %v3249 = vmul.f32 %v3238, %v3111
    %v3250 = vmul.f32 %v3240, %v3115
    %v3251 = vmul.f32 %v3242, %v3121
    %v3252 = vmul.f32 %v3244, %v3125
    %v3253 = vmul.f32 %v3246, %v3131
    %v3254 = vmul.f32 %v3248, %v3135
    %v3255 = vpack.c.bf16 %v3250, %v3249
    %v3256 = vpack.c.bf16 %v3240, %v3238
    %v3257 = vpack.c.bf16 %v3252, %v3251
    %v3258 = vpack.c.bf16 %v3244, %v3242
    %v3259 = vpack.c.bf16 %v3254, %v3253
    %v3260 = vpack.c.bf16 %v3248, %v3246
    %3261 = vmatprep.subr.bf16.mxu0 %v3256
    %3262 = vmatpush1.bf16.msra.mxu0 %v3255
    %3263 = vmatprep.subr.bf16.mxu0 %v3258
    %3264 = vmatpush1.bf16.msra.mxu0 %v3257
    %3265 = vmatprep.subr.bf16.mxu0 %v3260
    %3266 = vmatpush1.bf16.msra.mxu0 %v3259
    %3267 = vmatprep.subr.bf16.mxu0 0
    %3268 = vmatpush1.bf16.msra.mxu0 0
    %3269 = vmatprep.subr.bf16.mxu0 0
    %3270 = vmatpush1.bf16.msra.mxu0 0
    %3271 = vmatprep.subr.bf16.mxu0 0
    %3272 = vmatpush1.bf16.msra.mxu0 0
    %3273 = vmatprep.subr.bf16.mxu0 0
    %3274 = vmatpush1.bf16.msra.mxu0 0
    %3275 = vmatprep.subr.bf16.mxu0 0
    %3276 = vmatpush1.bf16.msra.mxu0 0
    %3277 = vmatprep.subr.bf16.mxu0 0
    %3278 = vmatpush1.bf16.msra.mxu0 0
    %3279 = vmatprep.subr.bf16.mxu0 0
    %3280 = vmatpush1.bf16.msra.mxu0 0
    %3281 = vmatprep.subr.bf16.mxu0 0
    %3282 = vmatpush1.bf16.msra.mxu0 0
    %3283 = vmatprep.subr.bf16.mxu0 0
    %3284 = vmatpush1.bf16.msra.mxu0 0
    %3285 = vmatprep.subr.bf16.mxu0 0
    %3286 = vmatpush1.bf16.msra.mxu0 0
    %3287 = vmatprep.subr.bf16.mxu0 0
    %3288 = vmatpush1.bf16.msra.mxu0 0
    %3289 = vmatprep.subr.bf16.mxu0 0
    %3290 = vmatpush1.bf16.msra.mxu0 0
    %3291 = vmatprep.subr.bf16.mxu0 0
    %3292 = vmatpush1.bf16.msra.mxu0 0
    %3293 = vmatprep.mubr.bf16.mxu0 0
    %3294 = vmatmul.mubr.bf16.gmra.mrb[0].mxu0 %v1122
    %v3295 = vpop.f32.mrb[0].mxu0
    %v3296 = vadd.f32 0.0, %v3295
    %v3297 = vpop.f32.mrb[0].mxu0
    %v3298 = vadd.f32 0.0, %v3297
    %v3299 = vpop.f32.mrb[0].mxu0
    %v3300 = vadd.f32 0.0, %v3299
    %v3301 = vpop.f32.mrb[0].mxu0
    %v3302 = vadd.f32 0.0, %v3301
    %3303 = vmatprep.mubr.bf16.mxu0 0
    %3304 = vmatmul.mubr.bf16.gmra.mrb[0].mxu0 %v1125
    %v3305 = vpop.f32.mrb[0].mxu0
    %v3306 = vadd.f32 0.0, %v3305
    %v3307 = vpop.f32.mrb[0].mxu0
    %v3308 = vadd.f32 0.0, %v3307
    %v3309 = vpop.f32.mrb[0].mxu0
    %v3310 = vpop.f32.mrb[0].mxu0
    %3311 = vdwg.mxu0
    %v3312 = vadd.f32 %v3298, 1e-06
    %v3313 = vadd.f32 %v3302, 1e-06
    %v3314 = vadd.f32 %v3308, 1e-06
    %v3315 = vrcp.pop %v3312
    %v3316 = vrcp.pop %v3313
    %v3317 = vrcp.pop %v3314
    %v3318 = vmul.f32 %v3296, %v3315
    %v3319 = vmul.f32 %v3300, %v3316
    %v3320 = vmul.f32 %v3306, %v3317
    %v3321 = vadd.f32 %v2847, %v3318
    %v3322 = vadd.f32 %v2853, %v3319
    %v3323 = vadd.f32 %v2859, %v3320
    %v3324 = vmul.f32 %v3321, %v1193
    %v3325 = vmul.f32 %v3322, %v1198
    %v3326 = vmul.f32 %v3323, %v1203
    %s3327 = scalar_lea.vmem %s16, 6
    %v3328 = vld [vmem:[%s3327] sm:$0x3]
    %v3329 = vlaneseq
    %v3330 = vshrl.u32 %v3329, 7
    %v3331 = vsub.s32 0, %v3330
    %v3332 = vrot.slane %v3328, %v3331
    %v3333 = vmul.f32 %v3324, %v3332
    %v3334 = vmul.f32 %v3325, %v3332
    %v3335 = vmul.f32 %v3326, %v3332
    %v3336 = vlaneseq
    %v3337 = vshrl.u32 %v3336, 7
    %v3338 = vsub.s32 1, %v3337
    %v3339 = vrot.slane %v3328, %v3338
    %v3340 = vadd.f32 %v3333, %v3339
    %v3341 = vadd.f32 %v3334, %v3339
    %v3342 = vadd.f32 %v3335, %v3339
    %v3343 = vmax.f32 %v3340, 0.0
    %v3344 = vmax.f32 %v3341, 0.0
    %v3345 = vmax.f32 %v3342, 0.0
    %v3346 = vadd.f32 %v2677, %v3343
    %v3347 = vadd.f32 %v2678, %v3344
    %v3348 = vadd.f32 %v2679, %v3345
    %v3349 = vld [vmem:[%s7] sm:$0x3]
    %v3351 = vsel %vm886, %v3349, 0
    %3353 = vmatprep.subr.mxu0 0.0
    %3354 = vmatpush1.msra.mxu0 %v3346
    %3355 = vmatprep.subr.mxu0 0.0
    %3356 = vmatpush1.msra.mxu0 %v3347
    %3357 = vmatprep.subr.mxu0 0.0
    %3358 = vmatpush1.msra.mxu0 %v3348
    %3359 = vmatprep.subr.mxu0 0.0
    %3360 = vmatpush1.msra.mxu0 0.0
    %3361 = vmatprep.subr.mxu0 0.0
    %3362 = vmatpush1.msra.mxu0 0.0
    %3363 = vmatprep.subr.mxu0 0.0
    %3364 = vmatpush1.msra.mxu0 0.0
    %3365 = vmatprep.subr.mxu0 0.0
    %3366 = vmatpush1.msra.mxu0 0.0
    %3367 = vmatprep.subr.mxu0 0.0
    %3368 = vmatpush1.msra.mxu0 0.0
    %3369 = vmatprep.subr.mxu0 0.0
    %3370 = vmatpush1.msra.mxu0 0.0
    %3371 = vmatprep.subr.mxu0 0.0
    %3372 = vmatpush1.msra.mxu0 0.0
    %3373 = vmatprep.subr.mxu0 0.0
    %3374 = vmatpush1.msra.mxu0 0.0
    %3375 = vmatprep.subr.mxu0 0.0
    %3376 = vmatpush1.msra.mxu0 0.0
    %3377 = vmatprep.subr.mxu0 0.0
    %3378 = vmatpush1.msra.mxu0 0.0
    %3379 = vmatprep.subr.mxu0 0.0
    %3380 = vmatpush1.msra.mxu0 0.0
    %3381 = vmatprep.subr.mxu0 0.0
    %3382 = vmatpush1.msra.mxu0 0.0
    %3383 = vmatprep.subr.mxu0 0.0
    %3384 = vmatpush1.msra.mxu0 0.0
    %3385 = vmatprep.subr.mxu0 0.0
    %3386 = vmatpush1.msra.mxu0 0.0
    %3387 = vmatprep.subr.mxu0 0.0
    %3388 = vmatpush1.msra.mxu0 0.0
    %3389 = vmatprep.subr.mxu0 0.0
    %3390 = vmatpush1.msra.mxu0 0.0
    %3391 = vmatprep.subr.mxu0 0.0
    %3392 = vmatpush1.msra.mxu0 0.0
    %3393 = vmatprep.subr.mxu0 0.0
    %3394 = vmatpush1.msra.mxu0 0.0
    %3395 = vmatprep.subr.mxu0 0.0
    %3396 = vmatpush1.msra.mxu0 0.0
    %3397 = vmatprep.subr.mxu0 0.0
    %3398 = vmatpush1.msra.mxu0 0.0
    %3399 = vmatprep.subr.mxu0 0.0
    %3400 = vmatpush1.msra.mxu0 0.0
    %3401 = vmatprep.subr.mxu0 0.0
    %3402 = vmatpush1.msra.mxu0 0.0
    %3403 = vmatprep.subr.mxu0 0.0
    %3404 = vmatpush1.msra.mxu0 0.0
    %3405 = vmatprep.subr.mxu0 0.0
    %3406 = vmatpush1.msra.mxu0 0.0
    %3407 = vmatprep.subr.mxu0 0.0
    %3408 = vmatpush1.msra.mxu0 0.0
    %3409 = vmatprep.subr.mxu0 0.0
    %3410 = vmatpush1.msra.mxu0 0.0
    %3411 = vmatprep.subr.mxu0 0.0
    %3412 = vmatpush1.msra.mxu0 0.0
    %3413 = vmatprep.subr.mxu0 0.0
    %3414 = vmatpush1.msra.mxu0 0.0
    %3415 = vmatprep.subr.mxu0 0.0
    %3416 = vmatpush1.msra.mxu0 0.0
    %3417 = vmatprep.mubr.f32.mxu0 0.0
    %3418 = vmatmul.mubr.f32.gmra.mrb[0].mxu0 %v3351
    %v3419 = vpop.f32.mrb[0].mxu0
    %v3420 = vadd.f32 0.0, %v3419
    %v3421 = vpop.f32.mrb[0].mxu0
    %3422 = vdwg.mxu0
    %v3423 = vld [vmem:[#allocation16] sm:$0xff]
    %v3424 = vld [vmem:[#allocation16 + $0x8] sm:$0xff]
    %v3425 = vld [vmem:[#allocation16 + $0x10] sm:$0xff]
    %v3426 = vld [vmem:[#allocation16 + $0x18] sm:$0xff]
    %v3427 = vld [vmem:[#allocation16 + $0x20] sm:$0xff]
    %v3428 = vld [vmem:[#allocation16 + $0x28] sm:$0xff]
    %v3429 = vld [vmem:[#allocation16 + $0x30] sm:$0xff]
    %v3430 = vld [vmem:[#allocation16 + $0x38] sm:$0xff]
    %v3431 = vld [vmem:[#allocation16 + $0x40] sm:$0xff]
    %v3432 = vld [vmem:[#allocation16 + $0x48] sm:$0xff]
    %v3433 = vld [vmem:[#allocation16 + $0x50] sm:$0xff]
    %v3434 = vld [vmem:[#allocation16 + $0x58] sm:$0xff]
    %v3435 = vld [vmem:[#allocation16 + $0x60] sm:$0xff]
    %v3436 = vld [vmem:[#allocation16 + $0x68] sm:$0xff]
    %v3437 = vld [vmem:[#allocation16 + $0x70] sm:$0xff]
    %v3438 = vld [vmem:[#allocation16 + $0x78] sm:$0xff]
    %v3439 = vld [vmem:[%s19] sm:$0x1]
    %v3441 = vlaneseq
    %v3442 = vshrl.u32 %v3441, 7
    %v3443 = vsub.s32 0, %v3442
    %v3444 = vrot.slane %v3439, %v3443
    %3446 = vmatprep.subr.mxu0 0.0
    %3447 = vmatpush1.msra.mxu0 %v3423
    %3448 = vmatprep.subr.mxu0 0.0
    %3449 = vmatpush1.msra.mxu0 %v3424
    %3450 = vmatprep.subr.mxu0 0.0
    %3451 = vmatpush1.msra.mxu0 %v3425
    %3452 = vmatprep.subr.mxu0 0.0
    %3453 = vmatpush1.msra.mxu0 %v3426
    %3454 = vmatprep.subr.mxu0 0.0
    %3455 = vmatpush1.msra.mxu0 %v3427
    %3456 = vmatprep.subr.mxu0 0.0
    %3457 = vmatpush1.msra.mxu0 %v3428
    %3458 = vmatprep.subr.mxu0 0.0
    %3459 = vmatpush1.msra.mxu0 %v3429
    %3460 = vmatprep.subr.mxu0 0.0
    %3461 = vmatpush1.msra.mxu0 %v3430
    %3462 = vmatprep.subr.mxu0 0.0
    %3463 = vmatpush1.msra.mxu0 %v3431
    %3464 = vmatprep.subr.mxu0 0.0
    %3465 = vmatpush1.msra.mxu0 %v3432
    %3466 = vmatprep.subr.mxu0 0.0
    %3467 = vmatpush1.msra.mxu0 %v3433
    %3468 = vmatprep.subr.mxu0 0.0
    %3469 = vmatpush1.msra.mxu0 %v3434
    %3470 = vmatprep.subr.mxu0 0.0
    %3471 = vmatpush1.msra.mxu0 %v3435
    %3472 = vmatprep.subr.mxu0 0.0
    %3473 = vmatpush1.msra.mxu0 %v3436
    %3474 = vmatprep.subr.mxu0 0.0
    %3475 = vmatpush1.msra.mxu0 %v3437
    %3476 = vmatprep.subr.mxu0 0.0
    %3477 = vmatpush1.msra.mxu0 %v3438
    %3478 = vmatprep.subr.mxu0 0.0
    %3479 = vmatpush1.msra.mxu0 0.0
    %3480 = vmatprep.subr.mxu0 0.0
    %3481 = vmatpush1.msra.mxu0 0.0
    %3482 = vmatprep.subr.mxu0 0.0
    %3483 = vmatpush1.msra.mxu0 0.0
    %3484 = vmatprep.subr.mxu0 0.0
    %3485 = vmatpush1.msra.mxu0 0.0
    %3486 = vmatprep.subr.mxu0 0.0
    %3487 = vmatpush1.msra.mxu0 0.0
    %3488 = vmatprep.subr.mxu0 0.0
    %3489 = vmatpush1.msra.mxu0 0.0
    %3490 = vmatprep.subr.mxu0 0.0
    %3491 = vmatpush1.msra.mxu0 0.0
    %3492 = vmatprep.subr.mxu0 0.0
    %3493 = vmatpush1.msra.mxu0 0.0
    %3494 = vmatprep.subr.mxu0 0.0
    %3495 = vmatpush1.msra.mxu0 0.0
    %3496 = vmatprep.subr.mxu0 0.0
    %3497 = vmatpush1.msra.mxu0 0.0
    %3498 = vmatprep.subr.mxu0 0.0
    %3499 = vmatpush1.msra.mxu0 0.0
    %3500 = vmatprep.subr.mxu0 0.0
    %3501 = vmatpush1.msra.mxu0 0.0
    %3502 = vmatprep.subr.mxu0 0.0
    %3503 = vmatpush1.msra.mxu0 0.0
    %3504 = vmatprep.subr.mxu0 0.0
    %3505 = vmatpush1.msra.mxu0 0.0
    %3506 = vmatprep.subr.mxu0 0.0
    %3507 = vmatpush1.msra.mxu0 0.0
    %3508 = vmatprep.subr.mxu0 0.0
    %3509 = vmatpush1.msra.mxu0 0.0
    %3510 = vmatprep.mubr.f32.mxu0 0.0
    %3511 = vmatmul.mubr.f32.gmra.mrb[0].mxu0 %v3420
    %v3512 = vpop.f32.mrb[0].mxu0
    %v3513 = vadd.f32 %v3444, %v3512
    %v3514 = vpop.f32.mrb[0].mxu0
    %3515 = vdwg.mxu0
    %v3516 = vmax.f32 %v3513, 0.0
    %v3517 = vld [vmem:[#allocation17] sm:$0xff]
    %v3518 = vld [vmem:[#allocation17 + $0x8] sm:$0xff]
    %v3519 = vld [vmem:[#allocation17 + $0x10] sm:$0xff]
    %v3520 = vld [vmem:[#allocation17 + $0x18] sm:$0xff]
    %v3521 = vld [vmem:[#allocation17 + $0x20] sm:$0xff]
    %v3522 = vld [vmem:[#allocation17 + $0x28] sm:$0xff]
    %v3523 = vld [vmem:[#allocation17 + $0x30] sm:$0xff]
    %v3524 = vld [vmem:[#allocation17 + $0x38] sm:$0xff]
    %v3525 = vld [vmem:[#allocation17 + $0x40] sm:$0xff]
    %v3526 = vld [vmem:[#allocation17 + $0x48] sm:$0xff]
    %v3527 = vld [vmem:[#allocation17 + $0x50] sm:$0xff]
    %v3528 = vld [vmem:[#allocation17 + $0x58] sm:$0xff]
    %v3529 = vld [vmem:[#allocation17 + $0x60] sm:$0xff]
    %v3530 = vld [vmem:[#allocation17 + $0x68] sm:$0xff]
    %v3531 = vld [vmem:[#allocation17 + $0x70] sm:$0xff]
    %v3532 = vld [vmem:[#allocation17 + $0x78] sm:$0xff]
    %v3533 = vld [vmem:[%s21] sm:$0x1]
    %v3535 = vlaneseq
    %v3536 = vshrl.u32 %v3535, 7
    %v3537 = vsub.s32 0, %v3536
    %v3538 = vrot.slane %v3533, %v3537
    %3540 = vmatprep.subr.mxu0 0.0
    %3541 = vmatpush1.msra.mxu0 %v3517
    %3542 = vmatprep.subr.mxu0 0.0
    %3543 = vmatpush1.msra.mxu0 %v3518
    %3544 = vmatprep.subr.mxu0 0.0
    %3545 = vmatpush1.msra.mxu0 %v3519
    %3546 = vmatprep.subr.mxu0 0.0
    %3547 = vmatpush1.msra.mxu0 %v3520
    %3548 = vmatprep.subr.mxu0 0.0
    %3549 = vmatpush1.msra.mxu0 %v3521
    %3550 = vmatprep.subr.mxu0 0.0
    %3551 = vmatpush1.msra.mxu0 %v3522
    %3552 = vmatprep.subr.mxu0 0.0
    %3553 = vmatpush1.msra.mxu0 %v3523
    %3554 = vmatprep.subr.mxu0 0.0
    %3555 = vmatpush1.msra.mxu0 %v3524
    %3556 = vmatprep.subr.mxu0 0.0
    %3557 = vmatpush1.msra.mxu0 %v3525
    %3558 = vmatprep.subr.mxu0 0.0
    %3559 = vmatpush1.msra.mxu0 %v3526
    %3560 = vmatprep.subr.mxu0 0.0
    %3561 = vmatpush1.msra.mxu0 %v3527
    %3562 = vmatprep.subr.mxu0 0.0
    %3563 = vmatpush1.msra.mxu0 %v3528
    %3564 = vmatprep.subr.mxu0 0.0
    %3565 = vmatpush1.msra.mxu0 %v3529
    %3566 = vmatprep.subr.mxu0 0.0
    %3567 = vmatpush1.msra.mxu0 %v3530
    %3568 = vmatprep.subr.mxu0 0.0
    %3569 = vmatpush1.msra.mxu0 %v3531
    %3570 = vmatprep.subr.mxu0 0.0
    %3571 = vmatpush1.msra.mxu0 %v3532
    %3572 = vmatprep.subr.mxu0 0.0
    %3573 = vmatpush1.msra.mxu0 0.0
    %3574 = vmatprep.subr.mxu0 0.0
    %3575 = vmatpush1.msra.mxu0 0.0
    %3576 = vmatprep.subr.mxu0 0.0
    %3577 = vmatpush1.msra.mxu0 0.0
    %3578 = vmatprep.subr.mxu0 0.0
    %3579 = vmatpush1.msra.mxu0 0.0
    %3580 = vmatprep.subr.mxu0 0.0
    %3581 = vmatpush1.msra.mxu0 0.0
    %3582 = vmatprep.subr.mxu0 0.0
    %3583 = vmatpush1.msra.mxu0 0.0
    %3584 = vmatprep.subr.mxu0 0.0
    %3585 = vmatpush1.msra.mxu0 0.0
    %3586 = vmatprep.subr.mxu0 0.0
    %3587 = vmatpush1.msra.mxu0 0.0
    %3588 = vmatprep.subr.mxu0 0.0
    %3589 = vmatpush1.msra.mxu0 0.0
    %3590 = vmatprep.subr.mxu0 0.0
    %3591 = vmatpush1.msra.mxu0 0.0
    %3592 = vmatprep.subr.mxu0 0.0
    %3593 = vmatpush1.msra.mxu0 0.0
    %3594 = vmatprep.subr.mxu0 0.0
    %3595 = vmatpush1.msra.mxu0 0.0
    %3596 = vmatprep.subr.mxu0 0.0
    %3597 = vmatpush1.msra.mxu0 0.0
    %3598 = vmatprep.subr.mxu0 0.0
    %3599 = vmatpush1.msra.mxu0 0.0
    %3600 = vmatprep.subr.mxu0 0.0
    %3601 = vmatpush1.msra.mxu0 0.0
    %3602 = vmatprep.subr.mxu0 0.0
    %3603 = vmatpush1.msra.mxu0 0.0
    %3604 = vmatprep.mubr.f32.mxu0 0.0
    %3605 = vmatmul.mubr.f32.gmra.mrb[0].mxu0 %v3516
    %v3606 = vpop.f32.mrb[0].mxu0
    %v3607 = vadd.f32 %v3538, %v3606
    %v3608 = vpop.f32.mrb[0].mxu0
    %3609 = vdwg.mxu0
    %v3610 = vmax.f32 %v3607, 0.0
    %v3611 = vld [vmem:[#allocation19] sm:$0xff]
    %v3612 = vld [vmem:[#allocation19 + $0x8] sm:$0xff]
    %v3613 = vld [vmem:[#allocation19 + $0x10] sm:$0xff]
    %v3614 = vld [vmem:[#allocation19 + $0x18] sm:$0xff]
    %v3615 = vld [vmem:[#allocation19 + $0x20] sm:$0xff]
    %v3616 = vld [vmem:[#allocation19 + $0x28] sm:$0xff]
    %v3617 = vld [vmem:[#allocation19 + $0x30] sm:$0xff]
    %v3618 = vld [vmem:[#allocation19 + $0x38] sm:$0xff]
    %v3619 = vld [vmem:[#allocation19 + $0x40] sm:$0xff]
    %v3620 = vld [vmem:[#allocation19 + $0x48] sm:$0xff]
    %v3621 = vld [vmem:[#allocation19 + $0x50] sm:$0xff]
    %v3622 = vld [vmem:[#allocation19 + $0x58] sm:$0xff]
    %v3623 = vld [vmem:[#allocation19 + $0x60] sm:$0xff]
    %v3624 = vld [vmem:[#allocation19 + $0x68] sm:$0xff]
    %v3625 = vld [vmem:[#allocation19 + $0x70] sm:$0xff]
    %v3626 = vld [vmem:[#allocation19 + $0x78] sm:$0xff]
    %v3627 = vld [vmem:[%s23] sm:$0x1]
    %v3629 = vlaneseq
    %v3630 = vshrl.u32 %v3629, 7
    %v3631 = vsub.s32 0, %v3630
    %v3632 = vrot.slane %v3627, %v3631
    %3634 = vmatprep.subr.mxu0 0.0
    %3635 = vmatpush1.msra.mxu0 %v3611
    %3636 = vmatprep.subr.mxu0 0.0
    %3637 = vmatpush1.msra.mxu0 %v3612
    %3638 = vmatprep.subr.mxu0 0.0
    %3639 = vmatpush1.msra.mxu0 %v3613
    %3640 = vmatprep.subr.mxu0 0.0
    %3641 = vmatpush1.msra.mxu0 %v3614
    %3642 = vmatprep.subr.mxu0 0.0
    %3643 = vmatpush1.msra.mxu0 %v3615
    %3644 = vmatprep.subr.mxu0 0.0
    %3645 = vmatpush1.msra.mxu0 %v3616
    %3646 = vmatprep.subr.mxu0 0.0
    %3647 = vmatpush1.msra.mxu0 %v3617
    %3648 = vmatprep.subr.mxu0 0.0
    %3649 = vmatpush1.msra.mxu0 %v3618
    %3650 = vmatprep.subr.mxu0 0.0
    %3651 = vmatpush1.msra.mxu0 %v3619
    %3652 = vmatprep.subr.mxu0 0.0
    %3653 = vmatpush1.msra.mxu0 %v3620
    %3654 = vmatprep.subr.mxu0 0.0
    %3655 = vmatpush1.msra.mxu0 %v3621
    %3656 = vmatprep.subr.mxu0 0.0
    %3657 = vmatpush1.msra.mxu0 %v3622
    %3658 = vmatprep.subr.mxu0 0.0
    %3659 = vmatpush1.msra.mxu0 %v3623
    %3660 = vmatprep.subr.mxu0 0.0
    %3661 = vmatpush1.msra.mxu0 %v3624
    %3662 = vmatprep.subr.mxu0 0.0
    %3663 = vmatpush1.msra.mxu0 %v3625
    %3664 = vmatprep.subr.mxu0 0.0
    %3665 = vmatpush1.msra.mxu0 %v3626
    %3666 = vmatprep.subr.mxu0 0.0
    %3667 = vmatpush1.msra.mxu0 0.0
    %3668 = vmatprep.subr.mxu0 0.0
    %3669 = vmatpush1.msra.mxu0 0.0
    %3670 = vmatprep.subr.mxu0 0.0
    %3671 = vmatpush1.msra.mxu0 0.0
    %3672 = vmatprep.subr.mxu0 0.0
    %3673 = vmatpush1.msra.mxu0 0.0
    %3674 = vmatprep.subr.mxu0 0.0
    %3675 = vmatpush1.msra.mxu0 0.0
    %3676 = vmatprep.subr.mxu0 0.0
    %3677 = vmatpush1.msra.mxu0 0.0
    %3678 = vmatprep.subr.mxu0 0.0
    %3679 = vmatpush1.msra.mxu0 0.0
    %3680 = vmatprep.subr.mxu0 0.0
    %3681 = vmatpush1.msra.mxu0 0.0
    %3682 = vmatprep.subr.mxu0 0.0
    %3683 = vmatpush1.msra.mxu0 0.0
    %3684 = vmatprep.subr.mxu0 0.0
    %3685 = vmatpush1.msra.mxu0 0.0
    %3686 = vmatprep.subr.mxu0 0.0
    %3687 = vmatpush1.msra.mxu0 0.0
    %3688 = vmatprep.subr.mxu0 0.0
    %3689 = vmatpush1.msra.mxu0 0.0
    %3690 = vmatprep.subr.mxu0 0.0
    %3691 = vmatpush1.msra.mxu0 0.0
    %3692 = vmatprep.subr.mxu0 0.0
    %3693 = vmatpush1.msra.mxu0 0.0
    %3694 = vmatprep.subr.mxu0 0.0
    %3695 = vmatpush1.msra.mxu0 0.0
    %3696 = vmatprep.subr.mxu0 0.0
    %3697 = vmatpush1.msra.mxu0 0.0
    %3698 = vmatprep.mubr.f32.mxu0 0.0
    %3699 = vmatmul.mubr.f32.gmra.mrb[0].mxu0 %v3610
    %v3700 = vpop.f32.mrb[0].mxu0
    %v3701 = vadd.f32 %v3632, %v3700
    %v3702 = vpop.f32.mrb[0].mxu0
    %3703 = vdwg.mxu0
    %3704 = vst [vmem:[#allocation20] sm:$0x3] %v3701
    // Predicated region
    $region142: #{tpu_custom_call.1} parent=1 // pred_check
      _
    $region143: #{tpu_custom_call.1} parent=1 // pred_check_branch
      %3706 = sbr.rel (0) target = $region145
    $region144: #{tpu_custom_call.1} parent=1 // pred_region
      %s3708 = ssub.s32 32, 32
      %3709 = vsyncadd [#allocation4], %s3708
      %s3711 = sshll.u32 [#allocation20], 4
      %s3712 = int_to_ptr.vmem [resolvable:$true] %s3711
      %3714 = dma.vmem_to_hbm [thread:$0]  %s3712, 32, %s24, [#allocation4]
    $region145: #{tpu_custom_call.1} parent=1 // pred_fallthru
      _
    // Predicated region
    $region146: #{tpu_custom_call.1} parent=1 // pred_check
      _
    $region147: #{tpu_custom_call.1} parent=1 // pred_check_branch
      %3716 = sbr.rel (0) target = $region149
    $region148: #{tpu_custom_call.1} parent=1 // pred_region
      %3717 = dma.done [#allocation4], 32
    $region149: #{tpu_custom_call.1} parent=1 // pred_fallthru
      _
    %3718 = vsyncpa [#allocation3], 1
    %3719 = vsyncpa [#allocation6], 1
    %3720 = vsyncpa [#allocation9], 1
    %3721 = vsyncpa [#allocation12], 1
    %3722 = vsyncpa [#allocation15], 1
    %3723 = vsyncpa [#allocation18], 1
    %3724 = vsyncpa [#allocation4], 1

</llo_original>
